<compile_context>
chip_gen: v6e
topology: v6e:2x2x1
jax: 0.10.0
libtpu: 0.0.40
codegen_flags: <defaults>
</compile_context>

<pallas_src>
import functools
import math

import jax
import jax.numpy as jnp
from jax import lax
from jax.experimental import pallas as pl
from jax.experimental.pallas import tpu as pltpu


LANE = 128          # TPU lane width (only used for the lane-dense SSE store)
NEG_INF = -1e30


# ----------------------------------------------------------------------------
# plain-JAX glue helpers
# ----------------------------------------------------------------------------
def patchify(x, p):
    # NCHW -> (B, (H//p)*(W//p), C*p*p)
    B, C, H, W = x.shape
    x = x.reshape(B, C, H // p, p, W // p, p)
    x = jnp.transpose(x, (0, 2, 4, 1, 3, 5))
    return x.reshape(B, (H // p) * (W // p), C * p * p)


def timestep_embedding(t, dim):
    half = dim // 2
    freqs = jnp.exp(-jnp.log(10000.0) * jnp.arange(half, dtype=jnp.float32) / half)
    args = t[:, None].astype(jnp.float32) * freqs[None, :]
    return jnp.concatenate([jnp.cos(args), jnp.sin(args)], axis=-1)


def diti_to_indices(t_scaled, K, num_timesteps=1000):
    # TODO(synk): DiTi uses stage-dependent (stages / k_per_stage) binning; a
    # uniform binning of [0, 1000) into K buckets is used here.
    idx = jnp.floor(t_scaled / (num_timesteps / K)).astype(jnp.int32)
    return jnp.clip(idx, 0, K - 1)


def rf_shift_t(t, shift):
    # RectifiedFlow.shift_t
    return shift * t / (1.0 + (shift - 1.0) * t)


def _pick_bt(B, Np, target_rows=256):
    """Largest divisor of B with Bt*Np <= target_rows (fills the MXU M dim)."""
    best = 1
    for bt in range(1, B + 1):
        if B % bt == 0 and bt * Np <= target_rows:
            best = bt
    return best


# ----------------------------------------------------------------------------
# The single fused Pallas kernel
#   grid = (B // Bt,), "parallel".  One grid step = Bt samples.
# ----------------------------------------------------------------------------
def _fused_kernel(kb_ref, temb_ref, x_ref, tgt_ref, *rest,
                  Bt, Np, pdim, K, E, D, n_tokens, enc_scale, dec_scale):
    """Runs all R encoders + the DiT block + the velocity-MSE reduction in VMEM.

    The only HBM writes are the per-sample SSE (lane-dense) and the last
    resolution's encoder tokens (used for the quan-loss proxy).
    """
    f32 = jnp.float32
    bf = jnp.bfloat16
    R = len(n_tokens)

    tok_refs = rest[:R]
    w_in_ref, b_in_ref, q_ref, w_out_ref, b_out_ref = rest[R:R + 5]
    (w_embed_ref, b_embed_ref,
     w_q_ref, b_q_ref, w_kv_ref, b_kv_ref, w_o_ref, b_o_ref,
     w_m1_ref, b_m1_ref, w_m2_ref, b_m2_ref,
     w_final_ref, b_final_ref) = rest[R + 5:R + 19]
    sse_ref, enc_last_ref = rest[-2:]

    # -------- multi-resolution Qformer-style encoders (batched over Bt) -------
    enc_parts = []
    for r in range(R):                                   # static Python loop
        Nr = n_tokens[r]
        tok = tok_refs[r][...]                           # (Bt, Nr, C) bf16, compact
        C = tok.shape[-1]
        feat = (jnp.dot(tok.reshape(Bt * Nr, C), w_in_ref[r],
                        preferred_element_type=f32) + b_in_ref[r])
        feat = feat.reshape(Bt, Nr, E).astype(bf)
        qr = jnp.broadcast_to(q_ref[r], (Bt, K, E))      # shared learned queries
        s = jnp.einsum('bke,bne->bkn', qr, feat,
                       preferred_element_type=f32) * enc_scale      # (Bt, K, Nr)
        s = s - jnp.max(s, axis=-1, keepdims=True)
        p = jnp.exp(s)
        p = p * pl.reciprocal(jnp.sum(p, axis=-1, keepdims=True), approx=True)
        attn = jnp.einsum('bkn,bne->bke', p.astype(bf), feat,
                          preferred_element_type=f32)               # (Bt, K, E)
        enc_r = (jnp.dot(attn.reshape(Bt * K, E).astype(bf), w_out_ref[r],
                         preferred_element_type=f32) + b_out_ref[r]).reshape(Bt, K, E)
        enc_parts.append(enc_r)

    Nk = R * K
    enc = jnp.concatenate(enc_parts, axis=1)             # (Bt, Nk, E), r-major keys
    enc_last_ref[...] = enc_parts[-1]                    # quan-loss proxy (f32 tiles)

    # ------------------------------ DiT-lite block ----------------------------
    x = x_ref[...]                                       # (Bt, Np, pdim) bf16, compact
    h = (jnp.dot(x.reshape(Bt * Np, pdim), w_embed_ref[...],
                 preferred_element_type=f32)
         + b_embed_ref[...]).reshape(Bt, Np, D)
    h = h + temb_ref[...]                                # hoisted t-MLP output (Bt,1,D)

    q = (jnp.dot(h.reshape(Bt * Np, D).astype(bf), w_q_ref[...],
                 preferred_element_type=f32) + b_q_ref[...])
    kv = (jnp.dot(enc.reshape(Bt * Nk, E).astype(bf), w_kv_ref[...],
                  preferred_element_type=f32) + b_kv_ref[...])      # fused k|v proj
    k = kv[:, :D].astype(bf).reshape(Bt, Nk, D)
    v = kv[:, D:].astype(bf).reshape(Bt, Nk, D)
    qb = q.astype(bf).reshape(Bt, Np, D)
    s = jnp.einsum('bqd,bkd->bqk', qb, k,
                   preferred_element_type=f32) * dec_scale          # (Bt, Np, Nk)

    # DiTi mask built in-kernel from the SMEM-prefetched k_batch: key j (r-major,
    # j = r*K + k) is valid iff k <= k_batch[sample].  No HBM bias tensor.
    kcol = lax.broadcasted_iota(jnp.int32, (Bt, Np, Nk), 2)
    kidx = (kcol & (K - 1)) if (K & (K - 1)) == 0 else (kcol % K)
    b0 = pl.program_id(0) * Bt
    kb = jnp.concatenate(
        [jnp.full((1, Np, Nk), kb_ref[b0 + i], jnp.int32) for i in range(Bt)],
        axis=0)
    s = jnp.where(kidx <= kb, s, NEG_INF)

    s = s - jnp.max(s, axis=-1, keepdims=True)
    p = jnp.exp(s)
    p = p * pl.reciprocal(jnp.sum(p, axis=-1, keepdims=True), approx=True)
    attn = jnp.einsum('bqk,bkd->bqd', p.astype(bf), v,
                      preferred_element_type=f32)                   # (Bt, Np, D)
    h = h + (jnp.dot(attn.reshape(Bt * Np, D).astype(bf), w_o_ref[...],
                     preferred_element_type=f32) + b_o_ref[...]).reshape(Bt, Np, D)

    # MLP block
    # TODO(synk): PyTorch nn.GELU defaults to exact erf; tanh approximation used here.
    m1 = jax.nn.gelu(jnp.dot(h.reshape(Bt * Np, D).astype(bf), w_m1_ref[...],
                             preferred_element_type=f32) + b_m1_ref[...])
    h = h + (jnp.dot(m1.astype(bf), w_m2_ref[...],
                     preferred_element_type=f32) + b_m2_ref[...]).reshape(Bt, Np, D)

    # final projection (compact pdim lanes; no padded weight columns can leak
    # into the loss) + fused per-sample velocity SSE
    out = (jnp.dot(h.reshape(Bt * Np, D).astype(bf), w_final_ref[...],
                   preferred_element_type=f32)
           + b_final_ref[...]).reshape(Bt, Np, pdim)
    d = out - tgt_ref[...]
    sse = jnp.sum(jnp.sum(d * d, axis=2, keepdims=True), axis=1, keepdims=True)
    sse_ref[...] = jnp.broadcast_to(sse, (Bt, 1, LANE))             # lane-dense store


def fused_tokenizer_call(params, x, x_t, v_target, t, k_batch):
    """Build inputs + specs and launch the single fused pallas_call."""
    res_list = params["encoder_res"]
    enc_params = [params["encoders"][r] for r in res_list]
    dec = params["decoder"]
    R = len(res_list)
    K = params["K"]
    patch = params["patch"]
    E = enc_params[0]["w_out"].shape[0]
    D = dec["w_q"].shape[0]
    B = x_t.shape[0]
    bf = jnp.bfloat16

    # encoder tokens: compact last dim (= C), exact per-resolution length
    toks = [patchify(x[r], 1).astype(bf) for r in res_list]          # (B, N_r, C)
    n_tokens = tuple(int(tk.shape[1]) for tk in toks)

    # decoder tokens: compact last dim (= C*p*p)
    x_tok = patchify(x_t, patch).astype(bf)                          # (B, Np, pdim)
    tgt_tok = patchify(v_target, patch).astype(jnp.float32)
    Np, pdim = x_tok.shape[1], x_tok.shape[2]

    # hoisted timestep MLP (two tiny (B,D)x(D,D) f32 matmuls in plain JAX)
    tfreq = timestep_embedding(t, D)
    t1 = jax.nn.silu(tfreq @ dec["w_t1"] + dec["b_t1"])
    temb = (t1 @ dec["w_t2"] + dec["b_t2"]).reshape(B, 1, D)

    # per-resolution encoder weights stacked along a leading R axis
    w_in = jnp.stack([ep["w_in"] for ep in enc_params], 0).astype(bf)       # (R,C,E)
    b_in = jnp.stack([ep["b_in"].reshape(1, -1) for ep in enc_params], 0)   # (R,1,E)
    qry = jnp.stack([ep["queries"] for ep in enc_params], 0).astype(bf)     # (R,K,E)
    w_out = jnp.stack([ep["w_out"] for ep in enc_params], 0).astype(bf)     # (R,E,E)
    b_out = jnp.stack([ep["b_out"].reshape(1, -1) for ep in enc_params], 0)

    # decoder weights (fused kv projection, compact final projection)
    w_kv = jnp.concatenate([dec["w_k"], dec["w_v"]], axis=1).astype(bf)     # (E, 2D)
    b_kv = jnp.concatenate([dec["b_k"], dec["b_v"]], axis=0).reshape(1, 2 * D)
    dec_weights = [
        dec["w_embed"].astype(bf), dec["b_embed"].reshape(1, -1),
        dec["w_q"].astype(bf), dec["b_q"].reshape(1, -1),
        w_kv, b_kv,
        dec["w_o"].astype(bf), dec["b_o"].reshape(1, -1),
        dec["w_m1"].astype(bf), dec["b_m1"].reshape(1, -1),
        dec["w_m2"].astype(bf), dec["b_m2"].reshape(1, -1),
        dec["w_final"].astype(bf), dec["b_final"].reshape(1, -1),
    ]

    # batch tiling: fold Bt samples into the MXU M dimension per grid step
    Bt = _pick_bt(B, Np)
    grid = (B // Bt,)

    def _bat(arr):
        nd = arr.ndim
        return pl.BlockSpec((Bt,) + arr.shape[1:],
                            lambda b, kb: (b,) + (0,) * (nd - 1))

    def _rep(arr):
        nd = arr.ndim
        return pl.BlockSpec(arr.shape, lambda b, kb: (0,) * nd)

    act_inputs = [temb, x_tok, tgt_tok] + toks
    act_specs = [_bat(a) for a in act_inputs]
    w_inputs = [w_in, b_in, qry, w_out, b_out] + dec_weights
    # NOTE: at production widths (D >= 1024) mark these invariant weight specs
    # with pipeline_mode=pl.Buffered(1) to halve their VMEM footprint (v7x).
    w_specs = [_rep(w) for w in w_inputs]

    kernel = functools.partial(
        _fused_kernel, Bt=Bt, Np=Np, pdim=pdim, K=K, E=E, D=D,
        n_tokens=n_tokens,
        enc_scale=1.0 / math.sqrt(E), dec_scale=1.0 / math.sqrt(D))

    sse, enc_last = pl.pallas_call(
        kernel,
        out_shape=(jax.ShapeDtypeStruct((B, 1, LANE), jnp.float32),
                   jax.ShapeDtypeStruct((B, K, E), jnp.float32)),
        grid_spec=pltpu.PrefetchScalarGridSpec(
            num_scalar_prefetch=1,
            grid=grid,
            in_specs=act_specs + w_specs,
            out_specs=[pl.BlockSpec((Bt, 1, LANE), lambda b, kb: (b, 0, 0)),
                       pl.BlockSpec((Bt, K, E), lambda b, kb: (b, 0, 0))],
        ),
        compiler_params=pltpu.CompilerParams(
            dimension_semantics=("parallel",),          # batch axis: balanced 2-TC split
            vmem_limit_bytes=32 * 1024 * 1024),
    )(k_batch.astype(jnp.int32), *act_inputs, *w_inputs)
    return sse, enc_last


# ----------------------------------------------------------------------------
# MultiImageTokenizer.forward (flow branch)
# ----------------------------------------------------------------------------
def multi_image_tokenizer_forward(params, x, rng, full_tokens=False):
    B, _, Himg, Wimg = x["img"]                    # x['img'] carries the image shape
    K = params["K"]
    key_t, key_noise = jax.random.split(rng)

    # RectifiedFlow branch of forward()
    if Himg * Wimg / 4096.0 < 0.5:
        shift, high_res = 1.0, False
    else:
        shift, high_res = 1.818, True
    t = jax.random.uniform(key_t, (B,), jnp.float32)   # RectifiedFlow.sample_t(B, 1.0)
    k_batch = diti_to_indices(t * 1000.0, K)
    if high_res:
        t = rf_shift_t(t, shift)
    if full_tokens:
        k_batch = diti_to_indices(jnp.ones_like(t) * 1000.0, K)

    # rectified-flow scheduling on the train-resolution latent (plain JAX glue)
    x0 = x[params["train_encoder_res"]]
    noise = jax.random.normal(key_noise, x0.shape, jnp.float32)
    t_b = t[:, None, None, None]
    x_t = (1.0 - t_b) * x0 + t_b * noise
    v_target = noise - x0

    # single fused Pallas call: all encoders + DiT block + per-sample SSE
    sse, enc_last = fused_tokenizer_call(params, x, x_t, v_target, t, k_batch)

    C, H, W = x0.shape[1:]
    per_sample = sse[:, 0, 0] / float(C * H * W)        # mean_flat of (pred - v)^2
    # TODO(synk): RectifiedFlow.training_losses mixes a recon term via recon_ratio;
    # simplified here to the pure velocity MSE (recon_ratio folded into it).
    dm_loss = jnp.mean(per_sample)
    # TODO(synk): real encoder returns a VQ/quantization commitment loss; a
    # synthetic L2 proxy on the last-resolution encoder tokens is used here.
    quan_loss = 0.01 * jnp.mean(enc_last ** 2)
    batch_mse = dm_loss                                 # flow branch: batch_mse = loss.mean()
    loss = dm_loss + quan_loss
    log_dict = {"loss": loss, "mse": batch_mse}
    return loss, log_dict


# ----------------------------------------------------------------------------
# Deterministic parameter init (synthetic, no checkpoint load)
# ----------------------------------------------------------------------------
def _w(key, shape, scale=0.02):
    return scale * jax.random.normal(key, shape, jnp.float32)


def init_params(key, *, K, E, D, C, encoder_res, train_encoder_res, patch=2):
    keys = iter(jax.random.split(key, 64))
    encoders = {}
    for res in encoder_res:
        encoders[res] = dict(
            w_in=_w(next(keys), (C, E)),
            b_in=jnp.zeros((E,), jnp.float32),
            queries=_w(next(keys), (K, E), scale=0.1),
            w_out=_w(next(keys), (E, E)),
            b_out=jnp.zeros((E,), jnp.float32),
        )
    pdim = C * patch * patch
    decoder = dict(
        w_embed=_w(next(keys), (pdim, D)), b_embed=jnp.zeros((D,), jnp.float32),
        w_t1=_w(next(keys), (D, D)), b_t1=jnp.zeros((D,), jnp.float32),
        w_t2=_w(next(keys), (D, D)), b_t2=jnp.zeros((D,), jnp.float32),
        w_q=_w(next(keys), (D, D)), b_q=jnp.zeros((D,), jnp.float32),
        w_k=_w(next(keys), (E, D)), b_k=jnp.zeros((D,), jnp.float32),
        w_v=_w(next(keys), (E, D)), b_v=jnp.zeros((D,), jnp.float32),
        w_o=_w(next(keys), (D, D)), b_o=jnp.zeros((D,), jnp.float32),
        w_m1=_w(next(keys), (D, 4 * D)), b_m1=jnp.zeros((4 * D,), jnp.float32),
        w_m2=_w(next(keys), (4 * D, D)), b_m2=jnp.zeros((D,), jnp.float32),
        w_final=_w(next(keys), (D, pdim)), b_final=jnp.zeros((pdim,), jnp.float32),
    )
    return dict(
        K=K, patch=patch,
        encoder_res=tuple(encoder_res),
        train_encoder_res=train_encoder_res,
        encoders=encoders,
        decoder=decoder,
    )


# ----------------------------------------------------------------------------
# main
# ----------------------------------------------------------------------------
if __name__ == "__main__":
    B, C = 2, 4            # batch, latent channels
    image_size = 64        # pixel image; latent_size = image_size // 8 = 8
    K, E, D = 8, 128, 128  # tokens per encoder, encoder_hidden_size, decoder hidden

    key = jax.random.PRNGKey(0)
    k_r8, k_r4, k_fwd, k_params = jax.random.split(key, 4)

    img_shape = (B, 3, image_size, image_size)   # only the shape is needed
    latents = {
        "r8": jax.random.normal(k_r8, (B, C, 8, 8), jnp.float32),
        "r4": jax.random.normal(k_r4, (B, C, 4, 4), jnp.float32),
    }

    params = init_params(
        k_params, K=K, E=E, D=D, C=C,
        encoder_res=("r8", "r4"), train_encoder_res="r8",
    )

    @jax.jit
    def run(lat, rng):
        x = dict(lat)
        x["img"] = img_shape
        return multi_image_tokenizer_forward(params, x, rng, full_tokens=False)

    loss, log_dict = run(latents, k_fwd)
    jax.block_until_ready(loss)
    jax.block_until_ready(log_dict["mse"])
    print("KERNEL_OK")
</pallas_src>

<mosaic_0001>
module attributes {stable_mosaic.version = 11 : i64} {
  func.func @_fused_kernel(%arg0: i32, %arg1: memref<2xi32, #tpu.memory_space<smem>>, %arg2: memref<2x1x128xf32, #tpu.memory_space<vmem>>, %arg3: memref<2x16x16xbf16, #tpu.memory_space<vmem>>, %arg4: memref<2x16x16xf32, #tpu.memory_space<vmem>>, %arg5: memref<2x64x4xbf16, #tpu.memory_space<vmem>>, %arg6: memref<2x16x4xbf16, #tpu.memory_space<vmem>>, %arg7: memref<2x4x128xbf16, #tpu.memory_space<vmem>>, %arg8: memref<2x1x128xf32, #tpu.memory_space<vmem>>, %arg9: memref<2x8x128xbf16, #tpu.memory_space<vmem>>, %arg10: memref<2x128x128xbf16, #tpu.memory_space<vmem>>, %arg11: memref<2x1x128xf32, #tpu.memory_space<vmem>>, %arg12: memref<16x128xbf16, #tpu.memory_space<vmem>>, %arg13: memref<1x128xf32, #tpu.memory_space<vmem>>, %arg14: memref<128x128xbf16, #tpu.memory_space<vmem>>, %arg15: memref<1x128xf32, #tpu.memory_space<vmem>>, %arg16: memref<128x256xbf16, #tpu.memory_space<vmem>>, %arg17: memref<1x256xf32, #tpu.memory_space<vmem>>, %arg18: memref<128x128xbf16, #tpu.memory_space<vmem>>, %arg19: memref<1x128xf32, #tpu.memory_space<vmem>>, %arg20: memref<128x512xbf16, #tpu.memory_space<vmem>>, %arg21: memref<1x512xf32, #tpu.memory_space<vmem>>, %arg22: memref<512x128xbf16, #tpu.memory_space<vmem>>, %arg23: memref<1x128xf32, #tpu.memory_space<vmem>>, %arg24: memref<128x16xbf16, #tpu.memory_space<vmem>>, %arg25: memref<1x16xf32, #tpu.memory_space<vmem>>, %arg26: memref<2x1x128xf32, #tpu.memory_space<vmem>>, %arg27: memref<2x8x128xf32, #tpu.memory_space<vmem>>) attributes {dimension_semantics = [#tpu.dimension_semantics<parallel>], iteration_bounds = array<i64: 1>, scalar_prefetch = 1 : i64, scratch_operands = 0 : i64, tpu.core_type = #tpu.core_type<tc>, window_params = [{transform_indices = @transform_0, window_bounds = array<i64: 2, 1, 128>}, {transform_indices = @transform_1, window_bounds = array<i64: 2, 16, 16>}, {transform_indices = @transform_2, window_bounds = array<i64: 2, 16, 16>}, {transform_indices = @transform_3, window_bounds = array<i64: 2, 64, 4>}, {transform_indices = @transform_4, window_bounds = array<i64: 2, 16, 4>}, {pipeline_mode = #tpu.pipeline_mode<synchronous>, transform_indices = @transform_5, window_bounds = array<i64: 2, 4, 128>}, {pipeline_mode = #tpu.pipeline_mode<synchronous>, transform_indices = @transform_6, window_bounds = array<i64: 2, 1, 128>}, {pipeline_mode = #tpu.pipeline_mode<synchronous>, transform_indices = @transform_7, window_bounds = array<i64: 2, 8, 128>}, {pipeline_mode = #tpu.pipeline_mode<synchronous>, transform_indices = @transform_8, window_bounds = array<i64: 2, 128, 128>}, {pipeline_mode = #tpu.pipeline_mode<synchronous>, transform_indices = @transform_9, window_bounds = array<i64: 2, 1, 128>}, {pipeline_mode = #tpu.pipeline_mode<synchronous>, transform_indices = @transform_10, window_bounds = array<i64: 16, 128>}, {pipeline_mode = #tpu.pipeline_mode<synchronous>, transform_indices = @transform_11, window_bounds = array<i64: 1, 128>}, {pipeline_mode = #tpu.pipeline_mode<synchronous>, transform_indices = @transform_12, window_bounds = array<i64: 128, 128>}, {pipeline_mode = #tpu.pipeline_mode<synchronous>, transform_indices = @transform_13, window_bounds = array<i64: 1, 128>}, {pipeline_mode = #tpu.pipeline_mode<synchronous>, transform_indices = @transform_14, window_bounds = array<i64: 128, 256>}, {pipeline_mode = #tpu.pipeline_mode<synchronous>, transform_indices = @transform_15, window_bounds = array<i64: 1, 256>}, {pipeline_mode = #tpu.pipeline_mode<synchronous>, transform_indices = @transform_16, window_bounds = array<i64: 128, 128>}, {pipeline_mode = #tpu.pipeline_mode<synchronous>, transform_indices = @transform_17, window_bounds = array<i64: 1, 128>}, {pipeline_mode = #tpu.pipeline_mode<synchronous>, transform_indices = @transform_18, window_bounds = array<i64: 128, 512>}, {pipeline_mode = #tpu.pipeline_mode<synchronous>, transform_indices = @transform_19, window_bounds = array<i64: 1, 512>}, {pipeline_mode = #tpu.pipeline_mode<synchronous>, transform_indices = @transform_20, window_bounds = array<i64: 512, 128>}, {pipeline_mode = #tpu.pipeline_mode<synchronous>, transform_indices = @transform_21, window_bounds = array<i64: 1, 128>}, {pipeline_mode = #tpu.pipeline_mode<synchronous>, transform_indices = @transform_22, window_bounds = array<i64: 128, 16>}, {pipeline_mode = #tpu.pipeline_mode<synchronous>, transform_indices = @transform_23, window_bounds = array<i64: 1, 16>}, {transform_indices = @transform_24, window_bounds = array<i64: 2, 1, 128>}, {transform_indices = @transform_25, window_bounds = array<i64: 2, 8, 128>}]} {
    %c0 = arith.constant 0 : index
    %c0_0 = arith.constant 0 : index
    %c0_1 = arith.constant 0 : index
    %0 = vector.load %arg5[%c0, %c0_0, %c0_1] : memref<2x64x4xbf16, #tpu.memory_space<vmem>>, vector<2x64x4xbf16>
    %1 = vector.shape_cast %0 : vector<2x64x4xbf16> to vector<128x4xbf16>
    %c0_2 = arith.constant 0 : index
    %c0_3 = arith.constant 0 : index
    %c0_4 = arith.constant 0 : index
    %2 = vector.load %arg7[%c0_2, %c0_3, %c0_4] : memref<2x4x128xbf16, #tpu.memory_space<vmem>>, vector<1x4x128xbf16>
    %3 = vector.shape_cast %2 : vector<1x4x128xbf16> to vector<4x128xbf16>
    %cst = arith.constant dense<0.000000e+00> : vector<128x128xf32>
    %4 = tpu.matmul %1, %3, %cst {dimension_numbers = #tpu.dot_dimension_numbers<[1], [0], [0], [1], [0, 0, 1, 1], [], []>} : vector<128x4xbf16>, vector<4x128xbf16>, vector<128x128xf32> -> vector<128x128xf32>
    %c0_5 = arith.constant 0 : index
    %c0_6 = arith.constant 0 : index
    %c0_7 = arith.constant 0 : index
    %5 = vector.load %arg8[%c0_5, %c0_6, %c0_7] : memref<2x1x128xf32, #tpu.memory_space<vmem>>, vector<1x1x128xf32>
    %6 = vector.shape_cast %5 : vector<1x1x128xf32> to vector<1x128xf32>
    %7 = vector.broadcast %6 : vector<1x128xf32> to vector<128x128xf32>
    %8 = arith.addf %4, %7 : vector<128x128xf32>
    %9 = vector.shape_cast %8 : vector<128x128xf32> to vector<2x64x128xf32>
    %10 = arith.truncf %9 : vector<2x64x128xf32> to vector<2x64x128xbf16>
    %c0_8 = arith.constant 0 : index
    %c0_9 = arith.constant 0 : index
    %c0_10 = arith.constant 0 : index
    %11 = vector.load %arg9[%c0_8, %c0_9, %c0_10] : memref<2x8x128xbf16, #tpu.memory_space<vmem>>, vector<1x8x128xbf16>
    %12 = vector.shape_cast %11 : vector<1x8x128xbf16> to vector<8x128xbf16>
    %13 = vector.shape_cast %12 : vector<8x128xbf16> to vector<1x8x128xbf16>
    %14 = vector.broadcast %13 : vector<1x8x128xbf16> to vector<2x8x128xbf16>
    "tpu.trace_start"() <{level = 10 : i32, message = "bke,bne->bkn"}> : () -> ()
    %cst_11 = arith.constant dense<0.000000e+00> : vector<2x8x64xf32>
    %15 = tpu.matmul %14, %10, %cst_11 {dimension_numbers = #tpu.dot_dimension_numbers<[2], [2], [1], [1], [0, 0, 0, 1, 1, 1], [0], [0]>} : vector<2x8x128xbf16>, vector<2x64x128xbf16>, vector<2x8x64xf32> -> vector<2x8x64xf32>
    "tpu.trace_stop"() : () -> ()
    %cst_12 = arith.constant 0.0883883461 : f32
    %16 = vector.broadcast %cst_12 : f32 to vector<2x8x64xf32>
    %17 = arith.mulf %15, %16 : vector<2x8x64xf32>
    %cst_13 = arith.constant dense<0xFF800000> : vector<2x8xf32>
    %18 = vector.multi_reduction <maximumf>, %17, %cst_13 [2] : vector<2x8x64xf32> to vector<2x8xf32>
    %19 = vector.shape_cast %18 : vector<2x8xf32> to vector<2x8x1xf32>
    %20 = vector.broadcast %19 : vector<2x8x1xf32> to vector<2x8x64xf32>
    %21 = arith.subf %17, %20 : vector<2x8x64xf32>
    %22 = math.exp %21 : vector<2x8x64xf32>
    %cst_14 = arith.constant dense<0.000000e+00> : vector<2x8xf32>
    %23 = vector.multi_reduction <add>, %22, %cst_14 [2] : vector<2x8x64xf32> to vector<2x8xf32>
    %24 = vector.shape_cast %23 : vector<2x8xf32> to vector<2x8x1xf32>
    %25 = tpu.reciprocal %24 {approx = true} : vector<2x8x1xf32> -> vector<2x8x1xf32>
    %26 = vector.broadcast %25 : vector<2x8x1xf32> to vector<2x8x64xf32>
    %27 = arith.mulf %22, %26 : vector<2x8x64xf32>
    %28 = arith.truncf %27 : vector<2x8x64xf32> to vector<2x8x64xbf16>
    "tpu.trace_start"() <{level = 10 : i32, message = "bkn,bne->bke"}> : () -> ()
    %cst_15 = arith.constant dense<0.000000e+00> : vector<2x8x128xf32>
    %29 = tpu.matmul %28, %10, %cst_15 {dimension_numbers = #tpu.dot_dimension_numbers<[2], [1], [1], [2], [0, 0, 0, 1, 1, 2], [0], [0]>} : vector<2x8x64xbf16>, vector<2x64x128xbf16>, vector<2x8x128xf32> -> vector<2x8x128xf32>
    "tpu.trace_stop"() : () -> ()
    %30 = vector.shape_cast %29 : vector<2x8x128xf32> to vector<16x128xf32>
    %31 = arith.truncf %30 : vector<16x128xf32> to vector<16x128xbf16>
    %c0_16 = arith.constant 0 : index
    %c0_17 = arith.constant 0 : index
    %c0_18 = arith.constant 0 : index
    %32 = vector.load %arg10[%c0_16, %c0_17, %c0_18] : memref<2x128x128xbf16, #tpu.memory_space<vmem>>, vector<1x128x128xbf16>
    %33 = vector.shape_cast %32 : vector<1x128x128xbf16> to vector<128x128xbf16>
    %cst_19 = arith.constant dense<0.000000e+00> : vector<16x128xf32>
    %34 = tpu.matmul %31, %33, %cst_19 {dimension_numbers = #tpu.dot_dimension_numbers<[1], [0], [0], [1], [0, 0, 1, 1], [], []>} : vector<16x128xbf16>, vector<128x128xbf16>, vector<16x128xf32> -> vector<16x128xf32>
    %c0_20 = arith.constant 0 : index
    %c0_21 = arith.constant 0 : index
    %c0_22 = arith.constant 0 : index
    %35 = vector.load %arg11[%c0_20, %c0_21, %c0_22] : memref<2x1x128xf32, #tpu.memory_space<vmem>>, vector<1x1x128xf32>
    %36 = vector.shape_cast %35 : vector<1x1x128xf32> to vector<1x128xf32>
    %37 = vector.broadcast %36 : vector<1x128xf32> to vector<16x128xf32>
    %38 = arith.addf %34, %37 : vector<16x128xf32>
    %39 = vector.shape_cast %38 : vector<16x128xf32> to vector<2x8x128xf32>
    %c0_23 = arith.constant 0 : index
    %c0_24 = arith.constant 0 : index
    %c0_25 = arith.constant 0 : index
    %40 = vector.load %arg6[%c0_23, %c0_24, %c0_25] : memref<2x16x4xbf16, #tpu.memory_space<vmem>>, vector<2x16x4xbf16>
    %41 = vector.shape_cast %40 : vector<2x16x4xbf16> to vector<32x4xbf16>
    %c1 = arith.constant 1 : index
    %c0_26 = arith.constant 0 : index
    %c0_27 = arith.constant 0 : index
    %42 = vector.load %arg7[%c1, %c0_26, %c0_27] : memref<2x4x128xbf16, #tpu.memory_space<vmem>>, vector<1x4x128xbf16>
    %43 = vector.shape_cast %42 : vector<1x4x128xbf16> to vector<4x128xbf16>
    %cst_28 = arith.constant dense<0.000000e+00> : vector<32x128xf32>
    %44 = tpu.matmul %41, %43, %cst_28 {dimension_numbers = #tpu.dot_dimension_numbers<[1], [0], [0], [1], [0, 0, 1, 1], [], []>} : vector<32x4xbf16>, vector<4x128xbf16>, vector<32x128xf32> -> vector<32x128xf32>
    %c1_29 = arith.constant 1 : index
    %c0_30 = arith.constant 0 : index
    %c0_31 = arith.constant 0 : index
    %45 = vector.load %arg8[%c1_29, %c0_30, %c0_31] : memref<2x1x128xf32, #tpu.memory_space<vmem>>, vector<1x1x128xf32>
    %46 = vector.shape_cast %45 : vector<1x1x128xf32> to vector<1x128xf32>
    %47 = vector.broadcast %46 : vector<1x128xf32> to vector<32x128xf32>
    %48 = arith.addf %44, %47 : vector<32x128xf32>
    %49 = vector.shape_cast %48 : vector<32x128xf32> to vector<2x16x128xf32>
    %50 = arith.truncf %49 : vector<2x16x128xf32> to vector<2x16x128xbf16>
    %c1_32 = arith.constant 1 : index
    %c0_33 = arith.constant 0 : index
    %c0_34 = arith.constant 0 : index
    %51 = vector.load %arg9[%c1_32, %c0_33, %c0_34] : memref<2x8x128xbf16, #tpu.memory_space<vmem>>, vector<1x8x128xbf16>
    %52 = vector.shape_cast %51 : vector<1x8x128xbf16> to vector<8x128xbf16>
    %53 = vector.shape_cast %52 : vector<8x128xbf16> to vector<1x8x128xbf16>
    %54 = vector.broadcast %53 : vector<1x8x128xbf16> to vector<2x8x128xbf16>
    "tpu.trace_start"() <{level = 10 : i32, message = "bke,bne->bkn"}> : () -> ()
    %cst_35 = arith.constant dense<0.000000e+00> : vector<2x8x16xf32>
    %55 = tpu.matmul %54, %50, %cst_35 {dimension_numbers = #tpu.dot_dimension_numbers<[2], [2], [1], [1], [0, 0, 0, 1, 1, 1], [0], [0]>} : vector<2x8x128xbf16>, vector<2x16x128xbf16>, vector<2x8x16xf32> -> vector<2x8x16xf32>
    "tpu.trace_stop"() : () -> ()
    %cst_36 = arith.constant 0.0883883461 : f32
    %56 = vector.broadcast %cst_36 : f32 to vector<2x8x16xf32>
    %57 = arith.mulf %55, %56 : vector<2x8x16xf32>
    %cst_37 = arith.constant dense<0xFF800000> : vector<2x8xf32>
    %58 = vector.multi_reduction <maximumf>, %57, %cst_37 [2] : vector<2x8x16xf32> to vector<2x8xf32>
    %59 = vector.shape_cast %58 : vector<2x8xf32> to vector<2x8x1xf32>
    %60 = vector.broadcast %59 : vector<2x8x1xf32> to vector<2x8x16xf32>
    %61 = arith.subf %57, %60 : vector<2x8x16xf32>
    %62 = math.exp %61 : vector<2x8x16xf32>
    %cst_38 = arith.constant dense<0.000000e+00> : vector<2x8xf32>
    %63 = vector.multi_reduction <add>, %62, %cst_38 [2] : vector<2x8x16xf32> to vector<2x8xf32>
    %64 = vector.shape_cast %63 : vector<2x8xf32> to vector<2x8x1xf32>
    %65 = tpu.reciprocal %64 {approx = true} : vector<2x8x1xf32> -> vector<2x8x1xf32>
    %66 = vector.broadcast %65 : vector<2x8x1xf32> to vector<2x8x16xf32>
    %67 = arith.mulf %62, %66 : vector<2x8x16xf32>
    %68 = arith.truncf %67 : vector<2x8x16xf32> to vector<2x8x16xbf16>
    "tpu.trace_start"() <{level = 10 : i32, message = "bkn,bne->bke"}> : () -> ()
    %cst_39 = arith.constant dense<0.000000e+00> : vector<2x8x128xf32>
    %69 = tpu.matmul %68, %50, %cst_39 {dimension_numbers = #tpu.dot_dimension_numbers<[2], [1], [1], [2], [0, 0, 0, 1, 1, 2], [0], [0]>} : vector<2x8x16xbf16>, vector<2x16x128xbf16>, vector<2x8x128xf32> -> vector<2x8x128xf32>
    "tpu.trace_stop"() : () -> ()
    %70 = vector.shape_cast %69 : vector<2x8x128xf32> to vector<16x128xf32>
    %71 = arith.truncf %70 : vector<16x128xf32> to vector<16x128xbf16>
    %c1_40 = arith.constant 1 : index
    %c0_41 = arith.constant 0 : index
    %c0_42 = arith.constant 0 : index
    %72 = vector.load %arg10[%c1_40, %c0_41, %c0_42] : memref<2x128x128xbf16, #tpu.memory_space<vmem>>, vector<1x128x128xbf16>
    %73 = vector.shape_cast %72 : vector<1x128x128xbf16> to vector<128x128xbf16>
    %cst_43 = arith.constant dense<0.000000e+00> : vector<16x128xf32>
    %74 = tpu.matmul %71, %73, %cst_43 {dimension_numbers = #tpu.dot_dimension_numbers<[1], [0], [0], [1], [0, 0, 1, 1], [], []>} : vector<16x128xbf16>, vector<128x128xbf16>, vector<16x128xf32> -> vector<16x128xf32>
    %c1_44 = arith.constant 1 : index
    %c0_45 = arith.constant 0 : index
    %c0_46 = arith.constant 0 : index
    %75 = vector.load %arg11[%c1_44, %c0_45, %c0_46] : memref<2x1x128xf32, #tpu.memory_space<vmem>>, vector<1x1x128xf32>
    %76 = vector.shape_cast %75 : vector<1x1x128xf32> to vector<1x128xf32>
    %77 = vector.broadcast %76 : vector<1x128xf32> to vector<16x128xf32>
    %78 = arith.addf %74, %77 : vector<16x128xf32>
    %79 = vector.shape_cast %78 : vector<16x128xf32> to vector<2x8x128xf32>
    %80 = tpu.concatenate %39, %79 in 1 : vector<2x8x128xf32>, vector<2x8x128xf32> -> vector<2x16x128xf32>
    %c0_47 = arith.constant 0 : index
    %c0_48 = arith.constant 0 : index
    %c0_49 = arith.constant 0 : index
    %81 = vector.load %arg27[%c0_47, %c0_48, %c0_49] : memref<2x8x128xf32, #tpu.memory_space<vmem>>, vector<2x8x128xf32>
    tpu.vector_store %arg27[%c0_47, %c0_48, %c0_49], %79 {strides = array<i32>} : memref<2x8x128xf32, #tpu.memory_space<vmem>>, vector<2x8x128xf32>,
    %c0_50 = arith.constant 0 : index
    %c0_51 = arith.constant 0 : index
    %c0_52 = arith.constant 0 : index
    %82 = vector.load %arg3[%c0_50, %c0_51, %c0_52] : memref<2x16x16xbf16, #tpu.memory_space<vmem>>, vector<2x16x16xbf16>
    %83 = vector.shape_cast %82 : vector<2x16x16xbf16> to vector<32x16xbf16>
    %c0_53 = arith.constant 0 : index
    %c0_54 = arith.constant 0 : index
    %84 = vector.load %arg12[%c0_53, %c0_54] : memref<16x128xbf16, #tpu.memory_space<vmem>>, vector<16x128xbf16>
    %cst_55 = arith.constant dense<0.000000e+00> : vector<32x128xf32>
    %85 = tpu.matmul %83, %84, %cst_55 {dimension_numbers = #tpu.dot_dimension_numbers<[1], [0], [0], [1], [0, 0, 1, 1], [], []>} : vector<32x16xbf16>, vector<16x128xbf16>, vector<32x128xf32> -> vector<32x128xf32>
    %c0_56 = arith.constant 0 : index
    %c0_57 = arith.constant 0 : index
    %86 = vector.load %arg13[%c0_56, %c0_57] : memref<1x128xf32, #tpu.memory_space<vmem>>, vector<1x128xf32>
    %87 = vector.broadcast %86 : vector<1x128xf32> to vector<32x128xf32>
    %88 = arith.addf %85, %87 : vector<32x128xf32>
    %89 = vector.shape_cast %88 : vector<32x128xf32> to vector<2x16x128xf32>
    %c0_58 = arith.constant 0 : index
    %c0_59 = arith.constant 0 : index
    %c0_60 = arith.constant 0 : index
    %90 = vector.load %arg2[%c0_58, %c0_59, %c0_60] : memref<2x1x128xf32, #tpu.memory_space<vmem>>, vector<2x1x128xf32>
    %91 = vector.broadcast %90 : vector<2x1x128xf32> to vector<2x16x128xf32>
    %92 = arith.addf %89, %91 : vector<2x16x128xf32>
    %93 = vector.shape_cast %92 : vector<2x16x128xf32> to vector<32x128xf32>
    %94 = arith.truncf %93 : vector<32x128xf32> to vector<32x128xbf16>
    %c0_61 = arith.constant 0 : index
    %c0_62 = arith.constant 0 : index
    %95 = vector.load %arg14[%c0_61, %c0_62] : memref<128x128xbf16, #tpu.memory_space<vmem>>, vector<128x128xbf16>
    %cst_63 = arith.constant dense<0.000000e+00> : vector<32x128xf32>
    %96 = tpu.matmul %94, %95, %cst_63 {dimension_numbers = #tpu.dot_dimension_numbers<[1], [0], [0], [1], [0, 0, 1, 1], [], []>} : vector<32x128xbf16>, vector<128x128xbf16>, vector<32x128xf32> -> vector<32x128xf32>
    %c0_64 = arith.constant 0 : index
    %c0_65 = arith.constant 0 : index
    %97 = vector.load %arg15[%c0_64, %c0_65] : memref<1x128xf32, #tpu.memory_space<vmem>>, vector<1x128xf32>
    %98 = vector.broadcast %97 : vector<1x128xf32> to vector<32x128xf32>
    %99 = arith.addf %96, %98 : vector<32x128xf32>
    %100 = vector.shape_cast %80 : vector<2x16x128xf32> to vector<32x128xf32>
    %101 = arith.truncf %100 : vector<32x128xf32> to vector<32x128xbf16>
    %c0_66 = arith.constant 0 : index
    %c0_67 = arith.constant 0 : index
    %102 = vector.load %arg16[%c0_66, %c0_67] : memref<128x256xbf16, #tpu.memory_space<vmem>>, vector<128x256xbf16>
    %cst_68 = arith.constant dense<0.000000e+00> : vector<32x256xf32>
    %103 = tpu.matmul %101, %102, %cst_68 {dimension_numbers = #tpu.dot_dimension_numbers<[1], [0], [0], [1], [0, 0, 1, 1], [], []>} : vector<32x128xbf16>, vector<128x256xbf16>, vector<32x256xf32> -> vector<32x256xf32>
    %c0_69 = arith.constant 0 : index
    %c0_70 = arith.constant 0 : index
    %104 = vector.load %arg17[%c0_69, %c0_70] : memref<1x256xf32, #tpu.memory_space<vmem>>, vector<1x256xf32>
    %105 = vector.broadcast %104 : vector<1x256xf32> to vector<32x256xf32>
    %106 = arith.addf %103, %105 : vector<32x256xf32>
    %107 = vector.extract_strided_slice %106 {offsets = [0, 0], sizes = [32, 128], strides = [1, 1]} : vector<32x256xf32> to vector<32x128xf32>
    %108 = arith.truncf %107 : vector<32x128xf32> to vector<32x128xbf16>
    %109 = vector.shape_cast %108 : vector<32x128xbf16> to vector<2x16x128xbf16>
    %110 = vector.extract_strided_slice %106 {offsets = [0, 128], sizes = [32, 128], strides = [1, 1]} : vector<32x256xf32> to vector<32x128xf32>
    %111 = arith.truncf %110 : vector<32x128xf32> to vector<32x128xbf16>
    %112 = vector.shape_cast %111 : vector<32x128xbf16> to vector<2x16x128xbf16>
    %113 = arith.truncf %99 : vector<32x128xf32> to vector<32x128xbf16>
    %114 = vector.shape_cast %113 : vector<32x128xbf16> to vector<2x16x128xbf16>
    "tpu.trace_start"() <{level = 10 : i32, message = "bqd,bkd->bqk"}> : () -> ()
    %cst_71 = arith.constant dense<0.000000e+00> : vector<2x16x16xf32>
    %115 = tpu.matmul %114, %109, %cst_71 {dimension_numbers = #tpu.dot_dimension_numbers<[2], [2], [1], [1], [0, 0, 0, 1, 1, 1], [0], [0]>} : vector<2x16x128xbf16>, vector<2x16x128xbf16>, vector<2x16x16xf32> -> vector<2x16x16xf32>
    "tpu.trace_stop"() : () -> ()
    %cst_72 = arith.constant 0.0883883461 : f32
    %116 = vector.broadcast %cst_72 : f32 to vector<2x16x16xf32>
    %117 = arith.mulf %115, %116 : vector<2x16x16xf32>
    %118 = tpu.iota {dimensions = array<i32: 2>} : vector<2x16x16xi32>
    %c7_i32 = arith.constant 7 : i32
    %119 = vector.broadcast %c7_i32 : i32 to vector<2x16x16xi32>
    %120 = arith.andi %118, %119 : vector<2x16x16xi32>
    %c2_i32 = arith.constant 2 : i32
    %121 = arith.muli %arg0, %c2_i32 : i32
    %c0_i32 = arith.constant 0 : i32
    %122 = arith.addi %121, %c0_i32 : i32
    %123 = arith.index_cast %122 : i32 to index
    %124 = memref.load %arg1[%123] : memref<2xi32, #tpu.memory_space<smem>>
    %125 = vector.broadcast %124 : i32 to vector<1x16x16xi32>
    %c1_i32 = arith.constant 1 : i32
    %126 = arith.addi %121, %c1_i32 : i32
    %127 = arith.index_cast %126 : i32 to index
    %128 = memref.load %arg1[%127] : memref<2xi32, #tpu.memory_space<smem>>
    %129 = vector.broadcast %128 : i32 to vector<1x16x16xi32>
    %130 = tpu.concatenate %125, %129 in 0 : vector<1x16x16xi32>, vector<1x16x16xi32> -> vector<2x16x16xi32>
    %131 = arith.cmpi sle, %120, %130 : vector<2x16x16xi32>
    %cst_73 = arith.constant -1.000000e+30 : f32
    %132 = vector.broadcast %cst_73 : f32 to vector<2x16x16xf32>
    %133 = arith.select %131, %117, %132 : vector<2x16x16xi1>, vector<2x16x16xf32>
    %cst_74 = arith.constant dense<0xFF800000> : vector<2x16xf32>
    %134 = vector.multi_reduction <maximumf>, %133, %cst_74 [2] : vector<2x16x16xf32> to vector<2x16xf32>
    %135 = vector.shape_cast %134 : vector<2x16xf32> to vector<2x16x1xf32>
    %136 = vector.broadcast %135 : vector<2x16x1xf32> to vector<2x16x16xf32>
    %137 = arith.subf %133, %136 : vector<2x16x16xf32>
    %138 = math.exp %137 : vector<2x16x16xf32>
    %cst_75 = arith.constant dense<0.000000e+00> : vector<2x16xf32>
    %139 = vector.multi_reduction <add>, %138, %cst_75 [2] : vector<2x16x16xf32> to vector<2x16xf32>
    %140 = vector.shape_cast %139 : vector<2x16xf32> to vector<2x16x1xf32>
    %141 = tpu.reciprocal %140 {approx = true} : vector<2x16x1xf32> -> vector<2x16x1xf32>
    %142 = vector.broadcast %141 : vector<2x16x1xf32> to vector<2x16x16xf32>
    %143 = arith.mulf %138, %142 : vector<2x16x16xf32>
    %144 = arith.truncf %143 : vector<2x16x16xf32> to vector<2x16x16xbf16>
    "tpu.trace_start"() <{level = 10 : i32, message = "bqk,bkd->bqd"}> : () -> ()
    %cst_76 = arith.constant dense<0.000000e+00> : vector<2x16x128xf32>
    %145 = tpu.matmul %144, %112, %cst_76 {dimension_numbers = #tpu.dot_dimension_numbers<[2], [1], [1], [2], [0, 0, 0, 1, 1, 2], [0], [0]>} : vector<2x16x16xbf16>, vector<2x16x128xbf16>, vector<2x16x128xf32> -> vector<2x16x128xf32>
    "tpu.trace_stop"() : () -> ()
    %146 = vector.shape_cast %145 : vector<2x16x128xf32> to vector<32x128xf32>
    %147 = arith.truncf %146 : vector<32x128xf32> to vector<32x128xbf16>
    %c0_77 = arith.constant 0 : index
    %c0_78 = arith.constant 0 : index
    %148 = vector.load %arg18[%c0_77, %c0_78] : memref<128x128xbf16, #tpu.memory_space<vmem>>, vector<128x128xbf16>
    %cst_79 = arith.constant dense<0.000000e+00> : vector<32x128xf32>
    %149 = tpu.matmul %147, %148, %cst_79 {dimension_numbers = #tpu.dot_dimension_numbers<[1], [0], [0], [1], [0, 0, 1, 1], [], []>} : vector<32x128xbf16>, vector<128x128xbf16>, vector<32x128xf32> -> vector<32x128xf32>
    %c0_80 = arith.constant 0 : index
    %c0_81 = arith.constant 0 : index
    %150 = vector.load %arg19[%c0_80, %c0_81] : memref<1x128xf32, #tpu.memory_space<vmem>>, vector<1x128xf32>
    %151 = vector.broadcast %150 : vector<1x128xf32> to vector<32x128xf32>
    %152 = arith.addf %149, %151 : vector<32x128xf32>
    %153 = vector.shape_cast %152 : vector<32x128xf32> to vector<2x16x128xf32>
    %154 = arith.addf %92, %153 : vector<2x16x128xf32>
    %155 = vector.shape_cast %154 : vector<2x16x128xf32> to vector<32x128xf32>
    %156 = arith.truncf %155 : vector<32x128xf32> to vector<32x128xbf16>
    %c0_82 = arith.constant 0 : index
    %c0_83 = arith.constant 0 : index
    %157 = vector.load %arg20[%c0_82, %c0_83] : memref<128x512xbf16, #tpu.memory_space<vmem>>, vector<128x512xbf16>
    %cst_84 = arith.constant dense<0.000000e+00> : vector<32x512xf32>
    %158 = tpu.matmul %156, %157, %cst_84 {dimension_numbers = #tpu.dot_dimension_numbers<[1], [0], [0], [1], [0, 0, 1, 1], [], []>} : vector<32x128xbf16>, vector<128x512xbf16>, vector<32x512xf32> -> vector<32x512xf32>
    %c0_85 = arith.constant 0 : index
    %c0_86 = arith.constant 0 : index
    %159 = vector.load %arg21[%c0_85, %c0_86] : memref<1x512xf32, #tpu.memory_space<vmem>>, vector<1x512xf32>
    %160 = vector.broadcast %159 : vector<1x512xf32> to vector<32x512xf32>
    %161 = arith.addf %158, %160 : vector<32x512xf32>
    %162 = arith.mulf %161, %161 : vector<32x512xf32>
    %163 = arith.mulf %161, %162 : vector<32x512xf32>
    %cst_87 = arith.constant 4.471500e-02 : f32
    %164 = vector.broadcast %cst_87 : f32 to vector<32x512xf32>
    %165 = arith.mulf %164, %163 : vector<32x512xf32>
    %166 = arith.addf %161, %165 : vector<32x512xf32>
    %cst_88 = arith.constant 0.797884583 : f32
    %167 = vector.broadcast %cst_88 : f32 to vector<32x512xf32>
    %168 = arith.mulf %167, %166 : vector<32x512xf32>
    %169 = math.tanh %168 : vector<32x512xf32>
    %cst_89 = arith.constant 1.000000e+00 : f32
    %170 = vector.broadcast %cst_89 : f32 to vector<32x512xf32>
    %171 = arith.addf %170, %169 : vector<32x512xf32>
    %cst_90 = arith.constant 5.000000e-01 : f32
    %172 = vector.broadcast %cst_90 : f32 to vector<32x512xf32>
    %173 = arith.mulf %172, %171 : vector<32x512xf32>
    %174 = arith.mulf %161, %173 : vector<32x512xf32>
    %175 = arith.truncf %174 : vector<32x512xf32> to vector<32x512xbf16>
    %c0_91 = arith.constant 0 : index
    %c0_92 = arith.constant 0 : index
    %176 = vector.load %arg22[%c0_91, %c0_92] : memref<512x128xbf16, #tpu.memory_space<vmem>>, vector<512x128xbf16>
    %cst_93 = arith.constant dense<0.000000e+00> : vector<32x128xf32>
    %177 = tpu.matmul %175, %176, %cst_93 {dimension_numbers = #tpu.dot_dimension_numbers<[1], [0], [0], [1], [0, 0, 1, 1], [], []>} : vector<32x512xbf16>, vector<512x128xbf16>, vector<32x128xf32> -> vector<32x128xf32>
    %c0_94 = arith.constant 0 : index
    %c0_95 = arith.constant 0 : index
    %178 = vector.load %arg23[%c0_94, %c0_95] : memref<1x128xf32, #tpu.memory_space<vmem>>, vector<1x128xf32>
    %179 = vector.broadcast %178 : vector<1x128xf32> to vector<32x128xf32>
    %180 = arith.addf %177, %179 : vector<32x128xf32>
    %181 = vector.shape_cast %180 : vector<32x128xf32> to vector<2x16x128xf32>
    %182 = arith.addf %154, %181 : vector<2x16x128xf32>
    %183 = vector.shape_cast %182 : vector<2x16x128xf32> to vector<32x128xf32>
    %184 = arith.truncf %183 : vector<32x128xf32> to vector<32x128xbf16>
    %c0_96 = arith.constant 0 : index
    %c0_97 = arith.constant 0 : index
    %185 = vector.load %arg24[%c0_96, %c0_97] : memref<128x16xbf16, #tpu.memory_space<vmem>>, vector<128x16xbf16>
    %cst_98 = arith.constant dense<0.000000e+00> : vector<32x16xf32>
    %186 = tpu.matmul %184, %185, %cst_98 {dimension_numbers = #tpu.dot_dimension_numbers<[1], [0], [0], [1], [0, 0, 1, 1], [], []>} : vector<32x128xbf16>, vector<128x16xbf16>, vector<32x16xf32> -> vector<32x16xf32>
    %c0_99 = arith.constant 0 : index
    %c0_100 = arith.constant 0 : index
    %187 = vector.load %arg25[%c0_99, %c0_100] : memref<1x16xf32, #tpu.memory_space<vmem>>, vector<1x16xf32>
    %188 = vector.broadcast %187 : vector<1x16xf32> to vector<32x16xf32>
    %189 = arith.addf %186, %188 : vector<32x16xf32>
    %190 = vector.shape_cast %189 : vector<32x16xf32> to vector<2x16x16xf32>
    %c0_101 = arith.constant 0 : index
    %c0_102 = arith.constant 0 : index
    %c0_103 = arith.constant 0 : index
    %191 = vector.load %arg4[%c0_101, %c0_102, %c0_103] : memref<2x16x16xf32, #tpu.memory_space<vmem>>, vector<2x16x16xf32>
    %192 = arith.subf %190, %191 : vector<2x16x16xf32>
    %193 = arith.mulf %192, %192 : vector<2x16x16xf32>
    %cst_104 = arith.constant dense<0.000000e+00> : vector<2x16xf32>
    %194 = vector.multi_reduction <add>, %193, %cst_104 [2] : vector<2x16x16xf32> to vector<2x16xf32>
    %195 = vector.shape_cast %194 : vector<2x16xf32> to vector<2x16x1xf32>
    %cst_105 = arith.constant dense<0.000000e+00> : vector<2x1xf32>
    %196 = vector.multi_reduction <add>, %195, %cst_105 [1] : vector<2x16x1xf32> to vector<2x1xf32>
    %197 = vector.shape_cast %196 : vector<2x1xf32> to vector<2x1x1xf32>
    %198 = vector.shape_cast %197 : vector<2x1x1xf32> to vector<2x1x1xf32>
    %199 = vector.broadcast %198 : vector<2x1x1xf32> to vector<2x1x128xf32>
    %c0_106 = arith.constant 0 : index
    %c0_107 = arith.constant 0 : index
    %c0_108 = arith.constant 0 : index
    %200 = vector.load %arg26[%c0_106, %c0_107, %c0_108] : memref<2x1x128xf32, #tpu.memory_space<vmem>>, vector<2x1x128xf32>
    tpu.vector_store %arg26[%c0_106, %c0_107, %c0_108], %199 {strides = array<i32>} : memref<2x1x128xf32, #tpu.memory_space<vmem>>, vector<2x1x128xf32>,
    return
  }
  func.func @transform_0(%arg0: i32, %arg1: memref<2xi32, #tpu.memory_space<smem>>) -> (i32, i32, i32) {
    %c0_i32 = arith.constant 0 : i32
    %c0_i32_0 = arith.constant 0 : i32
    %c0_i32_1 = arith.constant 0 : i32
    return %arg0, %c0_i32, %c0_i32_0 : i32, i32, i32
  }
  func.func @transform_1(%arg0: i32, %arg1: memref<2xi32, #tpu.memory_space<smem>>) -> (i32, i32, i32) {
    %c0_i32 = arith.constant 0 : i32
    %c0_i32_0 = arith.constant 0 : i32
    %c0_i32_1 = arith.constant 0 : i32
    return %arg0, %c0_i32, %c0_i32_0 : i32, i32, i32
  }
  func.func @transform_2(%arg0: i32, %arg1: memref<2xi32, #tpu.memory_space<smem>>) -> (i32, i32, i32) {
    %c0_i32 = arith.constant 0 : i32
    %c0_i32_0 = arith.constant 0 : i32
    %c0_i32_1 = arith.constant 0 : i32
    return %arg0, %c0_i32, %c0_i32_0 : i32, i32, i32
  }
  func.func @transform_3(%arg0: i32, %arg1: memref<2xi32, #tpu.memory_space<smem>>) -> (i32, i32, i32) {
    %c0_i32 = arith.constant 0 : i32
    %c0_i32_0 = arith.constant 0 : i32
    %c0_i32_1 = arith.constant 0 : i32
    return %arg0, %c0_i32, %c0_i32_0 : i32, i32, i32
  }
  func.func @transform_4(%arg0: i32, %arg1: memref<2xi32, #tpu.memory_space<smem>>) -> (i32, i32, i32) {
    %c0_i32 = arith.constant 0 : i32
    %c0_i32_0 = arith.constant 0 : i32
    %c0_i32_1 = arith.constant 0 : i32
    return %arg0, %c0_i32, %c0_i32_0 : i32, i32, i32
  }
  func.func @transform_5(%arg0: i32, %arg1: memref<2xi32, #tpu.memory_space<smem>>) -> (i32, i32, i32) {
    %c0_i32 = arith.constant 0 : i32
    %c0_i32_0 = arith.constant 0 : i32
    %c0_i32_1 = arith.constant 0 : i32
    %c0_i32_2 = arith.constant 0 : i32
    return %c0_i32, %c0_i32_0, %c0_i32_1 : i32, i32, i32
  }
  func.func @transform_6(%arg0: i32, %arg1: memref<2xi32, #tpu.memory_space<smem>>) -> (i32, i32, i32) {
    %c0_i32 = arith.constant 0 : i32
    %c0_i32_0 = arith.constant 0 : i32
    %c0_i32_1 = arith.constant 0 : i32
    %c0_i32_2 = arith.constant 0 : i32
    return %c0_i32, %c0_i32_0, %c0_i32_1 : i32, i32, i32
  }
  func.func @transform_7(%arg0: i32, %arg1: memref<2xi32, #tpu.memory_space<smem>>) -> (i32, i32, i32) {
    %c0_i32 = arith.constant 0 : i32
    %c0_i32_0 = arith.constant 0 : i32
    %c0_i32_1 = arith.constant 0 : i32
    %c0_i32_2 = arith.constant 0 : i32
    return %c0_i32, %c0_i32_0, %c0_i32_1 : i32, i32, i32
  }
  func.func @transform_8(%arg0: i32, %arg1: memref<2xi32, #tpu.memory_space<smem>>) -> (i32, i32, i32) {
    %c0_i32 = arith.constant 0 : i32
    %c0_i32_0 = arith.constant 0 : i32
    %c0_i32_1 = arith.constant 0 : i32
    %c0_i32_2 = arith.constant 0 : i32
    return %c0_i32, %c0_i32_0, %c0_i32_1 : i32, i32, i32
  }
  func.func @transform_9(%arg0: i32, %arg1: memref<2xi32, #tpu.memory_space<smem>>) -> (i32, i32, i32) {
    %c0_i32 = arith.constant 0 : i32
    %c0_i32_0 = arith.constant 0 : i32
    %c0_i32_1 = arith.constant 0 : i32
    %c0_i32_2 = arith.constant 0 : i32
    return %c0_i32, %c0_i32_0, %c0_i32_1 : i32, i32, i32
  }
  func.func @transform_10(%arg0: i32, %arg1: memref<2xi32, #tpu.memory_space<smem>>) -> (i32, i32) {
    %c0_i32 = arith.constant 0 : i32
    %c0_i32_0 = arith.constant 0 : i32
    %c0_i32_1 = arith.constant 0 : i32
    return %c0_i32, %c0_i32_0 : i32, i32
  }
  func.func @transform_11(%arg0: i32, %arg1: memref<2xi32, #tpu.memory_space<smem>>) -> (i32, i32) {
    %c0_i32 = arith.constant 0 : i32
    %c0_i32_0 = arith.constant 0 : i32
    %c0_i32_1 = arith.constant 0 : i32
    return %c0_i32, %c0_i32_0 : i32, i32
  }
  func.func @transform_12(%arg0: i32, %arg1: memref<2xi32, #tpu.memory_space<smem>>) -> (i32, i32) {
    %c0_i32 = arith.constant 0 : i32
    %c0_i32_0 = arith.constant 0 : i32
    %c0_i32_1 = arith.constant 0 : i32
    return %c0_i32, %c0_i32_0 : i32, i32
  }
  func.func @transform_13(%arg0: i32, %arg1: memref<2xi32, #tpu.memory_space<smem>>) -> (i32, i32) {
    %c0_i32 = arith.constant 0 : i32
    %c0_i32_0 = arith.constant 0 : i32
    %c0_i32_1 = arith.constant 0 : i32
    return %c0_i32, %c0_i32_0 : i32, i32
  }
  func.func @transform_14(%arg0: i32, %arg1: memref<2xi32, #tpu.memory_space<smem>>) -> (i32, i32) {
    %c0_i32 = arith.constant 0 : i32
    %c0_i32_0 = arith.constant 0 : i32
    %c0_i32_1 = arith.constant 0 : i32
    return %c0_i32, %c0_i32_0 : i32, i32
  }
  func.func @transform_15(%arg0: i32, %arg1: memref<2xi32, #tpu.memory_space<smem>>) -> (i32, i32) {
    %c0_i32 = arith.constant 0 : i32
    %c0_i32_0 = arith.constant 0 : i32
    %c0_i32_1 = arith.constant 0 : i32
    return %c0_i32, %c0_i32_0 : i32, i32
  }
  func.func @transform_16(%arg0: i32, %arg1: memref<2xi32, #tpu.memory_space<smem>>) -> (i32, i32) {
    %c0_i32 = arith.constant 0 : i32
    %c0_i32_0 = arith.constant 0 : i32
    %c0_i32_1 = arith.constant 0 : i32
    return %c0_i32, %c0_i32_0 : i32, i32
  }
  func.func @transform_17(%arg0: i32, %arg1: memref<2xi32, #tpu.memory_space<smem>>) -> (i32, i32) {
    %c0_i32 = arith.constant 0 : i32
    %c0_i32_0 = arith.constant 0 : i32
    %c0_i32_1 = arith.constant 0 : i32
    return %c0_i32, %c0_i32_0 : i32, i32
  }
  func.func @transform_18(%arg0: i32, %arg1: memref<2xi32, #tpu.memory_space<smem>>) -> (i32, i32) {
    %c0_i32 = arith.constant 0 : i32
    %c0_i32_0 = arith.constant 0 : i32
    %c0_i32_1 = arith.constant 0 : i32
    return %c0_i32, %c0_i32_0 : i32, i32
  }
  func.func @transform_19(%arg0: i32, %arg1: memref<2xi32, #tpu.memory_space<smem>>) -> (i32, i32) {
    %c0_i32 = arith.constant 0 : i32
    %c0_i32_0 = arith.constant 0 : i32
    %c0_i32_1 = arith.constant 0 : i32
    return %c0_i32, %c0_i32_0 : i32, i32
  }
  func.func @transform_20(%arg0: i32, %arg1: memref<2xi32, #tpu.memory_space<smem>>) -> (i32, i32) {
    %c0_i32 = arith.constant 0 : i32
    %c0_i32_0 = arith.constant 0 : i32
    %c0_i32_1 = arith.constant 0 : i32
    return %c0_i32, %c0_i32_0 : i32, i32
  }
  func.func @transform_21(%arg0: i32, %arg1: memref<2xi32, #tpu.memory_space<smem>>) -> (i32, i32) {
    %c0_i32 = arith.constant 0 : i32
    %c0_i32_0 = arith.constant 0 : i32
    %c0_i32_1 = arith.constant 0 : i32
    return %c0_i32, %c0_i32_0 : i32, i32
  }
  func.func @transform_22(%arg0: i32, %arg1: memref<2xi32, #tpu.memory_space<smem>>) -> (i32, i32) {
    %c0_i32 = arith.constant 0 : i32
    %c0_i32_0 = arith.constant 0 : i32
    %c0_i32_1 = arith.constant 0 : i32
    return %c0_i32, %c0_i32_0 : i32, i32
  }
  func.func @transform_23(%arg0: i32, %arg1: memref<2xi32, #tpu.memory_space<smem>>) -> (i32, i32) {
    %c0_i32 = arith.constant 0 : i32
    %c0_i32_0 = arith.constant 0 : i32
    %c0_i32_1 = arith.constant 0 : i32
    return %c0_i32, %c0_i32_0 : i32, i32
  }
  func.func @transform_24(%arg0: i32, %arg1: memref<2xi32, #tpu.memory_space<smem>>) -> (i32, i32, i32) {
    %c0_i32 = arith.constant 0 : i32
    %c0_i32_0 = arith.constant 0 : i32
    %c0_i32_1 = arith.constant 0 : i32
    return %arg0, %c0_i32, %c0_i32_0 : i32, i32, i32
  }
  func.func @transform_25(%arg0: i32, %arg1: memref<2xi32, #tpu.memory_space<smem>>) -> (i32, i32, i32) {
    %c0_i32 = arith.constant 0 : i32
    %c0_i32_0 = arith.constant 0 : i32
    %c0_i32_1 = arith.constant 0 : i32
    return %arg0, %c0_i32, %c0_i32_0 : i32, i32, i32
  }
}

</mosaic_0001>

<llo_original>
// kernel: run.1
$region0: #{run.1}
  #allocation0 [shape = 'u32[]', space=smem, size = 0x4, offset = 0x4, fixed_abs, tag = 'smem constant byte address 0x4 - core index']
  #allocation1 [shape = 'u32[144,128]{1,0:T(1,128)}', space=vmem, size = 0x12000, scoped, tag = 'internal scratch']
  #allocation2 [shape = 's32[1]{0}', space=sflag, size = 0x4, scoped, tag = 'scoped memory for run.1']
  #allocation3 [shape = 'u8[512]{0}', space=smem, size = 0x200, scoped, tag = 'prefetched SMEM operand 0']
  %s0 = inlined_call_operand.vmem [shape: s32[2], index: 0, kind: input, shape index: {}]
  %s1 = inlined_call_operand.vmem [shape: f32[2,1,128], index: 1, kind: input, shape index: {}]
  %s2 = inlined_call_operand.vmem [shape: bf16[2,16,16], index: 2, kind: input, shape index: {}]
  %s3 = inlined_call_operand.vmem [shape: f32[2,16,16], index: 3, kind: input, shape index: {}]
  %s4 = inlined_call_operand.vmem [shape: bf16[2,64,4], index: 4, kind: input, shape index: {}]
  %s5 = inlined_call_operand.vmem [shape: bf16[2,16,4], index: 5, kind: input, shape index: {}]
  %s6 = inlined_call_operand.vmem [shape: bf16[2,4,128], index: 6, kind: input, shape index: {}]
  %s7 = inlined_call_operand.vmem [shape: f32[2,1,128], index: 7, kind: input, shape index: {}, may-alias: {7,10}]
  %s8 = inlined_call_operand.vmem [shape: bf16[2,8,128], index: 8, kind: input, shape index: {}]
  %s9 = inlined_call_operand.vmem [shape: bf16[2,128,128], index: 9, kind: input, shape index: {}]
  %s10 = inlined_call_operand.vmem [shape: f32[2,1,128], index: 10, kind: input, shape index: {}, may-alias: {7,10}]
  %s11 = inlined_call_operand.vmem [shape: bf16[16,128], index: 11, kind: input, shape index: {}]
  %s12 = inlined_call_operand.vmem [shape: f32[1,128], index: 12, kind: input, shape index: {}, may-alias: {12,14,18,22}]
  %s13 = inlined_call_operand.vmem [shape: bf16[128,128], index: 13, kind: input, shape index: {}]
  %s14 = inlined_call_operand.vmem [shape: f32[1,128], index: 14, kind: input, shape index: {}, may-alias: {12,14,18,22}]
  %s15 = inlined_call_operand.vmem [shape: bf16[128,256], index: 15, kind: input, shape index: {}]
  %s16 = inlined_call_operand.vmem [shape: f32[1,256], index: 16, kind: input, shape index: {}]
  %s17 = inlined_call_operand.vmem [shape: bf16[128,128], index: 17, kind: input, shape index: {}]
  %s18 = inlined_call_operand.vmem [shape: f32[1,128], index: 18, kind: input, shape index: {}, may-alias: {12,14,18,22}]
  %s19 = inlined_call_operand.vmem [shape: bf16[128,512], index: 19, kind: input, shape index: {}]
  %s20 = inlined_call_operand.vmem [shape: f32[1,512], index: 20, kind: input, shape index: {}]
  %s21 = inlined_call_operand.vmem [shape: bf16[512,128], index: 21, kind: input, shape index: {}]
  %s22 = inlined_call_operand.vmem [shape: f32[1,128], index: 22, kind: input, shape index: {}, may-alias: {12,14,18,22}]
  %s23 = inlined_call_operand.vmem [shape: bf16[128,16], index: 23, kind: input, shape index: {}]
  %s24 = inlined_call_operand.vmem [shape: f32[1,16], index: 24, kind: input, shape index: {}]
  %s25 = inlined_call_operand.vmem [shape: f32[2,1,128], index: 25, kind: output, shape index: {0}]
  %s26 = inlined_call_operand.vmem [shape: f32[2,8,128], index: 26, kind: output, shape index: {1}]
  %27 = xla_tuple %s25, %s26
  %s28 = sld [smem:[#allocation0]]
  $region114: #{run.1} parent=0
    _
  %s30 = ssub.s32 1, %s28
  %s31 = scalar_select 0, %s30, %s28
  %s32 = sshll.u32 %s0, 4
  %s33 = int_to_ptr.vmem [resolvable:$true] %s32
  %35 = dma.vmem_to_smem %s33, 16, [#allocation3], [#allocation2]
  %36 = dma.done [#allocation2], 16
  %37 = sfence
  // Predicated region
  $region2: #{run.1} parent=0 // pred_check
    _
  $region3: #{run.1} parent=0 // pred_check_branch
    %39 = sbr.rel (0) target = $region5
  $region4: #{run.1} parent=0 // pred_region
    _
  $region5: #{run.1} parent=0 // pred_fallthru
    _
  // Predicated region
  $region6: #{run.1} parent=0 // pred_check
    _
  $region7: #{run.1} parent=0 // pred_check_branch
    %41 = sbr.rel (0) target = $region9
  $region8: #{run.1} parent=0 // pred_region
    _
  $region9: #{run.1} parent=0 // pred_fallthru
    _
  // Predicated region
  $region10: #{run.1} parent=0 // pred_check
    _
  $region11: #{run.1} parent=0 // pred_check_branch
    %43 = sbr.rel (0) target = $region13
  $region12: #{run.1} parent=0 // pred_region
    _
  $region13: #{run.1} parent=0 // pred_fallthru
    _
  // Predicated region
  $region14: #{run.1} parent=0 // pred_check
    _
  $region15: #{run.1} parent=0 // pred_check_branch
    %45 = sbr.rel (0) target = $region17
  $region16: #{run.1} parent=0 // pred_region
    _
  $region17: #{run.1} parent=0 // pred_fallthru
    _
  // Predicated region
  $region18: #{run.1} parent=0 // pred_check
    _
  $region19: #{run.1} parent=0 // pred_check_branch
    %47 = sbr.rel (0) target = $region21
  $region20: #{run.1} parent=0 // pred_region
    _
  $region21: #{run.1} parent=0 // pred_fallthru
    _
  // Predicated region
  $region22: #{run.1} parent=0 // pred_check
    _
  $region23: #{run.1} parent=0 // pred_check_branch
    %49 = sbr.rel (0) target = $region25
  $region24: #{run.1} parent=0 // pred_region
    _
  $region25: #{run.1} parent=0 // pred_fallthru
    _
  // Predicated region
  $region26: #{run.1} parent=0 // pred_check
    _
  $region27: #{run.1} parent=0 // pred_check_branch
    %51 = sbr.rel (0) target = $region29
  $region28: #{run.1} parent=0 // pred_region
    _
  $region29: #{run.1} parent=0 // pred_fallthru
    _
  // Predicated region
  $region30: #{run.1} parent=0 // pred_check
    _
  $region31: #{run.1} parent=0 // pred_check_branch
    %53 = sbr.rel (0) target = $region33
  $region32: #{run.1} parent=0 // pred_region
    _
  $region33: #{run.1} parent=0 // pred_fallthru
    _
  // Predicated region
  $region34: #{run.1} parent=0 // pred_check
    _
  $region35: #{run.1} parent=0 // pred_check_branch
    %55 = sbr.rel (0) target = $region37
  $region36: #{run.1} parent=0 // pred_region
    _
  $region37: #{run.1} parent=0 // pred_fallthru
    _
  // Predicated region
  $region38: #{run.1} parent=0 // pred_check
    _
  $region39: #{run.1} parent=0 // pred_check_branch
    %57 = sbr.rel (0) target = $region41
  $region40: #{run.1} parent=0 // pred_region
    _
  $region41: #{run.1} parent=0 // pred_fallthru
    _
  // Predicated region
  $region42: #{run.1} parent=0 // pred_check
    _
  $region43: #{run.1} parent=0 // pred_check_branch
    %59 = sbr.rel (0) target = $region45
  $region44: #{run.1} parent=0 // pred_region
    _
  $region45: #{run.1} parent=0 // pred_fallthru
    _
  // Predicated region
  $region46: #{run.1} parent=0 // pred_check
    _
  $region47: #{run.1} parent=0 // pred_check_branch
    %61 = sbr.rel (0) target = $region49
  $region48: #{run.1} parent=0 // pred_region
    _
  $region49: #{run.1} parent=0 // pred_fallthru
    _
  // Predicated region
  $region50: #{run.1} parent=0 // pred_check
    _
  $region51: #{run.1} parent=0 // pred_check_branch
    %63 = sbr.rel (0) target = $region53
  $region52: #{run.1} parent=0 // pred_region
    _
  $region53: #{run.1} parent=0 // pred_fallthru
    _
  // Predicated region
  $region54: #{run.1} parent=0 // pred_check
    _
  $region55: #{run.1} parent=0 // pred_check_branch
    %65 = sbr.rel (0) target = $region57
  $region56: #{run.1} parent=0 // pred_region
    _
  $region57: #{run.1} parent=0 // pred_fallthru
    _
  // Predicated region
  $region58: #{run.1} parent=0 // pred_check
    _
  $region59: #{run.1} parent=0 // pred_check_branch
    %67 = sbr.rel (0) target = $region61
  $region60: #{run.1} parent=0 // pred_region
    _
  $region61: #{run.1} parent=0 // pred_fallthru
    _
  // Predicated region
  $region62: #{run.1} parent=0 // pred_check
    _
  $region63: #{run.1} parent=0 // pred_check_branch
    %69 = sbr.rel (0) target = $region65
  $region64: #{run.1} parent=0 // pred_region
    _
  $region65: #{run.1} parent=0 // pred_fallthru
    _
  // Predicated region
  $region66: #{run.1} parent=0 // pred_check
    _
  $region67: #{run.1} parent=0 // pred_check_branch
    %71 = sbr.rel (0) target = $region69
  $region68: #{run.1} parent=0 // pred_region
    _
  $region69: #{run.1} parent=0 // pred_fallthru
    _
  // Predicated region
  $region70: #{run.1} parent=0 // pred_check
    _
  $region71: #{run.1} parent=0 // pred_check_branch
    %73 = sbr.rel (0) target = $region73
  $region72: #{run.1} parent=0 // pred_region
    _
  $region73: #{run.1} parent=0 // pred_fallthru
    _
  // Predicated region
  $region74: #{run.1} parent=0 // pred_check
    _
  $region75: #{run.1} parent=0 // pred_check_branch
    %75 = sbr.rel (0) target = $region77
  $region76: #{run.1} parent=0 // pred_region
    _
  $region77: #{run.1} parent=0 // pred_fallthru
    _
  // Predicated region
  $region78: #{run.1} parent=0 // pred_check
    _
  $region79: #{run.1} parent=0 // pred_check_branch
    %77 = sbr.rel (0) target = $region81
  $region80: #{run.1} parent=0 // pred_region
    _
  $region81: #{run.1} parent=0 // pred_fallthru
    _
  // Predicated region
  $region82: #{run.1} parent=0 // pred_check
    _
  $region83: #{run.1} parent=0 // pred_check_branch
    %79 = sbr.rel (0) target = $region85
  $region84: #{run.1} parent=0 // pred_region
    _
  $region85: #{run.1} parent=0 // pred_fallthru
    _
  // Predicated region
  $region86: #{run.1} parent=0 // pred_check
    _
  $region87: #{run.1} parent=0 // pred_check_branch
    %81 = sbr.rel (0) target = $region89
  $region88: #{run.1} parent=0 // pred_region
    _
  $region89: #{run.1} parent=0 // pred_fallthru
    _
  // Predicated region
  $region90: #{run.1} parent=0 // pred_check
    _
  $region91: #{run.1} parent=0 // pred_check_branch
    %83 = sbr.rel (0) target = $region93
  $region92: #{run.1} parent=0 // pred_region
    _
  $region93: #{run.1} parent=0 // pred_fallthru
    _
  // Predicated region
  $region94: #{run.1} parent=0 // pred_check
    _
  $region95: #{run.1} parent=0 // pred_check_branch
    %85 = sbr.rel (0) target = $region97
  $region96: #{run.1} parent=0 // pred_region
    _
  $region97: #{run.1} parent=0 // pred_fallthru
    _
  %v87 = vld [vmem:[%s4] sm:$0xf]
  %v88 = vld [vmem:[%s4 + $0x4] sm:$0xf]
  %v89 = vld [vmem:[%s4 + $0x8] sm:$0xf]
  %v90 = vld [vmem:[%s4 + $0xc] sm:$0xf]
  %v91 = vld [vmem:[%s4 + $0x10] sm:$0xf]
  %v92 = vld [vmem:[%s4 + $0x14] sm:$0xf]
  %v93 = vld [vmem:[%s4 + $0x18] sm:$0xf]
  %v94 = vld [vmem:[%s4 + $0x1c] sm:$0xf]
  %v95 = vld [vmem:[%s4 + $0x20] sm:$0xf]
  %v96 = vld [vmem:[%s4 + $0x24] sm:$0xf]
  %v97 = vld [vmem:[%s4 + $0x28] sm:$0xf]
  %v98 = vld [vmem:[%s4 + $0x2c] sm:$0xf]
  %v99 = vld [vmem:[%s4 + $0x30] sm:$0xf]
  %v100 = vld [vmem:[%s4 + $0x34] sm:$0xf]
  %v101 = vld [vmem:[%s4 + $0x38] sm:$0xf]
  %v102 = vld [vmem:[%s4 + $0x3c] sm:$0xf]
  %v103 = vld [vmem:[%s6] sm:$0x3]
  %v104 = vld [vmem:[%s7] sm:$0x1]
  %v106 = vlaneseq
  %v107 = vshrl.u32 %v106, 7
  %v108 = vsub.s32 0, %v107
  %v109 = vrot.slane %v104, %v108
  %v127 = vunpack.c.l.b16 %v87
  %v128 = vunpack.c.l.b16 %v88
  %v129 = vunpack.c.l.b16 %v89
  %v130 = vunpack.c.l.b16 %v90
  %v131 = vunpack.c.l.b16 %v91
  %v132 = vunpack.c.l.b16 %v92
  %v133 = vunpack.c.l.b16 %v93
  %v134 = vunpack.c.l.b16 %v94
  %v135 = vunpack.c.l.b16 %v95
  %v136 = vunpack.c.l.b16 %v96
  %v137 = vunpack.c.l.b16 %v97
  %v138 = vunpack.c.l.b16 %v98
  %v139 = vunpack.c.l.b16 %v99
  %v140 = vunpack.c.l.b16 %v100
  %v141 = vunpack.c.l.b16 %v101
  %v142 = vunpack.c.l.b16 %v102
  %v143 = vpack.c.b16 %v128, %v127
  %v144 = vpack.c.b16 %v130, %v129
  %v145 = vpack.c.b16 %v132, %v131
  %v146 = vpack.c.b16 %v134, %v133
  %v147 = vpack.c.b16 %v136, %v135
  %v148 = vpack.c.b16 %v138, %v137
  %v149 = vpack.c.b16 %v140, %v139
  %v150 = vpack.c.b16 %v142, %v141
  %vm151 = vcmask 31744
  %v153 = vsel %vm151, %v143, 0
  %v156 = vsel %vm151, %v144, 0
  %v159 = vsel %vm151, %v145, 0
  %v162 = vsel %vm151, %v146, 0
  %v165 = vsel %vm151, %v147, 0
  %v168 = vsel %vm151, %v148, 0
  %v171 = vsel %vm151, %v149, 0
  %v174 = vsel %vm151, %v150, 0
  %vm176 = vcmask 1041408
  %v178 = vsel %vm176, %v103, 0
  %180 = vmatprep.subr.bf16.mxu0 0
  %181 = vmatpush1.bf16.msra.mxu0 0
  %182 = vmatprep.subr.bf16.mxu0 0
  %183 = vmatpush1.bf16.msra.mxu0 0
  %184 = vmatprep.subr.bf16.mxu0 0
  %185 = vmatpush1.bf16.msra.mxu0 0
  %186 = vmatprep.subr.bf16.mxu0 0
  %187 = vmatpush1.bf16.msra.mxu0 0
  %188 = vmatprep.subr.bf16.mxu0 0
  %189 = vmatpush1.bf16.msra.mxu0 0
  %190 = vmatprep.subr.bf16.mxu0 0
  %191 = vmatpush1.bf16.msra.mxu0 0
  %192 = vmatprep.subr.bf16.mxu0 0
  %193 = vmatpush1.bf16.msra.mxu0 0
  %194 = vmatprep.subr.bf16.mxu0 0
  %195 = vmatpush1.bf16.msra.mxu0 %v178
  %196 = vmatprep.subr.bf16.mxu0 0
  %197 = vmatpush2.bf16.msra.mxu0 0
  %198 = vmatprep.subr.bf16.mxu0 0
  %199 = vmatpush2.bf16.msra.mxu0 0
  %200 = vmatprep.subr.bf16.mxu0 0
  %201 = vmatpush2.bf16.msra.mxu0 0
  %202 = vmatprep.subr.bf16.mxu0 0
  %203 = vmatpush2.bf16.msra.mxu0 0
  %204 = vmatprep.subr.bf16.mxu0 0
  %205 = vmatpush2.bf16.msra.mxu0 0
  %206 = vmatprep.subr.bf16.mxu0 0
  %207 = vmatpush2.bf16.msra.mxu0 0
  %208 = vmatprep.subr.bf16.mxu0 0
  %209 = vmatpush2.bf16.msra.mxu0 0
  %210 = vmatprep.subr.bf16.mxu0 0
  %211 = vmatpush2.bf16.msra.mxu0 0
  %212 = vmatprep.mubr.bf16.mxu0 0
  %213 = vmatmul.mubr.bf16.gmra.mxu0 %v153
  %v214 = vpop.f32.mrf.mxu0
  %v215 = vadd.f32 %v109, %v214
  %v216 = vpop.f32.mrf.mxu0
  %v217 = vpop.f32.mrf.mxu0
  %v218 = vadd.f32 %v109, %v217
  %v219 = vpop.f32.mrf.mxu0
  %220 = vmatprep.mubr.bf16.mxu0 0
  %221 = vmatmul.mubr.bf16.gmra.mxu0 %v156
  %v222 = vpop.f32.mrf.mxu0
  %v223 = vadd.f32 %v109, %v222
  %v224 = vpop.f32.mrf.mxu0
  %v225 = vpop.f32.mrf.mxu0
  %v226 = vadd.f32 %v109, %v225
  %v227 = vpop.f32.mrf.mxu0
  %228 = vmatprep.mubr.bf16.mxu0 0
  %229 = vmatmul.mubr.bf16.gmra.mxu0 %v159
  %v230 = vpop.f32.mrf.mxu0
  %v231 = vadd.f32 %v109, %v230
  %v232 = vpop.f32.mrf.mxu0
  %v233 = vpop.f32.mrf.mxu0
  %v234 = vadd.f32 %v109, %v233
  %v235 = vpop.f32.mrf.mxu0
  %236 = vmatprep.mubr.bf16.mxu0 0
  %237 = vmatmul.mubr.bf16.gmra.mxu0 %v162
  %v238 = vpop.f32.mrf.mxu0
  %v239 = vadd.f32 %v109, %v238
  %v240 = vpop.f32.mrf.mxu0
  %v241 = vpop.f32.mrf.mxu0
  %v242 = vadd.f32 %v109, %v241
  %v243 = vpop.f32.mrf.mxu0
  %244 = vmatprep.mubr.bf16.mxu0 0
  %245 = vmatmul.mubr.bf16.gmra.mxu0 %v165
  %v246 = vpop.f32.mrf.mxu0
  %v247 = vadd.f32 %v109, %v246
  %v248 = vpop.f32.mrf.mxu0
  %v249 = vpop.f32.mrf.mxu0
  %v250 = vadd.f32 %v109, %v249
  %v251 = vpop.f32.mrf.mxu0
  %252 = vmatprep.mubr.bf16.mxu0 0
  %253 = vmatmul.mubr.bf16.gmra.mxu0 %v168
  %v254 = vpop.f32.mrf.mxu0
  %v255 = vadd.f32 %v109, %v254
  %v256 = vpop.f32.mrf.mxu0
  %v257 = vpop.f32.mrf.mxu0
  %v258 = vadd.f32 %v109, %v257
  %v259 = vpop.f32.mrf.mxu0
  %260 = vmatprep.mubr.bf16.mxu0 0
  %261 = vmatmul.mubr.bf16.gmra.mxu0 %v171
  %v262 = vpop.f32.mrf.mxu0
  %v263 = vadd.f32 %v109, %v262
  %v264 = vpop.f32.mrf.mxu0
  %v265 = vpop.f32.mrf.mxu0
  %v266 = vadd.f32 %v109, %v265
  %v267 = vpop.f32.mrf.mxu0
  %268 = vmatprep.mubr.bf16.mxu0 0
  %269 = vmatmul.mubr.bf16.gmra.mxu0 %v174
  %v270 = vpop.f32.mrf.mxu0
  %v271 = vadd.f32 %v109, %v270
  %v272 = vpop.f32.mrf.mxu0
  %v273 = vpop.f32.mrf.mxu0
  %v274 = vadd.f32 %v109, %v273
  %v275 = vpop.f32.mrf.mxu0
  %276 = vdwg.mxu0
  %v277 = vpack.c.bf16 %v218, %v215
  %v278 = vpack.c.bf16 %v226, %v223
  %v279 = vpack.c.bf16 %v234, %v231
  %v280 = vpack.c.bf16 %v242, %v239
  %v281 = vpack.c.bf16 %v250, %v247
  %v282 = vpack.c.bf16 %v258, %v255
  %v283 = vpack.c.bf16 %v266, %v263
  %v284 = vpack.c.bf16 %v274, %v271
  %v285 = vld [vmem:[%s8] sm:$0xf]
  %286 = vmatprep.subr.bf16.mxu0 0
  %287 = vmatpush1.bf16.xpose.msra.mxu0 0
  %288 = vmatprep.subr.bf16.mxu0 0
  %289 = vmatpush1.bf16.xpose.msra.mxu0 0
  %290 = vmatprep.subr.bf16.mxu0 0
  %291 = vmatpush1.bf16.xpose.msra.mxu0 0
  %292 = vmatprep.subr.bf16.mxu0 0
  %293 = vmatpush1.bf16.xpose.msra.mxu0 0
  %294 = vmatprep.subr.bf16.mxu0 0
  %295 = vmatpush1.bf16.xpose.msra.mxu0 %v280
  %296 = vmatprep.subr.bf16.mxu0 0
  %297 = vmatpush1.bf16.xpose.msra.mxu0 %v279
  %298 = vmatprep.subr.bf16.mxu0 0
  %299 = vmatpush1.bf16.xpose.msra.mxu0 %v278
  %300 = vmatprep.subr.bf16.mxu0 0
  %301 = vmatpush1.bf16.xpose.msra.mxu0 %v277
  %302 = vmatprep.subr.bf16.mxu0 0
  %303 = vmatpush2.bf16.xpose.msra.mxu0 0
  %304 = vmatprep.subr.bf16.mxu0 0
  %305 = vmatpush2.bf16.xpose.msra.mxu0 0
  %306 = vmatprep.subr.bf16.mxu0 0
  %307 = vmatpush2.bf16.xpose.msra.mxu0 0
  %308 = vmatprep.subr.bf16.mxu0 0
  %309 = vmatpush2.bf16.xpose.msra.mxu0 0
  %310 = vmatprep.subr.bf16.mxu0 0
  %311 = vmatpush2.bf16.xpose.msra.mxu0 0
  %312 = vmatprep.subr.bf16.mxu0 0
  %313 = vmatpush2.bf16.xpose.msra.mxu0 0
  %314 = vmatprep.subr.bf16.mxu0 0
  %315 = vmatpush2.bf16.xpose.msra.mxu0 0
  %316 = vmatprep.subr.bf16.mxu0 0
  %317 = vmatpush2.bf16.xpose.msra.mxu0 0
  %318 = vmatprep.mubr.bf16.mxu0 0
  %319 = vmatmul.mubr.bf16.gmra.mxu0 %v285
  %v320 = vpop.f32.mrf.mxu0
  %v321 = vadd.f32 0.0, %v320
  %v322 = vpop.f32.mrf.mxu0
  %v323 = vpop.f32.mrf.mxu0
  %v324 = vpop.f32.mrf.mxu0
  %325 = vdwg.mxu0
  %326 = vmatprep.subr.bf16.mxu0 0
  %327 = vmatpush1.bf16.xpose.msra.mxu0 0
  %328 = vmatprep.subr.bf16.mxu0 0
  %329 = vmatpush1.bf16.xpose.msra.mxu0 0
  %330 = vmatprep.subr.bf16.mxu0 0
  %331 = vmatpush1.bf16.xpose.msra.mxu0 0
  %332 = vmatprep.subr.bf16.mxu0 0
  %333 = vmatpush1.bf16.xpose.msra.mxu0 0
  %334 = vmatprep.subr.bf16.mxu0 0
  %335 = vmatpush1.bf16.xpose.msra.mxu0 %v284
  %336 = vmatprep.subr.bf16.mxu0 0
  %337 = vmatpush1.bf16.xpose.msra.mxu0 %v283
  %338 = vmatprep.subr.bf16.mxu0 0
  %339 = vmatpush1.bf16.xpose.msra.mxu0 %v282
  %340 = vmatprep.subr.bf16.mxu0 0
  %341 = vmatpush1.bf16.xpose.msra.mxu0 %v281
  %342 = vmatprep.subr.bf16.mxu0 0
  %343 = vmatpush2.bf16.xpose.msra.mxu0 0
  %344 = vmatprep.subr.bf16.mxu0 0
  %345 = vmatpush2.bf16.xpose.msra.mxu0 0
  %346 = vmatprep.subr.bf16.mxu0 0
  %347 = vmatpush2.bf16.xpose.msra.mxu0 0
  %348 = vmatprep.subr.bf16.mxu0 0
  %349 = vmatpush2.bf16.xpose.msra.mxu0 0
  %350 = vmatprep.subr.bf16.mxu0 0
  %351 = vmatpush2.bf16.xpose.msra.mxu0 0
  %352 = vmatprep.subr.bf16.mxu0 0
  %353 = vmatpush2.bf16.xpose.msra.mxu0 0
  %354 = vmatprep.subr.bf16.mxu0 0
  %355 = vmatpush2.bf16.xpose.msra.mxu0 0
  %356 = vmatprep.subr.bf16.mxu0 0
  %357 = vmatpush2.bf16.xpose.msra.mxu0 0
  %358 = vmatprep.mubr.bf16.mxu0 0
  %359 = vmatmul.mubr.bf16.gmra.mxu0 %v285
  %v360 = vpop.f32.mrf.mxu0
  %v361 = vadd.f32 0.0, %v360
  %v362 = vpop.f32.mrf.mxu0
  %v363 = vpop.f32.mrf.mxu0
  %v364 = vpop.f32.mrf.mxu0
  %365 = vdwg.mxu0
  %v366 = vmul.f32 %v321, 0.088388346
  %v367 = vmul.f32 %v361, 0.088388346
  %vm368 = vcmask 523264
  %v369 = vsel %vm368, %v366, -inf
  %370 = vmax.xlane.f32.xlu0 %v369
  %v371 = vpop.xlane.xlu0 %370
  %v372 = vsel %vm368, %v367, -inf
  %373 = vmax.xlane.f32.xlu0 %v372
  %v374 = vpop.xlane.xlu0 %373
  %v375 = vsub.f32 %v366, %v371
  %v376 = vsub.f32 %v367, %v374
  %v377 = vmul.f32 %v375, 1.442695
  %v378 = vpow.pop %v377
  %v379 = vmul.f32 %v376, 1.442695
  %v380 = vpow.pop %v379
  %v381 = vsel %vm368, %v378, 0.0
  %382 = vadd.xlane.f32.xlu0 %v381
  %v383 = vpop.xlane.xlu0 %382
  %v384 = vsel %vm368, %v380, 0.0
  %385 = vadd.xlane.f32.xlu0 %v384
  %v386 = vpop.xlane.xlu0 %385
  %v387 = vrcp.pop %v383
  %v388 = vrcp.pop %v386
  %v389 = vmul.f32 %v378, %v387
  %v390 = vmul.f32 %v380, %v388
  %v391 = vpack.c.bf16 %v389, %v389
  %v392 = vpack.c.bf16 %v390, %v390
  %v394 = vsel %vm368, %v391, 0
  %396 = vmatprep.subr.bf16.mxu0 0
  %397 = vmatpush1.bf16.msra.mxu0 0
  %398 = vmatprep.subr.bf16.mxu0 0
  %399 = vmatpush1.bf16.msra.mxu0 0
  %400 = vmatprep.subr.bf16.mxu0 0
  %401 = vmatpush1.bf16.msra.mxu0 0
  %402 = vmatprep.subr.bf16.mxu0 0
  %403 = vmatpush1.bf16.msra.mxu0 0
  %404 = vmatprep.subr.bf16.mxu0 0
  %405 = vmatpush1.bf16.msra.mxu0 %v280
  %406 = vmatprep.subr.bf16.mxu0 0
  %407 = vmatpush1.bf16.msra.mxu0 %v279
  %408 = vmatprep.subr.bf16.mxu0 0
  %409 = vmatpush1.bf16.msra.mxu0 %v278
  %410 = vmatprep.subr.bf16.mxu0 0
  %411 = vmatpush1.bf16.msra.mxu0 %v277
  %412 = vmatprep.subr.bf16.mxu0 0
  %413 = vmatpush2.bf16.msra.mxu0 0
  %414 = vmatprep.subr.bf16.mxu0 0
  %415 = vmatpush2.bf16.msra.mxu0 0
  %416 = vmatprep.subr.bf16.mxu0 0
  %417 = vmatpush2.bf16.msra.mxu0 0
  %418 = vmatprep.subr.bf16.mxu0 0
  %419 = vmatpush2.bf16.msra.mxu0 0
  %420 = vmatprep.subr.bf16.mxu0 0
  %421 = vmatpush2.bf16.msra.mxu0 0
  %422 = vmatprep.subr.bf16.mxu0 0
  %423 = vmatpush2.bf16.msra.mxu0 0
  %424 = vmatprep.subr.bf16.mxu0 0
  %425 = vmatpush2.bf16.msra.mxu0 0
  %426 = vmatprep.subr.bf16.mxu0 0
  %427 = vmatpush2.bf16.msra.mxu0 0
  %428 = vmatprep.mubr.bf16.mxu0 0
  %429 = vmatmul.mubr.bf16.gmra.mxu0 %v394
  %v430 = vpop.f32.mrf.mxu0
  %v431 = vadd.f32 0.0, %v430
  %v432 = vpop.f32.mrf.mxu0
  %v433 = vpop.f32.mrf.mxu0
  %v434 = vpop.f32.mrf.mxu0
  %435 = vdwg.mxu0
  %v437 = vsel %vm368, %v392, 0
  %439 = vmatprep.subr.bf16.mxu0 0
  %440 = vmatpush1.bf16.msra.mxu0 0
  %441 = vmatprep.subr.bf16.mxu0 0
  %442 = vmatpush1.bf16.msra.mxu0 0
  %443 = vmatprep.subr.bf16.mxu0 0
  %444 = vmatpush1.bf16.msra.mxu0 0
  %445 = vmatprep.subr.bf16.mxu0 0
  %446 = vmatpush1.bf16.msra.mxu0 0
  %447 = vmatprep.subr.bf16.mxu0 0
  %448 = vmatpush1.bf16.msra.mxu0 %v284
  %449 = vmatprep.subr.bf16.mxu0 0
  %450 = vmatpush1.bf16.msra.mxu0 %v283
  %451 = vmatprep.subr.bf16.mxu0 0
  %452 = vmatpush1.bf16.msra.mxu0 %v282
  %453 = vmatprep.subr.bf16.mxu0 0
  %454 = vmatpush1.bf16.msra.mxu0 %v281
  %455 = vmatprep.subr.bf16.mxu0 0
  %456 = vmatpush2.bf16.msra.mxu0 0
  %457 = vmatprep.subr.bf16.mxu0 0
  %458 = vmatpush2.bf16.msra.mxu0 0
  %459 = vmatprep.subr.bf16.mxu0 0
  %460 = vmatpush2.bf16.msra.mxu0 0
  %461 = vmatprep.subr.bf16.mxu0 0
  %462 = vmatpush2.bf16.msra.mxu0 0
  %463 = vmatprep.subr.bf16.mxu0 0
  %464 = vmatpush2.bf16.msra.mxu0 0
  %465 = vmatprep.subr.bf16.mxu0 0
  %466 = vmatpush2.bf16.msra.mxu0 0
  %467 = vmatprep.subr.bf16.mxu0 0
  %468 = vmatpush2.bf16.msra.mxu0 0
  %469 = vmatprep.subr.bf16.mxu0 0
  %470 = vmatpush2.bf16.msra.mxu0 0
  %471 = vmatprep.mubr.bf16.mxu0 0
  %472 = vmatmul.mubr.bf16.gmra.mxu0 %v437
  %v473 = vpop.f32.mrf.mxu0
  %v474 = vadd.f32 0.0, %v473
  %v475 = vpop.f32.mrf.mxu0
  %v476 = vpop.f32.mrf.mxu0
  %v477 = vpop.f32.mrf.mxu0
  %478 = vdwg.mxu0
  %v479 = vpack.c.bf16 %v474, %v431
  %v480 = vld [vmem:[%s9] sm:$0xf]
  %v481 = vld [vmem:[%s9 + $0x4] sm:$0xf]
  %v482 = vld [vmem:[%s9 + $0x8] sm:$0xf]
  %v483 = vld [vmem:[%s9 + $0xc] sm:$0xf]
  %v484 = vld [vmem:[%s9 + $0x10] sm:$0xf]
  %v485 = vld [vmem:[%s9 + $0x14] sm:$0xf]
  %v486 = vld [vmem:[%s9 + $0x18] sm:$0xf]
  %v487 = vld [vmem:[%s9 + $0x1c] sm:$0xf]
  %v488 = vld [vmem:[%s9 + $0x20] sm:$0xf]
  %v489 = vld [vmem:[%s9 + $0x24] sm:$0xf]
  %v490 = vld [vmem:[%s9 + $0x28] sm:$0xf]
  %v491 = vld [vmem:[%s9 + $0x2c] sm:$0xf]
  %v492 = vld [vmem:[%s9 + $0x30] sm:$0xf]
  %v493 = vld [vmem:[%s9 + $0x34] sm:$0xf]
  %v494 = vld [vmem:[%s9 + $0x38] sm:$0xf]
  %v495 = vld [vmem:[%s9 + $0x3c] sm:$0xf]
  %v496 = vld [vmem:[%s10] sm:$0x1]
  %v498 = vlaneseq
  %v499 = vshrl.u32 %v498, 7
  %v500 = vsub.s32 0, %v499
  %v501 = vrot.slane %v496, %v500
  %v519 = vunpack.c.l.b16 %v480
  %v520 = vunpack.c.l.b16 %v481
  %v521 = vunpack.c.l.b16 %v482
  %v522 = vunpack.c.l.b16 %v483
  %v523 = vunpack.c.l.b16 %v484
  %v524 = vunpack.c.l.b16 %v485
  %v525 = vunpack.c.l.b16 %v486
  %v526 = vunpack.c.l.b16 %v487
  %v527 = vunpack.c.l.b16 %v488
  %v528 = vunpack.c.l.b16 %v489
  %v529 = vunpack.c.l.b16 %v490
  %v530 = vunpack.c.l.b16 %v491
  %v531 = vunpack.c.l.b16 %v492
  %v532 = vunpack.c.l.b16 %v493
  %v533 = vunpack.c.l.b16 %v494
  %v534 = vunpack.c.l.b16 %v495
  %v535 = vpack.c.b16 %v520, %v519
  %v536 = vpack.c.b16 %v522, %v521
  %v537 = vpack.c.b16 %v524, %v523
  %v538 = vpack.c.b16 %v526, %v525
  %v539 = vpack.c.b16 %v528, %v527
  %v540 = vpack.c.b16 %v530, %v529
  %v541 = vpack.c.b16 %v532, %v531
  %v542 = vpack.c.b16 %v534, %v533
  %551 = vmatprep.subr.bf16.mxu0 0
  %552 = vmatpush1.bf16.msra.mxu0 %v542
  %553 = vmatprep.subr.bf16.mxu0 0
  %554 = vmatpush1.bf16.msra.mxu0 %v541
  %555 = vmatprep.subr.bf16.mxu0 0
  %556 = vmatpush1.bf16.msra.mxu0 %v540
  %557 = vmatprep.subr.bf16.mxu0 0
  %558 = vmatpush1.bf16.msra.mxu0 %v539
  %559 = vmatprep.subr.bf16.mxu0 0
  %560 = vmatpush1.bf16.msra.mxu0 %v538
  %561 = vmatprep.subr.bf16.mxu0 0
  %562 = vmatpush1.bf16.msra.mxu0 %v537
  %563 = vmatprep.subr.bf16.mxu0 0
  %564 = vmatpush1.bf16.msra.mxu0 %v536
  %565 = vmatprep.subr.bf16.mxu0 0
  %566 = vmatpush1.bf16.msra.mxu0 %v535
  %567 = vmatprep.subr.bf16.mxu0 0
  %568 = vmatpush2.bf16.msra.mxu0 0
  %569 = vmatprep.subr.bf16.mxu0 0
  %570 = vmatpush2.bf16.msra.mxu0 0
  %571 = vmatprep.subr.bf16.mxu0 0
  %572 = vmatpush2.bf16.msra.mxu0 0
  %573 = vmatprep.subr.bf16.mxu0 0
  %574 = vmatpush2.bf16.msra.mxu0 0
  %575 = vmatprep.subr.bf16.mxu0 0
  %576 = vmatpush2.bf16.msra.mxu0 0
  %577 = vmatprep.subr.bf16.mxu0 0
  %578 = vmatpush2.bf16.msra.mxu0 0
  %579 = vmatprep.subr.bf16.mxu0 0
  %580 = vmatpush2.bf16.msra.mxu0 0
  %581 = vmatprep.subr.bf16.mxu0 0
  %582 = vmatpush2.bf16.msra.mxu0 0
  %583 = vmatprep.mubr.bf16.mxu0 0
  %584 = vmatmul.mubr.bf16.gmra.mxu0 %v479
  %v585 = vpop.f32.mrf.mxu0
  %v586 = vadd.f32 %v501, %v585
  %v587 = vpop.f32.mrf.mxu0
  %v588 = vpop.f32.mrf.mxu0
  %v589 = vadd.f32 %v501, %v588
  %v590 = vpop.f32.mrf.mxu0
  %591 = vdwg.mxu0
  %v592 = vld [vmem:[%s5] sm:$0xf]
  %v593 = vld [vmem:[%s5 + $0x4] sm:$0xf]
  %v594 = vld [vmem:[%s5 + $0x8] sm:$0xf]
  %v595 = vld [vmem:[%s5 + $0xc] sm:$0xf]
  %s596 = scalar_lea.vmem %s6, 2
  %v597 = vld [vmem:[%s596] sm:$0x3]
  %s598 = scalar_lea.vmem %s7, 1
  %v599 = vld [vmem:[%s598] sm:$0x1]
  %v601 = vlaneseq
  %v602 = vshrl.u32 %v601, 7
  %v603 = vsub.s32 0, %v602
  %v604 = vrot.slane %v599, %v603
  %v610 = vunpack.c.l.b16 %v592
  %v611 = vunpack.c.l.b16 %v593
  %v612 = vunpack.c.l.b16 %v594
  %v613 = vunpack.c.l.b16 %v595
  %v614 = vpack.c.b16 %v611, %v610
  %v615 = vpack.c.b16 %v613, %v612
  %v617 = vsel %vm151, %v614, 0
  %v620 = vsel %vm151, %v615, 0
  %v623 = vsel %vm176, %v597, 0
  %625 = vmatprep.subr.bf16.mxu0 0
  %626 = vmatpush1.bf16.msra.mxu0 0
  %627 = vmatprep.subr.bf16.mxu0 0
  %628 = vmatpush1.bf16.msra.mxu0 0
  %629 = vmatprep.subr.bf16.mxu0 0
  %630 = vmatpush1.bf16.msra.mxu0 0
  %631 = vmatprep.subr.bf16.mxu0 0
  %632 = vmatpush1.bf16.msra.mxu0 0
  %633 = vmatprep.subr.bf16.mxu0 0
  %634 = vmatpush1.bf16.msra.mxu0 0
  %635 = vmatprep.subr.bf16.mxu0 0
  %636 = vmatpush1.bf16.msra.mxu0 0
  %637 = vmatprep.subr.bf16.mxu0 0
  %638 = vmatpush1.bf16.msra.mxu0 0
  %639 = vmatprep.subr.bf16.mxu0 0
  %640 = vmatpush1.bf16.msra.mxu0 %v623
  %641 = vmatprep.subr.bf16.mxu0 0
  %642 = vmatpush2.bf16.msra.mxu0 0
  %643 = vmatprep.subr.bf16.mxu0 0
  %644 = vmatpush2.bf16.msra.mxu0 0
  %645 = vmatprep.subr.bf16.mxu0 0
  %646 = vmatpush2.bf16.msra.mxu0 0
  %647 = vmatprep.subr.bf16.mxu0 0
  %648 = vmatpush2.bf16.msra.mxu0 0
  %649 = vmatprep.subr.bf16.mxu0 0
  %650 = vmatpush2.bf16.msra.mxu0 0
  %651 = vmatprep.subr.bf16.mxu0 0
  %652 = vmatpush2.bf16.msra.mxu0 0
  %653 = vmatprep.subr.bf16.mxu0 0
  %654 = vmatpush2.bf16.msra.mxu0 0
  %655 = vmatprep.subr.bf16.mxu0 0
  %656 = vmatpush2.bf16.msra.mxu0 0
  %657 = vmatprep.mubr.bf16.mxu0 0
  %658 = vmatmul.mubr.bf16.gmra.mxu0 %v617
  %v659 = vpop.f32.mrf.mxu0
  %v660 = vadd.f32 %v604, %v659
  %v661 = vpop.f32.mrf.mxu0
  %v662 = vpop.f32.mrf.mxu0
  %v663 = vadd.f32 %v604, %v662
  %v664 = vpop.f32.mrf.mxu0
  %665 = vmatprep.mubr.bf16.mxu0 0
  %666 = vmatmul.mubr.bf16.gmra.mxu0 %v620
  %v667 = vpop.f32.mrf.mxu0
  %v668 = vadd.f32 %v604, %v667
  %v669 = vpop.f32.mrf.mxu0
  %v670 = vpop.f32.mrf.mxu0
  %v671 = vadd.f32 %v604, %v670
  %v672 = vpop.f32.mrf.mxu0
  %673 = vdwg.mxu0
  %v674 = vpack.c.bf16 %v663, %v660
  %v675 = vpack.c.bf16 %v671, %v668
  %s676 = scalar_lea.vmem %s8, 4
  %v677 = vld [vmem:[%s676] sm:$0xf]
  %678 = vmatprep.subr.bf16.mxu0 0
  %679 = vmatpush1.bf16.xpose.msra.mxu0 0
  %680 = vmatprep.subr.bf16.mxu0 0
  %681 = vmatpush1.bf16.xpose.msra.mxu0 0
  %682 = vmatprep.subr.bf16.mxu0 0
  %683 = vmatpush1.bf16.xpose.msra.mxu0 0
  %684 = vmatprep.subr.bf16.mxu0 0
  %685 = vmatpush1.bf16.xpose.msra.mxu0 0
  %686 = vmatprep.subr.bf16.mxu0 0
  %687 = vmatpush1.bf16.xpose.msra.mxu0 0
  %688 = vmatprep.subr.bf16.mxu0 0
  %689 = vmatpush1.bf16.xpose.msra.mxu0 0
  %690 = vmatprep.subr.bf16.mxu0 0
  %691 = vmatpush1.bf16.xpose.msra.mxu0 0
  %692 = vmatprep.subr.bf16.mxu0 0
  %693 = vmatpush1.bf16.xpose.msra.mxu0 %v674
  %694 = vmatprep.subr.bf16.mxu0 0
  %695 = vmatpush2.bf16.xpose.msra.mxu0 0
  %696 = vmatprep.subr.bf16.mxu0 0
  %697 = vmatpush2.bf16.xpose.msra.mxu0 0
  %698 = vmatprep.subr.bf16.mxu0 0
  %699 = vmatpush2.bf16.xpose.msra.mxu0 0
  %700 = vmatprep.subr.bf16.mxu0 0
  %701 = vmatpush2.bf16.xpose.msra.mxu0 0
  %702 = vmatprep.subr.bf16.mxu0 0
  %703 = vmatpush2.bf16.xpose.msra.mxu0 0
  %704 = vmatprep.subr.bf16.mxu0 0
  %705 = vmatpush2.bf16.xpose.msra.mxu0 0
  %706 = vmatprep.subr.bf16.mxu0 0
  %707 = vmatpush2.bf16.xpose.msra.mxu0 0
  %708 = vmatprep.subr.bf16.mxu0 0
  %709 = vmatpush2.bf16.xpose.msra.mxu0 0
  %710 = vmatprep.mubr.bf16.mxu0 0
  %711 = vmatmul.mubr.bf16.gmra.mxu0 %v677
  %v712 = vpop.f32.mrf.mxu0
  %v713 = vadd.f32 0.0, %v712
  %v714 = vpop.f32.mrf.mxu0
  %v715 = vpop.f32.mrf.mxu0
  %v716 = vpop.f32.mrf.mxu0
  %717 = vdwg.mxu0
  %718 = vmatprep.subr.bf16.mxu0 0
  %719 = vmatpush1.bf16.xpose.msra.mxu0 0
  %720 = vmatprep.subr.bf16.mxu0 0
  %721 = vmatpush1.bf16.xpose.msra.mxu0 0
  %722 = vmatprep.subr.bf16.mxu0 0
  %723 = vmatpush1.bf16.xpose.msra.mxu0 0
  %724 = vmatprep.subr.bf16.mxu0 0
  %725 = vmatpush1.bf16.xpose.msra.mxu0 0
  %726 = vmatprep.subr.bf16.mxu0 0
  %727 = vmatpush1.bf16.xpose.msra.mxu0 0
  %728 = vmatprep.subr.bf16.mxu0 0
  %729 = vmatpush1.bf16.xpose.msra.mxu0 0
  %730 = vmatprep.subr.bf16.mxu0 0
  %731 = vmatpush1.bf16.xpose.msra.mxu0 0
  %732 = vmatprep.subr.bf16.mxu0 0
  %733 = vmatpush1.bf16.xpose.msra.mxu0 %v675
  %734 = vmatprep.subr.bf16.mxu0 0
  %735 = vmatpush2.bf16.xpose.msra.mxu0 0
  %736 = vmatprep.subr.bf16.mxu0 0
  %737 = vmatpush2.bf16.xpose.msra.mxu0 0
  %738 = vmatprep.subr.bf16.mxu0 0
  %739 = vmatpush2.bf16.xpose.msra.mxu0 0
  %740 = vmatprep.subr.bf16.mxu0 0
  %741 = vmatpush2.bf16.xpose.msra.mxu0 0
  %742 = vmatprep.subr.bf16.mxu0 0
  %743 = vmatpush2.bf16.xpose.msra.mxu0 0
  %744 = vmatprep.subr.bf16.mxu0 0
  %745 = vmatpush2.bf16.xpose.msra.mxu0 0
  %746 = vmatprep.subr.bf16.mxu0 0
  %747 = vmatpush2.bf16.xpose.msra.mxu0 0
  %748 = vmatprep.subr.bf16.mxu0 0
  %749 = vmatpush2.bf16.xpose.msra.mxu0 0
  %750 = vmatprep.mubr.bf16.mxu0 0
  %751 = vmatmul.mubr.bf16.gmra.mxu0 %v677
  %v752 = vpop.f32.mrf.mxu0
  %v753 = vadd.f32 0.0, %v752
  %v754 = vpop.f32.mrf.mxu0
  %v755 = vpop.f32.mrf.mxu0
  %v756 = vpop.f32.mrf.mxu0
  %757 = vdwg.mxu0
  %v758 = vmul.f32 %v713, 0.088388346
  %v759 = vmul.f32 %v753, 0.088388346
  %vm760 = vcmask 130048
  %v761 = vsel %vm760, %v758, -inf
  %762 = vmax.xlane.f32.xlu0 %v761
  %v763 = vpop.xlane.xlu0 %762
  %v764 = vsel %vm760, %v759, -inf
  %765 = vmax.xlane.f32.xlu0 %v764
  %v766 = vpop.xlane.xlu0 %765
  %v767 = vsub.f32 %v758, %v763
  %v768 = vsub.f32 %v759, %v766
  %v769 = vmul.f32 %v767, 1.442695
  %v770 = vpow.pop %v769
  %v771 = vmul.f32 %v768, 1.442695
  %v772 = vpow.pop %v771
  %v773 = vsel %vm760, %v770, 0.0
  %774 = vadd.xlane.f32.xlu0 %v773
  %v775 = vpop.xlane.xlu0 %774
  %v776 = vsel %vm760, %v772, 0.0
  %777 = vadd.xlane.f32.xlu0 %v776
  %v778 = vpop.xlane.xlu0 %777
  %v779 = vrcp.pop %v775
  %v780 = vrcp.pop %v778
  %v781 = vmul.f32 %v770, %v779
  %v782 = vmul.f32 %v772, %v780
  %v783 = vpack.c.bf16 %v781, %v781
  %v784 = vpack.c.bf16 %v782, %v782
  %v786 = vsel %vm760, %v783, 0
  %788 = vmatprep.subr.bf16.mxu0 0
  %789 = vmatpush1.bf16.msra.mxu0 0
  %790 = vmatprep.subr.bf16.mxu0 0
  %791 = vmatpush1.bf16.msra.mxu0 0
  %792 = vmatprep.subr.bf16.mxu0 0
  %793 = vmatpush1.bf16.msra.mxu0 0
  %794 = vmatprep.subr.bf16.mxu0 0
  %795 = vmatpush1.bf16.msra.mxu0 0
  %796 = vmatprep.subr.bf16.mxu0 0
  %797 = vmatpush1.bf16.msra.mxu0 0
  %798 = vmatprep.subr.bf16.mxu0 0
  %799 = vmatpush1.bf16.msra.mxu0 0
  %800 = vmatprep.subr.bf16.mxu0 0
  %801 = vmatpush1.bf16.msra.mxu0 0
  %802 = vmatprep.subr.bf16.mxu0 0
  %803 = vmatpush1.bf16.msra.mxu0 %v674
  %804 = vmatprep.subr.bf16.mxu0 0
  %805 = vmatpush2.bf16.msra.mxu0 0
  %806 = vmatprep.subr.bf16.mxu0 0
  %807 = vmatpush2.bf16.msra.mxu0 0
  %808 = vmatprep.subr.bf16.mxu0 0
  %809 = vmatpush2.bf16.msra.mxu0 0
  %810 = vmatprep.subr.bf16.mxu0 0
  %811 = vmatpush2.bf16.msra.mxu0 0
  %812 = vmatprep.subr.bf16.mxu0 0
  %813 = vmatpush2.bf16.msra.mxu0 0
  %814 = vmatprep.subr.bf16.mxu0 0
  %815 = vmatpush2.bf16.msra.mxu0 0
  %816 = vmatprep.subr.bf16.mxu0 0
  %817 = vmatpush2.bf16.msra.mxu0 0
  %818 = vmatprep.subr.bf16.mxu0 0
  %819 = vmatpush2.bf16.msra.mxu0 0
  %820 = vmatprep.mubr.bf16.mxu0 0
  %821 = vmatmul.mubr.bf16.gmra.mxu0 %v786
  %v822 = vpop.f32.mrf.mxu0
  %v823 = vadd.f32 0.0, %v822
  %v824 = vpop.f32.mrf.mxu0
  %v825 = vpop.f32.mrf.mxu0
  %v826 = vpop.f32.mrf.mxu0
  %827 = vdwg.mxu0
  %v829 = vsel %vm760, %v784, 0
  %831 = vmatprep.subr.bf16.mxu0 0
  %832 = vmatpush1.bf16.msra.mxu0 0
  %833 = vmatprep.subr.bf16.mxu0 0
  %834 = vmatpush1.bf16.msra.mxu0 0
  %835 = vmatprep.subr.bf16.mxu0 0
  %836 = vmatpush1.bf16.msra.mxu0 0
  %837 = vmatprep.subr.bf16.mxu0 0
  %838 = vmatpush1.bf16.msra.mxu0 0
  %839 = vmatprep.subr.bf16.mxu0 0
  %840 = vmatpush1.bf16.msra.mxu0 0
  %841 = vmatprep.subr.bf16.mxu0 0
  %842 = vmatpush1.bf16.msra.mxu0 0
  %843 = vmatprep.subr.bf16.mxu0 0
  %844 = vmatpush1.bf16.msra.mxu0 0
  %845 = vmatprep.subr.bf16.mxu0 0
  %846 = vmatpush1.bf16.msra.mxu0 %v675
  %847 = vmatprep.subr.bf16.mxu0 0
  %848 = vmatpush2.bf16.msra.mxu0 0
  %849 = vmatprep.subr.bf16.mxu0 0
  %850 = vmatpush2.bf16.msra.mxu0 0
  %851 = vmatprep.subr.bf16.mxu0 0
  %852 = vmatpush2.bf16.msra.mxu0 0
  %853 = vmatprep.subr.bf16.mxu0 0
  %854 = vmatpush2.bf16.msra.mxu0 0
  %855 = vmatprep.subr.bf16.mxu0 0
  %856 = vmatpush2.bf16.msra.mxu0 0
  %857 = vmatprep.subr.bf16.mxu0 0
  %858 = vmatpush2.bf16.msra.mxu0 0
  %859 = vmatprep.subr.bf16.mxu0 0
  %860 = vmatpush2.bf16.msra.mxu0 0
  %861 = vmatprep.subr.bf16.mxu0 0
  %862 = vmatpush2.bf16.msra.mxu0 0
  %863 = vmatprep.mubr.bf16.mxu0 0
  %864 = vmatmul.mubr.bf16.gmra.mxu0 %v829
  %v865 = vpop.f32.mrf.mxu0
  %v866 = vadd.f32 0.0, %v865
  %v867 = vpop.f32.mrf.mxu0
  %v868 = vpop.f32.mrf.mxu0
  %v869 = vpop.f32.mrf.mxu0
  %870 = vdwg.mxu0
  %v871 = vpack.c.bf16 %v866, %v823
  %s872 = scalar_lea.vmem %s9, 64
  %v873 = vld [vmem:[%s872] sm:$0xf]
  %v874 = vld [vmem:[%s872 + $0x4] sm:$0xf]
  %v875 = vld [vmem:[%s872 + $0x8] sm:$0xf]
  %v876 = vld [vmem:[%s872 + $0xc] sm:$0xf]
  %v877 = vld [vmem:[%s872 + $0x10] sm:$0xf]
  %v878 = vld [vmem:[%s872 + $0x14] sm:$0xf]
  %v879 = vld [vmem:[%s872 + $0x18] sm:$0xf]
  %v880 = vld [vmem:[%s872 + $0x1c] sm:$0xf]
  %v881 = vld [vmem:[%s872 + $0x20] sm:$0xf]
  %v882 = vld [vmem:[%s872 + $0x24] sm:$0xf]
  %v883 = vld [vmem:[%s872 + $0x28] sm:$0xf]
  %v884 = vld [vmem:[%s872 + $0x2c] sm:$0xf]
  %v885 = vld [vmem:[%s872 + $0x30] sm:$0xf]
  %v886 = vld [vmem:[%s872 + $0x34] sm:$0xf]
  %v887 = vld [vmem:[%s872 + $0x38] sm:$0xf]
  %v888 = vld [vmem:[%s872 + $0x3c] sm:$0xf]
  %s889 = scalar_lea.vmem %s10, 1
  %v890 = vld [vmem:[%s889] sm:$0x1]
  %v892 = vlaneseq
  %v893 = vshrl.u32 %v892, 7
  %v894 = vsub.s32 0, %v893
  %v895 = vrot.slane %v890, %v894
  %v913 = vunpack.c.l.b16 %v873
  %v914 = vunpack.c.l.b16 %v874
  %v915 = vunpack.c.l.b16 %v875
  %v916 = vunpack.c.l.b16 %v876
  %v917 = vunpack.c.l.b16 %v877
  %v918 = vunpack.c.l.b16 %v878
  %v919 = vunpack.c.l.b16 %v879
  %v920 = vunpack.c.l.b16 %v880
  %v921 = vunpack.c.l.b16 %v881
  %v922 = vunpack.c.l.b16 %v882
  %v923 = vunpack.c.l.b16 %v883
  %v924 = vunpack.c.l.b16 %v884
  %v925 = vunpack.c.l.b16 %v885
  %v926 = vunpack.c.l.b16 %v886
  %v927 = vunpack.c.l.b16 %v887
  %v928 = vunpack.c.l.b16 %v888
  %v929 = vpack.c.b16 %v914, %v913
  %v930 = vpack.c.b16 %v916, %v915
  %v931 = vpack.c.b16 %v918, %v917
  %v932 = vpack.c.b16 %v920, %v919
  %v933 = vpack.c.b16 %v922, %v921
  %v934 = vpack.c.b16 %v924, %v923
  %v935 = vpack.c.b16 %v926, %v925
  %v936 = vpack.c.b16 %v928, %v927
  %945 = vmatprep.subr.bf16.mxu0 0
  %946 = vmatpush1.bf16.msra.mxu0 %v936
  %947 = vmatprep.subr.bf16.mxu0 0
  %948 = vmatpush1.bf16.msra.mxu0 %v935
  %949 = vmatprep.subr.bf16.mxu0 0
  %950 = vmatpush1.bf16.msra.mxu0 %v934
  %951 = vmatprep.subr.bf16.mxu0 0
  %952 = vmatpush1.bf16.msra.mxu0 %v933
  %953 = vmatprep.subr.bf16.mxu0 0
  %954 = vmatpush1.bf16.msra.mxu0 %v932
  %955 = vmatprep.subr.bf16.mxu0 0
  %956 = vmatpush1.bf16.msra.mxu0 %v931
  %957 = vmatprep.subr.bf16.mxu0 0
  %958 = vmatpush1.bf16.msra.mxu0 %v930
  %959 = vmatprep.subr.bf16.mxu0 0
  %960 = vmatpush1.bf16.msra.mxu0 %v929
  %961 = vmatprep.subr.bf16.mxu0 0
  %962 = vmatpush2.bf16.msra.mxu0 0
  %963 = vmatprep.subr.bf16.mxu0 0
  %964 = vmatpush2.bf16.msra.mxu0 0
  %965 = vmatprep.subr.bf16.mxu0 0
  %966 = vmatpush2.bf16.msra.mxu0 0
  %967 = vmatprep.subr.bf16.mxu0 0
  %968 = vmatpush2.bf16.msra.mxu0 0
  %969 = vmatprep.subr.bf16.mxu0 0
  %970 = vmatpush2.bf16.msra.mxu0 0
  %971 = vmatprep.subr.bf16.mxu0 0
  %972 = vmatpush2.bf16.msra.mxu0 0
  %973 = vmatprep.subr.bf16.mxu0 0
  %974 = vmatpush2.bf16.msra.mxu0 0
  %975 = vmatprep.subr.bf16.mxu0 0
  %976 = vmatpush2.bf16.msra.mxu0 0
  %977 = vmatprep.mubr.bf16.mxu0 0
  %978 = vmatmul.mubr.bf16.gmra.mxu0 %v871
  %v979 = vpop.f32.mrf.mxu0
  %v980 = vadd.f32 %v895, %v979
  %v981 = vpop.f32.mrf.mxu0
  %v982 = vpop.f32.mrf.mxu0
  %v983 = vadd.f32 %v895, %v982
  %v984 = vpop.f32.mrf.mxu0
  %985 = vdwg.mxu0
  %986 = vst [vmem:[%s26] sm:$0xff] %v980
  %987 = vst [vmem:[%s26 + $0x8] sm:$0xff] %v983
  %v988 = vld [vmem:[%s2] sm:$0xf]
  %v989 = vld [vmem:[%s2 + $0x4] sm:$0xf]
  %v990 = vld [vmem:[%s2 + $0x8] sm:$0xf]
  %v991 = vld [vmem:[%s2 + $0xc] sm:$0xf]
  %v992 = vld [vmem:[%s11] sm:$0xf]
  %v993 = vld [vmem:[%s11 + $0x4] sm:$0xf]
  %v994 = vld [vmem:[%s12] sm:$0x1]
  %v996 = vlaneseq
  %v997 = vshrl.u32 %v996, 7
  %v998 = vsub.s32 0, %v997
  %v999 = vrot.slane %v994, %v998
  %v1005 = vunpack.c.l.b16 %v988
  %v1006 = vunpack.c.l.b16 %v989
  %v1007 = vunpack.c.l.b16 %v990
  %v1008 = vunpack.c.l.b16 %v991
  %v1009 = vpack.c.b16 %v1006, %v1005
  %v1010 = vpack.c.b16 %v1008, %v1007
  %v1013 = vunpack.c.l.b16 %v992
  %v1014 = vunpack.c.l.b16 %v993
  %v1015 = vpack.c.b16 %v1014, %v1013
  %v1018 = vsel %vm760, %v1009, 0
  %v1021 = vsel %vm760, %v1010, 0
  %1023 = vmatprep.subr.bf16.mxu0 0
  %1024 = vmatpush1.bf16.msra.mxu0 0
  %1025 = vmatprep.subr.bf16.mxu0 0
  %1026 = vmatpush1.bf16.msra.mxu0 0
  %1027 = vmatprep.subr.bf16.mxu0 0
  %1028 = vmatpush1.bf16.msra.mxu0 0
  %1029 = vmatprep.subr.bf16.mxu0 0
  %1030 = vmatpush1.bf16.msra.mxu0 0
  %1031 = vmatprep.subr.bf16.mxu0 0
  %1032 = vmatpush1.bf16.msra.mxu0 0
  %1033 = vmatprep.subr.bf16.mxu0 0
  %1034 = vmatpush1.bf16.msra.mxu0 0
  %1035 = vmatprep.subr.bf16.mxu0 0
  %1036 = vmatpush1.bf16.msra.mxu0 0
  %1037 = vmatprep.subr.bf16.mxu0 0
  %1038 = vmatpush1.bf16.msra.mxu0 %v1015
  %1039 = vmatprep.subr.bf16.mxu0 0
  %1040 = vmatpush2.bf16.msra.mxu0 0
  %1041 = vmatprep.subr.bf16.mxu0 0
  %1042 = vmatpush2.bf16.msra.mxu0 0
  %1043 = vmatprep.subr.bf16.mxu0 0
  %1044 = vmatpush2.bf16.msra.mxu0 0
  %1045 = vmatprep.subr.bf16.mxu0 0
  %1046 = vmatpush2.bf16.msra.mxu0 0
  %1047 = vmatprep.subr.bf16.mxu0 0
  %1048 = vmatpush2.bf16.msra.mxu0 0
  %1049 = vmatprep.subr.bf16.mxu0 0
  %1050 = vmatpush2.bf16.msra.mxu0 0
  %1051 = vmatprep.subr.bf16.mxu0 0
  %1052 = vmatpush2.bf16.msra.mxu0 0
  %1053 = vmatprep.subr.bf16.mxu0 0
  %1054 = vmatpush2.bf16.msra.mxu0 0
  %1055 = vmatprep.mubr.bf16.mxu0 0
  %1056 = vmatmul.mubr.bf16.gmra.mxu0 %v1018
  %v1057 = vpop.f32.mrf.mxu0
  %v1058 = vadd.f32 %v999, %v1057
  %v1059 = vpop.f32.mrf.mxu0
  %v1060 = vpop.f32.mrf.mxu0
  %v1061 = vadd.f32 %v999, %v1060
  %v1062 = vpop.f32.mrf.mxu0
  %1063 = vmatprep.mubr.bf16.mxu0 0
  %1064 = vmatmul.mubr.bf16.gmra.mxu0 %v1021
  %v1065 = vpop.f32.mrf.mxu0
  %v1066 = vadd.f32 %v999, %v1065
  %v1067 = vpop.f32.mrf.mxu0
  %v1068 = vpop.f32.mrf.mxu0
  %v1069 = vadd.f32 %v999, %v1068
  %v1070 = vpop.f32.mrf.mxu0
  %1071 = vdwg.mxu0
  %v1072 = vld [vmem:[%s1] sm:$0x1]
  %v1073 = vld [vmem:[%s1 + $0x1] sm:$0x1]
  %v1076 = vlaneseq
  %v1077 = vshrl.u32 %v1076, 7
  %v1078 = vsub.s32 0, %v1077
  %v1079 = vrot.slane %v1072, %v1078
  %v1080 = vlaneseq
  %v1081 = vshrl.u32 %v1080, 7
  %v1082 = vsub.s32 0, %v1081
  %v1083 = vrot.slane %v1073, %v1082
  %v1086 = vadd.f32 %v1058, %v1079
  %v1087 = vadd.f32 %v1061, %v1079
  %v1088 = vadd.f32 %v1066, %v1083
  %v1089 = vadd.f32 %v1069, %v1083
  %v1090 = vpack.c.bf16 %v1087, %v1086
  %v1091 = vpack.c.bf16 %v1089, %v1088
  %v1092 = vld [vmem:[%s13] sm:$0xf]
  %v1093 = vld [vmem:[%s13 + $0x4] sm:$0xf]
  %v1094 = vld [vmem:[%s13 + $0x8] sm:$0xf]
  %v1095 = vld [vmem:[%s13 + $0xc] sm:$0xf]
  %v1096 = vld [vmem:[%s13 + $0x10] sm:$0xf]
  %v1097 = vld [vmem:[%s13 + $0x14] sm:$0xf]
  %v1098 = vld [vmem:[%s13 + $0x18] sm:$0xf]
  %v1099 = vld [vmem:[%s13 + $0x1c] sm:$0xf]
  %v1100 = vld [vmem:[%s13 + $0x20] sm:$0xf]
  %v1101 = vld [vmem:[%s13 + $0x24] sm:$0xf]
  %v1102 = vld [vmem:[%s13 + $0x28] sm:$0xf]
  %v1103 = vld [vmem:[%s13 + $0x2c] sm:$0xf]
  %v1104 = vld [vmem:[%s13 + $0x30] sm:$0xf]
  %v1105 = vld [vmem:[%s13 + $0x34] sm:$0xf]
  %v1106 = vld [vmem:[%s13 + $0x38] sm:$0xf]
  %v1107 = vld [vmem:[%s13 + $0x3c] sm:$0xf]
  %v1108 = vld [vmem:[%s14] sm:$0x1]
  %v1110 = vlaneseq
  %v1111 = vshrl.u32 %v1110, 7
  %v1112 = vsub.s32 0, %v1111
  %v1113 = vrot.slane %v1108, %v1112
  %v1131 = vunpack.c.l.b16 %v1092
  %v1132 = vunpack.c.l.b16 %v1093
  %v1133 = vunpack.c.l.b16 %v1094
  %v1134 = vunpack.c.l.b16 %v1095
  %v1135 = vunpack.c.l.b16 %v1096
  %v1136 = vunpack.c.l.b16 %v1097
  %v1137 = vunpack.c.l.b16 %v1098
  %v1138 = vunpack.c.l.b16 %v1099
  %v1139 = vunpack.c.l.b16 %v1100
  %v1140 = vunpack.c.l.b16 %v1101
  %v1141 = vunpack.c.l.b16 %v1102
  %v1142 = vunpack.c.l.b16 %v1103
  %v1143 = vunpack.c.l.b16 %v1104
  %v1144 = vunpack.c.l.b16 %v1105
  %v1145 = vunpack.c.l.b16 %v1106
  %v1146 = vunpack.c.l.b16 %v1107
  %v1147 = vpack.c.b16 %v1132, %v1131
  %v1148 = vpack.c.b16 %v1134, %v1133
  %v1149 = vpack.c.b16 %v1136, %v1135
  %v1150 = vpack.c.b16 %v1138, %v1137
  %v1151 = vpack.c.b16 %v1140, %v1139
  %v1152 = vpack.c.b16 %v1142, %v1141
  %v1153 = vpack.c.b16 %v1144, %v1143
  %v1154 = vpack.c.b16 %v1146, %v1145
  %1163 = vmatprep.subr.bf16.mxu0 0
  %1164 = vmatpush1.bf16.msra.mxu0 %v1154
  %1165 = vmatprep.subr.bf16.mxu0 0
  %1166 = vmatpush1.bf16.msra.mxu0 %v1153
  %1167 = vmatprep.subr.bf16.mxu0 0
  %1168 = vmatpush1.bf16.msra.mxu0 %v1152
  %1169 = vmatprep.subr.bf16.mxu0 0
  %1170 = vmatpush1.bf16.msra.mxu0 %v1151
  %1171 = vmatprep.subr.bf16.mxu0 0
  %1172 = vmatpush1.bf16.msra.mxu0 %v1150
  %1173 = vmatprep.subr.bf16.mxu0 0
  %1174 = vmatpush1.bf16.msra.mxu0 %v1149
  %1175 = vmatprep.subr.bf16.mxu0 0
  %1176 = vmatpush1.bf16.msra.mxu0 %v1148
  %1177 = vmatprep.subr.bf16.mxu0 0
  %1178 = vmatpush1.bf16.msra.mxu0 %v1147
  %1179 = vmatprep.subr.bf16.mxu0 0
  %1180 = vmatpush2.bf16.msra.mxu0 0
  %1181 = vmatprep.subr.bf16.mxu0 0
  %1182 = vmatpush2.bf16.msra.mxu0 0
  %1183 = vmatprep.subr.bf16.mxu0 0
  %1184 = vmatpush2.bf16.msra.mxu0 0
  %1185 = vmatprep.subr.bf16.mxu0 0
  %1186 = vmatpush2.bf16.msra.mxu0 0
  %1187 = vmatprep.subr.bf16.mxu0 0
  %1188 = vmatpush2.bf16.msra.mxu0 0
  %1189 = vmatprep.subr.bf16.mxu0 0
  %1190 = vmatpush2.bf16.msra.mxu0 0
  %1191 = vmatprep.subr.bf16.mxu0 0
  %1192 = vmatpush2.bf16.msra.mxu0 0
  %1193 = vmatprep.subr.bf16.mxu0 0
  %1194 = vmatpush2.bf16.msra.mxu0 0
  %1195 = vmatprep.mubr.bf16.mxu0 0
  %1196 = vmatmul.mubr.bf16.gmra.mxu0 %v1090
  %v1197 = vpop.f32.mrf.mxu0
  %v1198 = vadd.f32 %v1113, %v1197
  %v1199 = vpop.f32.mrf.mxu0
  %v1200 = vpop.f32.mrf.mxu0
  %v1201 = vadd.f32 %v1113, %v1200
  %v1202 = vpop.f32.mrf.mxu0
  %1203 = vmatprep.mubr.bf16.mxu0 0
  %1204 = vmatmul.mubr.bf16.gmra.mxu0 %v1091
  %v1205 = vpop.f32.mrf.mxu0
  %v1206 = vadd.f32 %v1113, %v1205
  %v1207 = vpop.f32.mrf.mxu0
  %v1208 = vpop.f32.mrf.mxu0
  %v1209 = vadd.f32 %v1113, %v1208
  %v1210 = vpop.f32.mrf.mxu0
  %1211 = vdwg.mxu0
  %v1212 = vpack.c.bf16 %v980, %v586
  %v1213 = vpack.c.bf16 %v983, %v589
  %v1214 = vld [vmem:[%s15] sm:$0xff]
  %v1215 = vld [vmem:[%s15 + $0x8] sm:$0xff]
  %v1216 = vld [vmem:[%s15 + $0x10] sm:$0xff]
  %v1217 = vld [vmem:[%s15 + $0x18] sm:$0xff]
  %v1218 = vld [vmem:[%s15 + $0x20] sm:$0xff]
  %v1219 = vld [vmem:[%s15 + $0x28] sm:$0xff]
  %v1220 = vld [vmem:[%s15 + $0x30] sm:$0xff]
  %v1221 = vld [vmem:[%s15 + $0x38] sm:$0xff]
  %v1222 = vld [vmem:[%s15 + $0x40] sm:$0xff]
  %v1223 = vld [vmem:[%s15 + $0x48] sm:$0xff]
  %v1224 = vld [vmem:[%s15 + $0x50] sm:$0xff]
  %v1225 = vld [vmem:[%s15 + $0x58] sm:$0xff]
  %v1226 = vld [vmem:[%s15 + $0x60] sm:$0xff]
  %v1227 = vld [vmem:[%s15 + $0x68] sm:$0xff]
  %v1228 = vld [vmem:[%s15 + $0x70] sm:$0xff]
  %v1229 = vld [vmem:[%s15 + $0x78] sm:$0xff]
  %v1230 = vld [vmem:[%s16] sm:$0x3]
  %v1232 = vlaneseq
  %v1233 = vshrl.u32 %v1232, 7
  %v1234 = vsub.s32 0, %v1233
  %v1235 = vrot.slane %v1230, %v1234
  %v1236 = vlaneseq
  %v1237 = vshrl.u32 %v1236, 7
  %v1238 = vsub.s32 1, %v1237
  %v1239 = vrot.slane %v1230, %v1238
  %v1258 = vunpack.c.l.b16 %v1214
  %v1259 = vunpack.c.h.b16 %v1214
  %v1260 = vunpack.c.l.b16 %v1215
  %v1261 = vunpack.c.h.b16 %v1215
  %v1262 = vunpack.c.l.b16 %v1216
  %v1263 = vunpack.c.h.b16 %v1216
  %v1264 = vunpack.c.l.b16 %v1217
  %v1265 = vunpack.c.h.b16 %v1217
  %v1266 = vunpack.c.l.b16 %v1218
  %v1267 = vunpack.c.h.b16 %v1218
  %v1268 = vunpack.c.l.b16 %v1219
  %v1269 = vunpack.c.h.b16 %v1219
  %v1270 = vunpack.c.l.b16 %v1220
  %v1271 = vunpack.c.h.b16 %v1220
  %v1272 = vunpack.c.l.b16 %v1221
  %v1273 = vunpack.c.h.b16 %v1221
  %v1274 = vunpack.c.l.b16 %v1222
  %v1275 = vunpack.c.h.b16 %v1222
  %v1276 = vunpack.c.l.b16 %v1223
  %v1277 = vunpack.c.h.b16 %v1223
  %v1278 = vunpack.c.l.b16 %v1224
  %v1279 = vunpack.c.h.b16 %v1224
  %v1280 = vunpack.c.l.b16 %v1225
  %v1281 = vunpack.c.h.b16 %v1225
  %v1282 = vunpack.c.l.b16 %v1226
  %v1283 = vunpack.c.h.b16 %v1226
  %v1284 = vunpack.c.l.b16 %v1227
  %v1285 = vunpack.c.h.b16 %v1227
  %v1286 = vunpack.c.l.b16 %v1228
  %v1287 = vunpack.c.h.b16 %v1228
  %v1288 = vunpack.c.l.b16 %v1229
  %v1289 = vunpack.c.h.b16 %v1229
  %v1290 = vpack.c.b16 %v1260, %v1258
  %v1291 = vpack.c.b16 %v1261, %v1259
  %v1292 = vpack.c.b16 %v1264, %v1262
  %v1293 = vpack.c.b16 %v1265, %v1263
  %v1294 = vpack.c.b16 %v1268, %v1266
  %v1295 = vpack.c.b16 %v1269, %v1267
  %v1296 = vpack.c.b16 %v1272, %v1270
  %v1297 = vpack.c.b16 %v1273, %v1271
  %v1298 = vpack.c.b16 %v1276, %v1274
  %v1299 = vpack.c.b16 %v1277, %v1275
  %v1300 = vpack.c.b16 %v1280, %v1278
  %v1301 = vpack.c.b16 %v1281, %v1279
  %v1302 = vpack.c.b16 %v1284, %v1282
  %v1303 = vpack.c.b16 %v1285, %v1283
  %v1304 = vpack.c.b16 %v1288, %v1286
  %v1305 = vpack.c.b16 %v1289, %v1287
  %1322 = vmatprep.subr.bf16.mxu0 %v1305
  %1323 = vmatpush1.bf16.msra.mxu0 %v1304
  %1324 = vmatprep.subr.bf16.mxu0 %v1303
  %1325 = vmatpush1.bf16.msra.mxu0 %v1302
  %1326 = vmatprep.subr.bf16.mxu0 %v1301
  %1327 = vmatpush1.bf16.msra.mxu0 %v1300
  %1328 = vmatprep.subr.bf16.mxu0 %v1299
  %1329 = vmatpush1.bf16.msra.mxu0 %v1298
  %1330 = vmatprep.subr.bf16.mxu0 %v1297
  %1331 = vmatpush1.bf16.msra.mxu0 %v1296
  %1332 = vmatprep.subr.bf16.mxu0 %v1295
  %1333 = vmatpush1.bf16.msra.mxu0 %v1294
  %1334 = vmatprep.subr.bf16.mxu0 %v1293
  %1335 = vmatpush1.bf16.msra.mxu0 %v1292
  %1336 = vmatprep.subr.bf16.mxu0 %v1291
  %1337 = vmatpush1.bf16.msra.mxu0 %v1290
  %1338 = vmatprep.subr.bf16.mxu0 0
  %1339 = vmatpush2.bf16.msra.mxu0 0
  %1340 = vmatprep.subr.bf16.mxu0 0
  %1341 = vmatpush2.bf16.msra.mxu0 0
  %1342 = vmatprep.subr.bf16.mxu0 0
  %1343 = vmatpush2.bf16.msra.mxu0 0
  %1344 = vmatprep.subr.bf16.mxu0 0
  %1345 = vmatpush2.bf16.msra.mxu0 0
  %1346 = vmatprep.subr.bf16.mxu0 0
  %1347 = vmatpush2.bf16.msra.mxu0 0
  %1348 = vmatprep.subr.bf16.mxu0 0
  %1349 = vmatpush2.bf16.msra.mxu0 0
  %1350 = vmatprep.subr.bf16.mxu0 0
  %1351 = vmatpush2.bf16.msra.mxu0 0
  %1352 = vmatprep.subr.bf16.mxu0 0
  %1353 = vmatpush2.bf16.msra.mxu0 0
  %1354 = vmatprep.mubr.bf16.mxu0 0
  %1355 = vmatmul.mubr.bf16.gmra.mxu0 %v1212
  %v1356 = vpop.f32.mrf.mxu0
  %v1357 = vadd.f32 %v1235, %v1356
  %v1358 = vpop.f32.mrf.mxu0
  %v1359 = vadd.f32 %v1239, %v1358
  %v1360 = vpop.f32.mrf.mxu0
  %v1361 = vadd.f32 %v1235, %v1360
  %v1362 = vpop.f32.mrf.mxu0
  %v1363 = vadd.f32 %v1239, %v1362
  %1364 = vmatprep.mubr.bf16.mxu0 0
  %1365 = vmatmul.mubr.bf16.gmra.mxu0 %v1213
  %v1366 = vpop.f32.mrf.mxu0
  %v1367 = vadd.f32 %v1235, %v1366
  %v1368 = vpop.f32.mrf.mxu0
  %v1369 = vadd.f32 %v1239, %v1368
  %v1370 = vpop.f32.mrf.mxu0
  %v1371 = vadd.f32 %v1235, %v1370
  %v1372 = vpop.f32.mrf.mxu0
  %v1373 = vadd.f32 %v1239, %v1372
  %1374 = vdwg.mxu0
  %v1375 = vpack.c.bf16 %v1361, %v1357
  %v1376 = vpack.c.bf16 %v1371, %v1367
  %v1377 = vpack.c.bf16 %v1363, %v1359
  %v1378 = vpack.c.bf16 %v1373, %v1369
  %v1379 = vpack.c.bf16 %v1201, %v1198
  %v1380 = vpack.c.bf16 %v1209, %v1206
  %1381 = vmatprep.subr.bf16.mxu0 0
  %1382 = vmatpush1.bf16.xpose.msra.mxu0 0
  %1383 = vmatprep.subr.bf16.mxu0 0
  %1384 = vmatpush1.bf16.xpose.msra.mxu0 0
  %1385 = vmatprep.subr.bf16.mxu0 0
  %1386 = vmatpush1.bf16.xpose.msra.mxu0 0
  %1387 = vmatprep.subr.bf16.mxu0 0
  %1388 = vmatpush1.bf16.xpose.msra.mxu0 0
  %1389 = vmatprep.subr.bf16.mxu0 0
  %1390 = vmatpush1.bf16.xpose.msra.mxu0 0
  %1391 = vmatprep.subr.bf16.mxu0 0
  %1392 = vmatpush1.bf16.xpose.msra.mxu0 0
  %1393 = vmatprep.subr.bf16.mxu0 0
  %1394 = vmatpush1.bf16.xpose.msra.mxu0 0
  %1395 = vmatprep.subr.bf16.mxu0 0
  %1396 = vmatpush1.bf16.xpose.msra.mxu0 %v1375
  %1397 = vmatprep.subr.bf16.mxu0 0
  %1398 = vmatpush2.bf16.xpose.msra.mxu0 0
  %1399 = vmatprep.subr.bf16.mxu0 0
  %1400 = vmatpush2.bf16.xpose.msra.mxu0 0
  %1401 = vmatprep.subr.bf16.mxu0 0
  %1402 = vmatpush2.bf16.xpose.msra.mxu0 0
  %1403 = vmatprep.subr.bf16.mxu0 0
  %1404 = vmatpush2.bf16.xpose.msra.mxu0 0
  %1405 = vmatprep.subr.bf16.mxu0 0
  %1406 = vmatpush2.bf16.xpose.msra.mxu0 0
  %1407 = vmatprep.subr.bf16.mxu0 0
  %1408 = vmatpush2.bf16.xpose.msra.mxu0 0
  %1409 = vmatprep.subr.bf16.mxu0 0
  %1410 = vmatpush2.bf16.xpose.msra.mxu0 0
  %1411 = vmatprep.subr.bf16.mxu0 0
  %1412 = vmatpush2.bf16.xpose.msra.mxu0 0
  %1413 = vmatprep.mubr.bf16.mxu0 0
  %1414 = vmatmul.mubr.bf16.gmra.mxu0 %v1379
  %v1415 = vpop.f32.mrf.mxu0
  %v1416 = vadd.f32 0.0, %v1415
  %v1417 = vpop.f32.mrf.mxu0
  %v1418 = vpop.f32.mrf.mxu0
  %v1419 = vadd.f32 0.0, %v1418
  %v1420 = vpop.f32.mrf.mxu0
  %1421 = vdwg.mxu0
  %1422 = vmatprep.subr.bf16.mxu0 0
  %1423 = vmatpush1.bf16.xpose.msra.mxu0 0
  %1424 = vmatprep.subr.bf16.mxu0 0
  %1425 = vmatpush1.bf16.xpose.msra.mxu0 0
  %1426 = vmatprep.subr.bf16.mxu0 0
  %1427 = vmatpush1.bf16.xpose.msra.mxu0 0
  %1428 = vmatprep.subr.bf16.mxu0 0
  %1429 = vmatpush1.bf16.xpose.msra.mxu0 0
  %1430 = vmatprep.subr.bf16.mxu0 0
  %1431 = vmatpush1.bf16.xpose.msra.mxu0 0
  %1432 = vmatprep.subr.bf16.mxu0 0
  %1433 = vmatpush1.bf16.xpose.msra.mxu0 0
  %1434 = vmatprep.subr.bf16.mxu0 0
  %1435 = vmatpush1.bf16.xpose.msra.mxu0 0
  %1436 = vmatprep.subr.bf16.mxu0 0
  %1437 = vmatpush1.bf16.xpose.msra.mxu0 %v1376
  %1438 = vmatprep.subr.bf16.mxu0 0
  %1439 = vmatpush2.bf16.xpose.msra.mxu0 0
  %1440 = vmatprep.subr.bf16.mxu0 0
  %1441 = vmatpush2.bf16.xpose.msra.mxu0 0
  %1442 = vmatprep.subr.bf16.mxu0 0
  %1443 = vmatpush2.bf16.xpose.msra.mxu0 0
  %1444 = vmatprep.subr.bf16.mxu0 0
  %1445 = vmatpush2.bf16.xpose.msra.mxu0 0
  %1446 = vmatprep.subr.bf16.mxu0 0
  %1447 = vmatpush2.bf16.xpose.msra.mxu0 0
  %1448 = vmatprep.subr.bf16.mxu0 0
  %1449 = vmatpush2.bf16.xpose.msra.mxu0 0
  %1450 = vmatprep.subr.bf16.mxu0 0
  %1451 = vmatpush2.bf16.xpose.msra.mxu0 0
  %1452 = vmatprep.subr.bf16.mxu0 0
  %1453 = vmatpush2.bf16.xpose.msra.mxu0 0
  %1454 = vmatprep.mubr.bf16.mxu0 0
  %1455 = vmatmul.mubr.bf16.gmra.mxu0 %v1380
  %v1456 = vpop.f32.mrf.mxu0
  %v1457 = vadd.f32 0.0, %v1456
  %v1458 = vpop.f32.mrf.mxu0
  %v1459 = vpop.f32.mrf.mxu0
  %v1460 = vadd.f32 0.0, %v1459
  %v1461 = vpop.f32.mrf.mxu0
  %1462 = vdwg.mxu0
  %v1463 = vmul.f32 %v1416, 0.088388346
  %v1464 = vmul.f32 %v1419, 0.088388346
  %v1465 = vmul.f32 %v1457, 0.088388346
  %v1466 = vmul.f32 %v1460, 0.088388346
  %v1467 = vlaneseq
  %v1468 = vand.u32 %v1467, 127
  %v1469 = vand.u32 %v1468, 7
  %s1470 = smul.u32 0, 2
  %s1471 = sld [smem:[#allocation3 + %s1470]]
  %v1472 = vstv %s1471
  %s1473 = sadd.s32 %s1470, 1
  %s1474 = sld [smem:[#allocation3 + %s1473]]
  %v1475 = vstv %s1474
  %vm1476 = vcmp.le.s32.totalorder %v1469, %v1472
  %vm1477 = vcmp.le.s32.totalorder %v1469, %v1475
  %v1478 = vsel %vm1476, %v1463, -1e+30
  %v1479 = vsel %vm1476, %v1464, -1e+30
  %v1480 = vsel %vm1477, %v1465, -1e+30
  %v1481 = vsel %vm1477, %v1466, -1e+30
  %v1482 = vsel %vm760, %v1478, -inf
  %1483 = vmax.xlane.f32.xlu0 %v1482
  %v1484 = vpop.xlane.xlu0 %1483
  %v1485 = vsel %vm760, %v1479, -inf
  %1486 = vmax.xlane.f32.xlu0 %v1485
  %v1487 = vpop.xlane.xlu0 %1486
  %v1488 = vsel %vm760, %v1480, -inf
  %1489 = vmax.xlane.f32.xlu0 %v1488
  %v1490 = vpop.xlane.xlu0 %1489
  %v1491 = vsel %vm760, %v1481, -inf
  %1492 = vmax.xlane.f32.xlu0 %v1491
  %v1493 = vpop.xlane.xlu0 %1492
  %v1494 = vsub.f32 %v1478, %v1484
  %v1495 = vsub.f32 %v1479, %v1487
  %v1496 = vsub.f32 %v1480, %v1490
  %v1497 = vsub.f32 %v1481, %v1493
  %v1498 = vmul.f32 %v1494, 1.442695
  %v1499 = vpow.pop %v1498
  %v1500 = vmul.f32 %v1495, 1.442695
  %v1501 = vpow.pop %v1500
  %v1502 = vmul.f32 %v1496, 1.442695
  %v1503 = vpow.pop %v1502
  %v1504 = vmul.f32 %v1497, 1.442695
  %v1505 = vpow.pop %v1504
  %v1506 = vsel %vm760, %v1499, 0.0
  %1507 = vadd.xlane.f32.xlu0 %v1506
  %v1508 = vpop.xlane.xlu0 %1507
  %v1509 = vsel %vm760, %v1501, 0.0
  %1510 = vadd.xlane.f32.xlu0 %v1509
  %v1511 = vpop.xlane.xlu0 %1510
  %v1512 = vsel %vm760, %v1503, 0.0
  %1513 = vadd.xlane.f32.xlu0 %v1512
  %v1514 = vpop.xlane.xlu0 %1513
  %v1515 = vsel %vm760, %v1505, 0.0
  %1516 = vadd.xlane.f32.xlu0 %v1515
  %v1517 = vpop.xlane.xlu0 %1516
  %v1518 = vrcp.pop %v1508
  %v1519 = vrcp.pop %v1511
  %v1520 = vrcp.pop %v1514
  %v1521 = vrcp.pop %v1517
  %v1522 = vmul.f32 %v1499, %v1518
  %v1523 = vmul.f32 %v1501, %v1519
  %v1524 = vmul.f32 %v1503, %v1520
  %v1525 = vmul.f32 %v1505, %v1521
  %v1526 = vpack.c.bf16 %v1523, %v1522
  %v1527 = vpack.c.bf16 %v1525, %v1524
  %v1529 = vsel %vm760, %v1526, 0
  %1531 = vmatprep.subr.bf16.mxu0 0
  %1532 = vmatpush1.bf16.msra.mxu0 0
  %1533 = vmatprep.subr.bf16.mxu0 0
  %1534 = vmatpush1.bf16.msra.mxu0 0
  %1535 = vmatprep.subr.bf16.mxu0 0
  %1536 = vmatpush1.bf16.msra.mxu0 0
  %1537 = vmatprep.subr.bf16.mxu0 0
  %1538 = vmatpush1.bf16.msra.mxu0 0
  %1539 = vmatprep.subr.bf16.mxu0 0
  %1540 = vmatpush1.bf16.msra.mxu0 0
  %1541 = vmatprep.subr.bf16.mxu0 0
  %1542 = vmatpush1.bf16.msra.mxu0 0
  %1543 = vmatprep.subr.bf16.mxu0 0
  %1544 = vmatpush1.bf16.msra.mxu0 0
  %1545 = vmatprep.subr.bf16.mxu0 0
  %1546 = vmatpush1.bf16.msra.mxu0 %v1377
  %1547 = vmatprep.subr.bf16.mxu0 0
  %1548 = vmatpush2.bf16.msra.mxu0 0
  %1549 = vmatprep.subr.bf16.mxu0 0
  %1550 = vmatpush2.bf16.msra.mxu0 0
  %1551 = vmatprep.subr.bf16.mxu0 0
  %1552 = vmatpush2.bf16.msra.mxu0 0
  %1553 = vmatprep.subr.bf16.mxu0 0
  %1554 = vmatpush2.bf16.msra.mxu0 0
  %1555 = vmatprep.subr.bf16.mxu0 0
  %1556 = vmatpush2.bf16.msra.mxu0 0
  %1557 = vmatprep.subr.bf16.mxu0 0
  %1558 = vmatpush2.bf16.msra.mxu0 0
  %1559 = vmatprep.subr.bf16.mxu0 0
  %1560 = vmatpush2.bf16.msra.mxu0 0
  %1561 = vmatprep.subr.bf16.mxu0 0
  %1562 = vmatpush2.bf16.msra.mxu0 0
  %1563 = vmatprep.mubr.bf16.mxu0 0
  %1564 = vmatmul.mubr.bf16.gmra.mxu0 %v1529
  %v1565 = vpop.f32.mrf.mxu0
  %v1566 = vadd.f32 0.0, %v1565
  %v1567 = vpop.f32.mrf.mxu0
  %v1568 = vpop.f32.mrf.mxu0
  %v1569 = vadd.f32 0.0, %v1568
  %v1570 = vpop.f32.mrf.mxu0
  %1571 = vdwg.mxu0
  %v1573 = vsel %vm760, %v1527, 0
  %1575 = vmatprep.subr.bf16.mxu0 0
  %1576 = vmatpush1.bf16.msra.mxu0 0
  %1577 = vmatprep.subr.bf16.mxu0 0
  %1578 = vmatpush1.bf16.msra.mxu0 0
  %1579 = vmatprep.subr.bf16.mxu0 0
  %1580 = vmatpush1.bf16.msra.mxu0 0
  %1581 = vmatprep.subr.bf16.mxu0 0
  %1582 = vmatpush1.bf16.msra.mxu0 0
  %1583 = vmatprep.subr.bf16.mxu0 0
  %1584 = vmatpush1.bf16.msra.mxu0 0
  %1585 = vmatprep.subr.bf16.mxu0 0
  %1586 = vmatpush1.bf16.msra.mxu0 0
  %1587 = vmatprep.subr.bf16.mxu0 0
  %1588 = vmatpush1.bf16.msra.mxu0 0
  %1589 = vmatprep.subr.bf16.mxu0 0
  %1590 = vmatpush1.bf16.msra.mxu0 %v1378
  %1591 = vmatprep.subr.bf16.mxu0 0
  %1592 = vmatpush2.bf16.msra.mxu0 0
  %1593 = vmatprep.subr.bf16.mxu0 0
  %1594 = vmatpush2.bf16.msra.mxu0 0
  %1595 = vmatprep.subr.bf16.mxu0 0
  %1596 = vmatpush2.bf16.msra.mxu0 0
  %1597 = vmatprep.subr.bf16.mxu0 0
  %1598 = vmatpush2.bf16.msra.mxu0 0
  %1599 = vmatprep.subr.bf16.mxu0 0
  %1600 = vmatpush2.bf16.msra.mxu0 0
  %1601 = vmatprep.subr.bf16.mxu0 0
  %1602 = vmatpush2.bf16.msra.mxu0 0
  %1603 = vmatprep.subr.bf16.mxu0 0
  %1604 = vmatpush2.bf16.msra.mxu0 0
  %1605 = vmatprep.subr.bf16.mxu0 0
  %1606 = vmatpush2.bf16.msra.mxu0 0
  %1607 = vmatprep.mubr.bf16.mxu0 0
  %1608 = vmatmul.mubr.bf16.gmra.mxu0 %v1573
  %v1609 = vpop.f32.mrf.mxu0
  %v1610 = vadd.f32 0.0, %v1609
  %v1611 = vpop.f32.mrf.mxu0
  %v1612 = vpop.f32.mrf.mxu0
  %v1613 = vadd.f32 0.0, %v1612
  %v1614 = vpop.f32.mrf.mxu0
  %1615 = vdwg.mxu0
  %v1616 = vpack.c.bf16 %v1569, %v1566
  %v1617 = vpack.c.bf16 %v1613, %v1610
  %v1618 = vld [vmem:[%s17] sm:$0xf]
  %v1619 = vld [vmem:[%s17 + $0x4] sm:$0xf]
  %v1620 = vld [vmem:[%s17 + $0x8] sm:$0xf]
  %v1621 = vld [vmem:[%s17 + $0xc] sm:$0xf]
  %v1622 = vld [vmem:[%s17 + $0x10] sm:$0xf]
  %v1623 = vld [vmem:[%s17 + $0x14] sm:$0xf]
  %v1624 = vld [vmem:[%s17 + $0x18] sm:$0xf]
  %v1625 = vld [vmem:[%s17 + $0x1c] sm:$0xf]
  %v1626 = vld [vmem:[%s17 + $0x20] sm:$0xf]
  %v1627 = vld [vmem:[%s17 + $0x24] sm:$0xf]
  %v1628 = vld [vmem:[%s17 + $0x28] sm:$0xf]
  %v1629 = vld [vmem:[%s17 + $0x2c] sm:$0xf]
  %v1630 = vld [vmem:[%s17 + $0x30] sm:$0xf]
  %v1631 = vld [vmem:[%s17 + $0x34] sm:$0xf]
  %v1632 = vld [vmem:[%s17 + $0x38] sm:$0xf]
  %v1633 = vld [vmem:[%s17 + $0x3c] sm:$0xf]
  %v1634 = vld [vmem:[%s18] sm:$0x1]
  %v1636 = vlaneseq
  %v1637 = vshrl.u32 %v1636, 7
  %v1638 = vsub.s32 0, %v1637
  %v1639 = vrot.slane %v1634, %v1638
  %v1657 = vunpack.c.l.b16 %v1618
  %v1658 = vunpack.c.l.b16 %v1619
  %v1659 = vunpack.c.l.b16 %v1620
  %v1660 = vunpack.c.l.b16 %v1621
  %v1661 = vunpack.c.l.b16 %v1622
  %v1662 = vunpack.c.l.b16 %v1623
  %v1663 = vunpack.c.l.b16 %v1624
  %v1664 = vunpack.c.l.b16 %v1625
  %v1665 = vunpack.c.l.b16 %v1626
  %v1666 = vunpack.c.l.b16 %v1627
  %v1667 = vunpack.c.l.b16 %v1628
  %v1668 = vunpack.c.l.b16 %v1629
  %v1669 = vunpack.c.l.b16 %v1630
  %v1670 = vunpack.c.l.b16 %v1631
  %v1671 = vunpack.c.l.b16 %v1632
  %v1672 = vunpack.c.l.b16 %v1633
  %v1673 = vpack.c.b16 %v1658, %v1657
  %v1674 = vpack.c.b16 %v1660, %v1659
  %v1675 = vpack.c.b16 %v1662, %v1661
  %v1676 = vpack.c.b16 %v1664, %v1663
  %v1677 = vpack.c.b16 %v1666, %v1665
  %v1678 = vpack.c.b16 %v1668, %v1667
  %v1679 = vpack.c.b16 %v1670, %v1669
  %v1680 = vpack.c.b16 %v1672, %v1671
  %1689 = vmatprep.subr.bf16.mxu0 0
  %1690 = vmatpush1.bf16.msra.mxu0 %v1680
  %1691 = vmatprep.subr.bf16.mxu0 0
  %1692 = vmatpush1.bf16.msra.mxu0 %v1679
  %1693 = vmatprep.subr.bf16.mxu0 0
  %1694 = vmatpush1.bf16.msra.mxu0 %v1678
  %1695 = vmatprep.subr.bf16.mxu0 0
  %1696 = vmatpush1.bf16.msra.mxu0 %v1677
  %1697 = vmatprep.subr.bf16.mxu0 0
  %1698 = vmatpush1.bf16.msra.mxu0 %v1676
  %1699 = vmatprep.subr.bf16.mxu0 0
  %1700 = vmatpush1.bf16.msra.mxu0 %v1675
  %1701 = vmatprep.subr.bf16.mxu0 0
  %1702 = vmatpush1.bf16.msra.mxu0 %v1674
  %1703 = vmatprep.subr.bf16.mxu0 0
  %1704 = vmatpush1.bf16.msra.mxu0 %v1673
  %1705 = vmatprep.subr.bf16.mxu0 0
  %1706 = vmatpush2.bf16.msra.mxu0 0
  %1707 = vmatprep.subr.bf16.mxu0 0
  %1708 = vmatpush2.bf16.msra.mxu0 0
  %1709 = vmatprep.subr.bf16.mxu0 0
  %1710 = vmatpush2.bf16.msra.mxu0 0
  %1711 = vmatprep.subr.bf16.mxu0 0
  %1712 = vmatpush2.bf16.msra.mxu0 0
  %1713 = vmatprep.subr.bf16.mxu0 0
  %1714 = vmatpush2.bf16.msra.mxu0 0
  %1715 = vmatprep.subr.bf16.mxu0 0
  %1716 = vmatpush2.bf16.msra.mxu0 0
  %1717 = vmatprep.subr.bf16.mxu0 0
  %1718 = vmatpush2.bf16.msra.mxu0 0
  %1719 = vmatprep.subr.bf16.mxu0 0
  %1720 = vmatpush2.bf16.msra.mxu0 0
  %1721 = vmatprep.mubr.bf16.mxu0 0
  %1722 = vmatmul.mubr.bf16.gmra.mxu0 %v1616
  %v1723 = vpop.f32.mrf.mxu0
  %v1724 = vadd.f32 %v1639, %v1723
  %v1725 = vpop.f32.mrf.mxu0
  %v1726 = vpop.f32.mrf.mxu0
  %v1727 = vadd.f32 %v1639, %v1726
  %v1728 = vpop.f32.mrf.mxu0
  %1729 = vmatprep.mubr.bf16.mxu0 0
  %1730 = vmatmul.mubr.bf16.gmra.mxu0 %v1617
  %v1731 = vpop.f32.mrf.mxu0
  %v1732 = vadd.f32 %v1639, %v1731
  %v1733 = vpop.f32.mrf.mxu0
  %v1734 = vpop.f32.mrf.mxu0
  %v1735 = vadd.f32 %v1639, %v1734
  %v1736 = vpop.f32.mrf.mxu0
  %1737 = vdwg.mxu0
  %v1738 = vadd.f32 %v1086, %v1724
  %v1739 = vadd.f32 %v1087, %v1727
  %v1740 = vadd.f32 %v1088, %v1732
  %v1741 = vadd.f32 %v1089, %v1735
  %v1742 = vpack.c.bf16 %v1739, %v1738
  %v1743 = vpack.c.bf16 %v1741, %v1740
  %v1744 = vld [vmem:[%s19] sm:$0xff]
  %v1745 = vld [vmem:[%s19 + $0x8] sm:$0xff]
  %v1746 = vld [vmem:[%s19 + $0x10] sm:$0xff]
  %v1747 = vld [vmem:[%s19 + $0x18] sm:$0xff]
  %v1748 = vld [vmem:[%s19 + $0x20] sm:$0xff]
  %v1749 = vld [vmem:[%s19 + $0x28] sm:$0xff]
  %v1750 = vld [vmem:[%s19 + $0x30] sm:$0xff]
  %v1751 = vld [vmem:[%s19 + $0x38] sm:$0xff]
  %v1752 = vld [vmem:[%s19 + $0x40] sm:$0xff]
  %v1753 = vld [vmem:[%s19 + $0x48] sm:$0xff]
  %v1754 = vld [vmem:[%s19 + $0x50] sm:$0xff]
  %v1755 = vld [vmem:[%s19 + $0x58] sm:$0xff]
  %v1756 = vld [vmem:[%s19 + $0x60] sm:$0xff]
  %v1757 = vld [vmem:[%s19 + $0x68] sm:$0xff]
  %v1758 = vld [vmem:[%s19 + $0x70] sm:$0xff]
  %v1759 = vld [vmem:[%s19 + $0x78] sm:$0xff]
  %v1760 = vld [vmem:[%s19 + $0x80] sm:$0xff]
  %v1761 = vld [vmem:[%s19 + $0x88] sm:$0xff]
  %v1762 = vld [vmem:[%s19 + $0x90] sm:$0xff]
  %v1763 = vld [vmem:[%s19 + $0x98] sm:$0xff]
  %v1764 = vld [vmem:[%s19 + $0xa0] sm:$0xff]
  %v1765 = vld [vmem:[%s19 + $0xa8] sm:$0xff]
  %v1766 = vld [vmem:[%s19 + $0xb0] sm:$0xff]
  %v1767 = vld [vmem:[%s19 + $0xb8] sm:$0xff]
  %v1768 = vld [vmem:[%s19 + $0xc0] sm:$0xff]
  %v1769 = vld [vmem:[%s19 + $0xc8] sm:$0xff]
  %v1770 = vld [vmem:[%s19 + $0xd0] sm:$0xff]
  %v1771 = vld [vmem:[%s19 + $0xd8] sm:$0xff]
  %v1772 = vld [vmem:[%s19 + $0xe0] sm:$0xff]
  %v1773 = vld [vmem:[%s19 + $0xe8] sm:$0xff]
  %v1774 = vld [vmem:[%s19 + $0xf0] sm:$0xff]
  %v1775 = vld [vmem:[%s19 + $0xf8] sm:$0xff]
  %v1776 = vld [vmem:[%s20] sm:$0xf]
  %v1778 = vlaneseq
  %v1779 = vshrl.u32 %v1778, 7
  %v1780 = vsub.s32 0, %v1779
  %v1781 = vrot.slane %v1776, %v1780
  %v1782 = vlaneseq
  %v1783 = vshrl.u32 %v1782, 7
  %v1784 = vsub.s32 1, %v1783
  %v1785 = vrot.slane %v1776, %v1784
  %v1786 = vlaneseq
  %v1787 = vshrl.u32 %v1786, 7
  %v1788 = vsub.s32 2, %v1787
  %v1789 = vrot.slane %v1776, %v1788
  %v1790 = vlaneseq
  %v1791 = vshrl.u32 %v1790, 7
  %v1792 = vsub.s32 3, %v1791
  %v1793 = vrot.slane %v1776, %v1792
  %v1830 = vunpack.c.l.b16 %v1744
  %v1831 = vunpack.c.h.b16 %v1744
  %v1832 = vunpack.c.l.b16 %v1745
  %v1833 = vunpack.c.h.b16 %v1745
  %v1834 = vunpack.c.l.b16 %v1746
  %v1835 = vunpack.c.h.b16 %v1746
  %v1836 = vunpack.c.l.b16 %v1747
  %v1837 = vunpack.c.h.b16 %v1747
  %v1838 = vunpack.c.l.b16 %v1748
  %v1839 = vunpack.c.h.b16 %v1748
  %v1840 = vunpack.c.l.b16 %v1749
  %v1841 = vunpack.c.h.b16 %v1749
  %v1842 = vunpack.c.l.b16 %v1750
  %v1843 = vunpack.c.h.b16 %v1750
  %v1844 = vunpack.c.l.b16 %v1751
  %v1845 = vunpack.c.h.b16 %v1751
  %v1846 = vunpack.c.l.b16 %v1752
  %v1847 = vunpack.c.h.b16 %v1752
  %v1848 = vunpack.c.l.b16 %v1753
  %v1849 = vunpack.c.h.b16 %v1753
  %v1850 = vunpack.c.l.b16 %v1754
  %v1851 = vunpack.c.h.b16 %v1754
  %v1852 = vunpack.c.l.b16 %v1755
  %v1853 = vunpack.c.h.b16 %v1755
  %v1854 = vunpack.c.l.b16 %v1756
  %v1855 = vunpack.c.h.b16 %v1756
  %v1856 = vunpack.c.l.b16 %v1757
  %v1857 = vunpack.c.h.b16 %v1757
  %v1858 = vunpack.c.l.b16 %v1758
  %v1859 = vunpack.c.h.b16 %v1758
  %v1860 = vunpack.c.l.b16 %v1759
  %v1861 = vunpack.c.h.b16 %v1759
  %v1862 = vunpack.c.l.b16 %v1760
  %v1863 = vunpack.c.h.b16 %v1760
  %v1864 = vunpack.c.l.b16 %v1761
  %v1865 = vunpack.c.h.b16 %v1761
  %v1866 = vunpack.c.l.b16 %v1762
  %v1867 = vunpack.c.h.b16 %v1762
  %v1868 = vunpack.c.l.b16 %v1763
  %v1869 = vunpack.c.h.b16 %v1763
  %v1870 = vunpack.c.l.b16 %v1764
  %v1871 = vunpack.c.h.b16 %v1764
  %v1872 = vunpack.c.l.b16 %v1765
  %v1873 = vunpack.c.h.b16 %v1765
  %v1874 = vunpack.c.l.b16 %v1766
  %v1875 = vunpack.c.h.b16 %v1766
  %v1876 = vunpack.c.l.b16 %v1767
  %v1877 = vunpack.c.h.b16 %v1767
  %v1878 = vunpack.c.l.b16 %v1768
  %v1879 = vunpack.c.h.b16 %v1768
  %v1880 = vunpack.c.l.b16 %v1769
  %v1881 = vunpack.c.h.b16 %v1769
  %v1882 = vunpack.c.l.b16 %v1770
  %v1883 = vunpack.c.h.b16 %v1770
  %v1884 = vunpack.c.l.b16 %v1771
  %v1885 = vunpack.c.h.b16 %v1771
  %v1886 = vunpack.c.l.b16 %v1772
  %v1887 = vunpack.c.h.b16 %v1772
  %v1888 = vunpack.c.l.b16 %v1773
  %v1889 = vunpack.c.h.b16 %v1773
  %v1890 = vunpack.c.l.b16 %v1774
  %v1891 = vunpack.c.h.b16 %v1774
  %v1892 = vunpack.c.l.b16 %v1775
  %v1893 = vunpack.c.h.b16 %v1775
  %v1894 = vpack.c.b16 %v1834, %v1830
  %v1895 = vpack.c.b16 %v1835, %v1831
  %v1896 = vpack.c.b16 %v1836, %v1832
  %v1897 = vpack.c.b16 %v1837, %v1833
  %v1898 = vpack.c.b16 %v1842, %v1838
  %v1899 = vpack.c.b16 %v1843, %v1839
  %v1900 = vpack.c.b16 %v1844, %v1840
  %v1901 = vpack.c.b16 %v1845, %v1841
  %v1902 = vpack.c.b16 %v1850, %v1846
  %v1903 = vpack.c.b16 %v1851, %v1847
  %v1904 = vpack.c.b16 %v1852, %v1848
  %v1905 = vpack.c.b16 %v1853, %v1849
  %v1906 = vpack.c.b16 %v1858, %v1854
  %v1907 = vpack.c.b16 %v1859, %v1855
  %v1908 = vpack.c.b16 %v1860, %v1856
  %v1909 = vpack.c.b16 %v1861, %v1857
  %v1910 = vpack.c.b16 %v1866, %v1862
  %v1911 = vpack.c.b16 %v1867, %v1863
  %v1912 = vpack.c.b16 %v1868, %v1864
  %v1913 = vpack.c.b16 %v1869, %v1865
  %v1914 = vpack.c.b16 %v1874, %v1870
  %v1915 = vpack.c.b16 %v1875, %v1871
  %v1916 = vpack.c.b16 %v1876, %v1872
  %v1917 = vpack.c.b16 %v1877, %v1873
  %v1918 = vpack.c.b16 %v1882, %v1878
  %v1919 = vpack.c.b16 %v1883, %v1879
  %v1920 = vpack.c.b16 %v1884, %v1880
  %v1921 = vpack.c.b16 %v1885, %v1881
  %v1922 = vpack.c.b16 %v1890, %v1886
  %v1923 = vpack.c.b16 %v1891, %v1887
  %v1924 = vpack.c.b16 %v1892, %v1888
  %v1925 = vpack.c.b16 %v1893, %v1889
  %1958 = vmatprep.subr.bf16.mxu0 %v1923
  %1959 = vmatpush1.bf16.msra.mxu0 %v1922
  %1960 = vmatprep.subr.bf16.mxu0 %v1919
  %1961 = vmatpush1.bf16.msra.mxu0 %v1918
  %1962 = vmatprep.subr.bf16.mxu0 %v1915
  %1963 = vmatpush1.bf16.msra.mxu0 %v1914
  %1964 = vmatprep.subr.bf16.mxu0 %v1911
  %1965 = vmatpush1.bf16.msra.mxu0 %v1910
  %1966 = vmatprep.subr.bf16.mxu0 %v1907
  %1967 = vmatpush1.bf16.msra.mxu0 %v1906
  %1968 = vmatprep.subr.bf16.mxu0 %v1903
  %1969 = vmatpush1.bf16.msra.mxu0 %v1902
  %1970 = vmatprep.subr.bf16.mxu0 %v1899
  %1971 = vmatpush1.bf16.msra.mxu0 %v1898
  %1972 = vmatprep.subr.bf16.mxu0 %v1895
  %1973 = vmatpush1.bf16.msra.mxu0 %v1894
  %1974 = vmatprep.subr.bf16.mxu0 0
  %1975 = vmatpush2.bf16.msra.mxu0 0
  %1976 = vmatprep.subr.bf16.mxu0 0
  %1977 = vmatpush2.bf16.msra.mxu0 0
  %1978 = vmatprep.subr.bf16.mxu0 0
  %1979 = vmatpush2.bf16.msra.mxu0 0
  %1980 = vmatprep.subr.bf16.mxu0 0
  %1981 = vmatpush2.bf16.msra.mxu0 0
  %1982 = vmatprep.subr.bf16.mxu0 0
  %1983 = vmatpush2.bf16.msra.mxu0 0
  %1984 = vmatprep.subr.bf16.mxu0 0
  %1985 = vmatpush2.bf16.msra.mxu0 0
  %1986 = vmatprep.subr.bf16.mxu0 0
  %1987 = vmatpush2.bf16.msra.mxu0 0
  %1988 = vmatprep.subr.bf16.mxu0 0
  %1989 = vmatpush2.bf16.msra.mxu0 0
  %1990 = vmatprep.mubr.bf16.mxu0 0
  %1991 = vmatmul.mubr.bf16.gmra.mxu0 %v1742
  %v1992 = vpop.f32.mrf.mxu0
  %v1993 = vadd.f32 %v1781, %v1992
  %v1994 = vpop.f32.mrf.mxu0
  %v1995 = vadd.f32 %v1785, %v1994
  %v1996 = vpop.f32.mrf.mxu0
  %v1997 = vadd.f32 %v1781, %v1996
  %v1998 = vpop.f32.mrf.mxu0
  %v1999 = vadd.f32 %v1785, %v1998
  %2000 = vmatprep.mubr.bf16.mxu0 0
  %2001 = vmatmul.mubr.bf16.gmra.mxu0 %v1743
  %v2002 = vpop.f32.mrf.mxu0
  %v2003 = vadd.f32 %v1781, %v2002
  %v2004 = vpop.f32.mrf.mxu0
  %v2005 = vadd.f32 %v1785, %v2004
  %v2006 = vpop.f32.mrf.mxu0
  %v2007 = vadd.f32 %v1781, %v2006
  %v2008 = vpop.f32.mrf.mxu0
  %v2009 = vadd.f32 %v1785, %v2008
  %2010 = vdwg.mxu0
  %2011 = vmatprep.subr.bf16.mxu0 %v1925
  %2012 = vmatpush1.bf16.msra.mxu0 %v1924
  %2013 = vmatprep.subr.bf16.mxu0 %v1921
  %2014 = vmatpush1.bf16.msra.mxu0 %v1920
  %2015 = vmatprep.subr.bf16.mxu0 %v1917
  %2016 = vmatpush1.bf16.msra.mxu0 %v1916
  %2017 = vmatprep.subr.bf16.mxu0 %v1913
  %2018 = vmatpush1.bf16.msra.mxu0 %v1912
  %2019 = vmatprep.subr.bf16.mxu0 %v1909
  %2020 = vmatpush1.bf16.msra.mxu0 %v1908
  %2021 = vmatprep.subr.bf16.mxu0 %v1905
  %2022 = vmatpush1.bf16.msra.mxu0 %v1904
  %2023 = vmatprep.subr.bf16.mxu0 %v1901
  %2024 = vmatpush1.bf16.msra.mxu0 %v1900
  %2025 = vmatprep.subr.bf16.mxu0 %v1897
  %2026 = vmatpush1.bf16.msra.mxu0 %v1896
  %2027 = vmatprep.subr.bf16.mxu0 0
  %2028 = vmatpush2.bf16.msra.mxu0 0
  %2029 = vmatprep.subr.bf16.mxu0 0
  %2030 = vmatpush2.bf16.msra.mxu0 0
  %2031 = vmatprep.subr.bf16.mxu0 0
  %2032 = vmatpush2.bf16.msra.mxu0 0
  %2033 = vmatprep.subr.bf16.mxu0 0
  %2034 = vmatpush2.bf16.msra.mxu0 0
  %2035 = vmatprep.subr.bf16.mxu0 0
  %2036 = vmatpush2.bf16.msra.mxu0 0
  %2037 = vmatprep.subr.bf16.mxu0 0
  %2038 = vmatpush2.bf16.msra.mxu0 0
  %2039 = vmatprep.subr.bf16.mxu0 0
  %2040 = vmatpush2.bf16.msra.mxu0 0
  %2041 = vmatprep.subr.bf16.mxu0 0
  %2042 = vmatpush2.bf16.msra.mxu0 0
  %2043 = vmatprep.mubr.bf16.mxu0 0
  %2044 = vmatmul.mubr.bf16.gmra.mxu0 %v1742
  %v2045 = vpop.f32.mrf.mxu0
  %v2046 = vadd.f32 %v1789, %v2045
  %v2047 = vpop.f32.mrf.mxu0
  %v2048 = vadd.f32 %v1793, %v2047
  %v2049 = vpop.f32.mrf.mxu0
  %v2050 = vadd.f32 %v1789, %v2049
  %v2051 = vpop.f32.mrf.mxu0
  %v2052 = vadd.f32 %v1793, %v2051
  %2053 = vmatprep.mubr.bf16.mxu0 0
  %2054 = vmatmul.mubr.bf16.gmra.mxu0 %v1743
  %v2055 = vpop.f32.mrf.mxu0
  %v2056 = vadd.f32 %v1789, %v2055
  %v2057 = vpop.f32.mrf.mxu0
  %v2058 = vadd.f32 %v1793, %v2057
  %v2059 = vpop.f32.mrf.mxu0
  %v2060 = vadd.f32 %v1789, %v2059
  %v2061 = vpop.f32.mrf.mxu0
  %v2062 = vadd.f32 %v1793, %v2061
  %2063 = vdwg.mxu0
  %v2064 = vmul.f32 %v1993, %v1993
  %v2065 = vmul.f32 %v1995, %v1995
  %v2066 = vmul.f32 %v2046, %v2046
  %v2067 = vmul.f32 %v2048, %v2048
  %v2068 = vmul.f32 %v1997, %v1997
  %v2069 = vmul.f32 %v1999, %v1999
  %v2070 = vmul.f32 %v2050, %v2050
  %v2071 = vmul.f32 %v2052, %v2052
  %v2072 = vmul.f32 %v2003, %v2003
  %v2073 = vmul.f32 %v2005, %v2005
  %v2074 = vmul.f32 %v2056, %v2056
  %v2075 = vmul.f32 %v2058, %v2058
  %v2076 = vmul.f32 %v2007, %v2007
  %v2077 = vmul.f32 %v2009, %v2009
  %v2078 = vmul.f32 %v2060, %v2060
  %v2079 = vmul.f32 %v2062, %v2062
  %v2080 = vmul.f32 %v1993, %v2064
  %v2081 = vmul.f32 %v1995, %v2065
  %v2082 = vmul.f32 %v2046, %v2066
  %v2083 = vmul.f32 %v2048, %v2067
  %v2084 = vmul.f32 %v1997, %v2068
  %v2085 = vmul.f32 %v1999, %v2069
  %v2086 = vmul.f32 %v2050, %v2070
  %v2087 = vmul.f32 %v2052, %v2071
  %v2088 = vmul.f32 %v2003, %v2072
  %v2089 = vmul.f32 %v2005, %v2073
  %v2090 = vmul.f32 %v2056, %v2074
  %v2091 = vmul.f32 %v2058, %v2075
  %v2092 = vmul.f32 %v2007, %v2076
  %v2093 = vmul.f32 %v2009, %v2077
  %v2094 = vmul.f32 %v2060, %v2078
  %v2095 = vmul.f32 %v2062, %v2079
  %v2096 = vmul.f32 %v2080, 0.044715
  %v2097 = vmul.f32 %v2081, 0.044715
  %v2098 = vmul.f32 %v2082, 0.044715
  %v2099 = vmul.f32 %v2083, 0.044715
  %v2100 = vmul.f32 %v2084, 0.044715
  %v2101 = vmul.f32 %v2085, 0.044715
  %v2102 = vmul.f32 %v2086, 0.044715
  %v2103 = vmul.f32 %v2087, 0.044715
  %v2104 = vmul.f32 %v2088, 0.044715
  %v2105 = vmul.f32 %v2089, 0.044715
  %v2106 = vmul.f32 %v2090, 0.044715
  %v2107 = vmul.f32 %v2091, 0.044715
  %v2108 = vmul.f32 %v2092, 0.044715
  %v2109 = vmul.f32 %v2093, 0.044715
  %v2110 = vmul.f32 %v2094, 0.044715
  %v2111 = vmul.f32 %v2095, 0.044715
  %v2112 = vadd.f32 %v1993, %v2096
  %v2113 = vadd.f32 %v1995, %v2097
  %v2114 = vadd.f32 %v2046, %v2098
  %v2115 = vadd.f32 %v2048, %v2099
  %v2116 = vadd.f32 %v1997, %v2100
  %v2117 = vadd.f32 %v1999, %v2101
  %v2118 = vadd.f32 %v2050, %v2102
  %v2119 = vadd.f32 %v2052, %v2103
  %v2120 = vadd.f32 %v2003, %v2104
  %v2121 = vadd.f32 %v2005, %v2105
  %v2122 = vadd.f32 %v2056, %v2106
  %v2123 = vadd.f32 %v2058, %v2107
  %v2124 = vadd.f32 %v2007, %v2108
  %v2125 = vadd.f32 %v2009, %v2109
  %v2126 = vadd.f32 %v2060, %v2110
  %v2127 = vadd.f32 %v2062, %v2111
  %v2128 = vmul.f32 %v2112, 0.7978846
  %v2129 = vmul.f32 %v2113, 0.7978846
  %v2130 = vmul.f32 %v2114, 0.7978846
  %v2131 = vmul.f32 %v2115, 0.7978846
  %v2132 = vmul.f32 %v2116, 0.7978846
  %v2133 = vmul.f32 %v2117, 0.7978846
  %v2134 = vmul.f32 %v2118, 0.7978846
  %v2135 = vmul.f32 %v2119, 0.7978846
  %v2136 = vmul.f32 %v2120, 0.7978846
  %v2137 = vmul.f32 %v2121, 0.7978846
  %v2138 = vmul.f32 %v2122, 0.7978846
  %v2139 = vmul.f32 %v2123, 0.7978846
  %v2140 = vmul.f32 %v2124, 0.7978846
  %v2141 = vmul.f32 %v2125, 0.7978846
  %v2142 = vmul.f32 %v2126, 0.7978846
  %v2143 = vmul.f32 %v2127, 0.7978846
  %v2144 = vtanh.pop %v2128
  %v2145 = vtanh.pop %v2129
  %v2146 = vtanh.pop %v2130
  %v2147 = vtanh.pop %v2131
  %v2148 = vtanh.pop %v2132
  %v2149 = vtanh.pop %v2133
  %v2150 = vtanh.pop %v2134
  %v2151 = vtanh.pop %v2135
  %v2152 = vtanh.pop %v2136
  %v2153 = vtanh.pop %v2137
  %v2154 = vtanh.pop %v2138
  %v2155 = vtanh.pop %v2139
  %v2156 = vtanh.pop %v2140
  %v2157 = vtanh.pop %v2141
  %v2158 = vtanh.pop %v2142
  %v2159 = vtanh.pop %v2143
  %v2160 = vadd.f32 %v2144, 1.0
  %v2161 = vadd.f32 %v2145, 1.0
  %v2162 = vadd.f32 %v2146, 1.0
  %v2163 = vadd.f32 %v2147, 1.0
  %v2164 = vadd.f32 %v2148, 1.0
  %v2165 = vadd.f32 %v2149, 1.0
  %v2166 = vadd.f32 %v2150, 1.0
  %v2167 = vadd.f32 %v2151, 1.0
  %v2168 = vadd.f32 %v2152, 1.0
  %v2169 = vadd.f32 %v2153, 1.0
  %v2170 = vadd.f32 %v2154, 1.0
  %v2171 = vadd.f32 %v2155, 1.0
  %v2172 = vadd.f32 %v2156, 1.0
  %v2173 = vadd.f32 %v2157, 1.0
  %v2174 = vadd.f32 %v2158, 1.0
  %v2175 = vadd.f32 %v2159, 1.0
  %v2176 = vmul.f32 %v2160, 0.5
  %v2177 = vmul.f32 %v2161, 0.5
  %v2178 = vmul.f32 %v2162, 0.5
  %v2179 = vmul.f32 %v2163, 0.5
  %v2180 = vmul.f32 %v2164, 0.5
  %v2181 = vmul.f32 %v2165, 0.5
  %v2182 = vmul.f32 %v2166, 0.5
  %v2183 = vmul.f32 %v2167, 0.5
  %v2184 = vmul.f32 %v2168, 0.5
  %v2185 = vmul.f32 %v2169, 0.5
  %v2186 = vmul.f32 %v2170, 0.5
  %v2187 = vmul.f32 %v2171, 0.5
  %v2188 = vmul.f32 %v2172, 0.5
  %v2189 = vmul.f32 %v2173, 0.5
  %v2190 = vmul.f32 %v2174, 0.5
  %v2191 = vmul.f32 %v2175, 0.5
  %v2192 = vmul.f32 %v1993, %v2176
  %v2193 = vmul.f32 %v1995, %v2177
  %v2194 = vmul.f32 %v2046, %v2178
  %v2195 = vmul.f32 %v2048, %v2179
  %v2196 = vmul.f32 %v1997, %v2180
  %v2197 = vmul.f32 %v1999, %v2181
  %v2198 = vmul.f32 %v2050, %v2182
  %v2199 = vmul.f32 %v2052, %v2183
  %v2200 = vmul.f32 %v2003, %v2184
  %v2201 = vmul.f32 %v2005, %v2185
  %v2202 = vmul.f32 %v2056, %v2186
  %v2203 = vmul.f32 %v2058, %v2187
  %v2204 = vmul.f32 %v2007, %v2188
  %v2205 = vmul.f32 %v2009, %v2189
  %v2206 = vmul.f32 %v2060, %v2190
  %v2207 = vmul.f32 %v2062, %v2191
  %v2208 = vpack.c.bf16 %v2196, %v2192
  %v2209 = vpack.c.bf16 %v2197, %v2193
  %v2210 = vpack.c.bf16 %v2198, %v2194
  %v2211 = vpack.c.bf16 %v2199, %v2195
  %v2212 = vpack.c.bf16 %v2204, %v2200
  %v2213 = vpack.c.bf16 %v2205, %v2201
  %v2214 = vpack.c.bf16 %v2206, %v2202
  %v2215 = vpack.c.bf16 %v2207, %v2203
  %v2216 = vld [vmem:[%s21] sm:$0xf]
  %v2217 = vld [vmem:[%s21 + $0x4] sm:$0xf]
  %v2218 = vld [vmem:[%s21 + $0x8] sm:$0xf]
  %v2219 = vld [vmem:[%s21 + $0xc] sm:$0xf]
  %v2220 = vld [vmem:[%s21 + $0x10] sm:$0xf]
  %v2221 = vld [vmem:[%s21 + $0x14] sm:$0xf]
  %v2222 = vld [vmem:[%s21 + $0x18] sm:$0xf]
  %v2223 = vld [vmem:[%s21 + $0x1c] sm:$0xf]
  %v2224 = vld [vmem:[%s21 + $0x20] sm:$0xf]
  %v2225 = vld [vmem:[%s21 + $0x24] sm:$0xf]
  %v2226 = vld [vmem:[%s21 + $0x28] sm:$0xf]
  %v2227 = vld [vmem:[%s21 + $0x2c] sm:$0xf]
  %v2228 = vld [vmem:[%s21 + $0x30] sm:$0xf]
  %v2229 = vld [vmem:[%s21 + $0x34] sm:$0xf]
  %v2230 = vld [vmem:[%s21 + $0x38] sm:$0xf]
  %v2231 = vld [vmem:[%s21 + $0x3c] sm:$0xf]
  %v2232 = vld [vmem:[%s21 + $0x40] sm:$0xf]
  %v2233 = vld [vmem:[%s21 + $0x44] sm:$0xf]
  %v2234 = vld [vmem:[%s21 + $0x48] sm:$0xf]
  %v2235 = vld [vmem:[%s21 + $0x4c] sm:$0xf]
  %v2236 = vld [vmem:[%s21 + $0x50] sm:$0xf]
  %v2237 = vld [vmem:[%s21 + $0x54] sm:$0xf]
  %v2238 = vld [vmem:[%s21 + $0x58] sm:$0xf]
  %v2239 = vld [vmem:[%s21 + $0x5c] sm:$0xf]
  %v2240 = vld [vmem:[%s21 + $0x60] sm:$0xf]
  %v2241 = vld [vmem:[%s21 + $0x64] sm:$0xf]
  %v2242 = vld [vmem:[%s21 + $0x68] sm:$0xf]
  %v2243 = vld [vmem:[%s21 + $0x6c] sm:$0xf]
  %v2244 = vld [vmem:[%s21 + $0x70] sm:$0xf]
  %v2245 = vld [vmem:[%s21 + $0x74] sm:$0xf]
  %v2246 = vld [vmem:[%s21 + $0x78] sm:$0xf]
  %v2247 = vld [vmem:[%s21 + $0x7c] sm:$0xf]
  %v2248 = vld [vmem:[%s21 + $0x80] sm:$0xf]
  %v2249 = vld [vmem:[%s21 + $0x84] sm:$0xf]
  %v2250 = vld [vmem:[%s21 + $0x88] sm:$0xf]
  %v2251 = vld [vmem:[%s21 + $0x8c] sm:$0xf]
  %v2252 = vld [vmem:[%s21 + $0x90] sm:$0xf]
  %v2253 = vld [vmem:[%s21 + $0x94] sm:$0xf]
  %v2254 = vld [vmem:[%s21 + $0x98] sm:$0xf]
  %v2255 = vld [vmem:[%s21 + $0x9c] sm:$0xf]
  %v2256 = vld [vmem:[%s21 + $0xa0] sm:$0xf]
  %v2257 = vld [vmem:[%s21 + $0xa4] sm:$0xf]
  %v2258 = vld [vmem:[%s21 + $0xa8] sm:$0xf]
  %v2259 = vld [vmem:[%s21 + $0xac] sm:$0xf]
  %v2260 = vld [vmem:[%s21 + $0xb0] sm:$0xf]
  %v2261 = vld [vmem:[%s21 + $0xb4] sm:$0xf]
  %v2262 = vld [vmem:[%s21 + $0xb8] sm:$0xf]
  %v2263 = vld [vmem:[%s21 + $0xbc] sm:$0xf]
  %v2264 = vld [vmem:[%s21 + $0xc0] sm:$0xf]
  %v2265 = vld [vmem:[%s21 + $0xc4] sm:$0xf]
  %v2266 = vld [vmem:[%s21 + $0xc8] sm:$0xf]
  %v2267 = vld [vmem:[%s21 + $0xcc] sm:$0xf]
  %v2268 = vld [vmem:[%s21 + $0xd0] sm:$0xf]
  %v2269 = vld [vmem:[%s21 + $0xd4] sm:$0xf]
  %v2270 = vld [vmem:[%s21 + $0xd8] sm:$0xf]
  %v2271 = vld [vmem:[%s21 + $0xdc] sm:$0xf]
  %v2272 = vld [vmem:[%s21 + $0xe0] sm:$0xf]
  %v2273 = vld [vmem:[%s21 + $0xe4] sm:$0xf]
  %v2274 = vld [vmem:[%s21 + $0xe8] sm:$0xf]
  %v2275 = vld [vmem:[%s21 + $0xec] sm:$0xf]
  %v2276 = vld [vmem:[%s21 + $0xf0] sm:$0xf]
  %v2277 = vld [vmem:[%s21 + $0xf4] sm:$0xf]
  %v2278 = vld [vmem:[%s21 + $0xf8] sm:$0xf]
  %v2279 = vld [vmem:[%s21 + $0xfc] sm:$0xf]
  %v2280 = vld [vmem:[%s22] sm:$0x1]
  %v2282 = vlaneseq
  %v2283 = vshrl.u32 %v2282, 7
  %v2284 = vsub.s32 0, %v2283
  %v2285 = vrot.slane %v2280, %v2284
  %v2351 = vunpack.c.l.b16 %v2216
  %v2352 = vunpack.c.l.b16 %v2217
  %v2353 = vunpack.c.l.b16 %v2218
  %v2354 = vunpack.c.l.b16 %v2219
  %v2355 = vunpack.c.l.b16 %v2220
  %v2356 = vunpack.c.l.b16 %v2221
  %v2357 = vunpack.c.l.b16 %v2222
  %v2358 = vunpack.c.l.b16 %v2223
  %v2359 = vunpack.c.l.b16 %v2224
  %v2360 = vunpack.c.l.b16 %v2225
  %v2361 = vunpack.c.l.b16 %v2226
  %v2362 = vunpack.c.l.b16 %v2227
  %v2363 = vunpack.c.l.b16 %v2228
  %v2364 = vunpack.c.l.b16 %v2229
  %v2365 = vunpack.c.l.b16 %v2230
  %v2366 = vunpack.c.l.b16 %v2231
  %v2367 = vunpack.c.l.b16 %v2232
  %v2368 = vunpack.c.l.b16 %v2233
  %v2369 = vunpack.c.l.b16 %v2234
  %v2370 = vunpack.c.l.b16 %v2235
  %v2371 = vunpack.c.l.b16 %v2236
  %v2372 = vunpack.c.l.b16 %v2237
  %v2373 = vunpack.c.l.b16 %v2238
  %v2374 = vunpack.c.l.b16 %v2239
  %v2375 = vunpack.c.l.b16 %v2240
  %v2376 = vunpack.c.l.b16 %v2241
  %v2377 = vunpack.c.l.b16 %v2242
  %v2378 = vunpack.c.l.b16 %v2243
  %v2379 = vunpack.c.l.b16 %v2244
  %v2380 = vunpack.c.l.b16 %v2245
  %v2381 = vunpack.c.l.b16 %v2246
  %v2382 = vunpack.c.l.b16 %v2247
  %v2383 = vunpack.c.l.b16 %v2248
  %v2384 = vunpack.c.l.b16 %v2249
  %v2385 = vunpack.c.l.b16 %v2250
  %v2386 = vunpack.c.l.b16 %v2251
  %v2387 = vunpack.c.l.b16 %v2252
  %v2388 = vunpack.c.l.b16 %v2253
  %v2389 = vunpack.c.l.b16 %v2254
  %v2390 = vunpack.c.l.b16 %v2255
  %v2391 = vunpack.c.l.b16 %v2256
  %v2392 = vunpack.c.l.b16 %v2257
  %v2393 = vunpack.c.l.b16 %v2258
  %v2394 = vunpack.c.l.b16 %v2259
  %v2395 = vunpack.c.l.b16 %v2260
  %v2396 = vunpack.c.l.b16 %v2261
  %v2397 = vunpack.c.l.b16 %v2262
  %v2398 = vunpack.c.l.b16 %v2263
  %v2399 = vunpack.c.l.b16 %v2264
  %v2400 = vunpack.c.l.b16 %v2265
  %v2401 = vunpack.c.l.b16 %v2266
  %v2402 = vunpack.c.l.b16 %v2267
  %v2403 = vunpack.c.l.b16 %v2268
  %v2404 = vunpack.c.l.b16 %v2269
  %v2405 = vunpack.c.l.b16 %v2270
  %v2406 = vunpack.c.l.b16 %v2271
  %v2407 = vunpack.c.l.b16 %v2272
  %v2408 = vunpack.c.l.b16 %v2273
  %v2409 = vunpack.c.l.b16 %v2274
  %v2410 = vunpack.c.l.b16 %v2275
  %v2411 = vunpack.c.l.b16 %v2276
  %v2412 = vunpack.c.l.b16 %v2277
  %v2413 = vunpack.c.l.b16 %v2278
  %v2414 = vunpack.c.l.b16 %v2279
  %v2415 = vpack.c.b16 %v2352, %v2351
  %v2416 = vpack.c.b16 %v2354, %v2353
  %v2417 = vpack.c.b16 %v2356, %v2355
  %v2418 = vpack.c.b16 %v2358, %v2357
  %v2419 = vpack.c.b16 %v2360, %v2359
  %v2420 = vpack.c.b16 %v2362, %v2361
  %v2421 = vpack.c.b16 %v2364, %v2363
  %v2422 = vpack.c.b16 %v2366, %v2365
  %v2423 = vpack.c.b16 %v2368, %v2367
  %v2424 = vpack.c.b16 %v2370, %v2369
  %v2425 = vpack.c.b16 %v2372, %v2371
  %v2426 = vpack.c.b16 %v2374, %v2373
  %v2427 = vpack.c.b16 %v2376, %v2375
  %v2428 = vpack.c.b16 %v2378, %v2377
  %v2429 = vpack.c.b16 %v2380, %v2379
  %v2430 = vpack.c.b16 %v2382, %v2381
  %v2431 = vpack.c.b16 %v2384, %v2383
  %v2432 = vpack.c.b16 %v2386, %v2385
  %v2433 = vpack.c.b16 %v2388, %v2387
  %v2434 = vpack.c.b16 %v2390, %v2389
  %v2435 = vpack.c.b16 %v2392, %v2391
  %v2436 = vpack.c.b16 %v2394, %v2393
  %v2437 = vpack.c.b16 %v2396, %v2395
  %v2438 = vpack.c.b16 %v2398, %v2397
  %v2439 = vpack.c.b16 %v2400, %v2399
  %v2440 = vpack.c.b16 %v2402, %v2401
  %v2441 = vpack.c.b16 %v2404, %v2403
  %v2442 = vpack.c.b16 %v2406, %v2405
  %v2443 = vpack.c.b16 %v2408, %v2407
  %v2444 = vpack.c.b16 %v2410, %v2409
  %v2445 = vpack.c.b16 %v2412, %v2411
  %v2446 = vpack.c.b16 %v2414, %v2413
  %2479 = vmatprep.subr.bf16.mxu0 0
  %2480 = vmatpush1.bf16.msra.mxu0 %v2422
  %2481 = vmatprep.subr.bf16.mxu0 0
  %2482 = vmatpush1.bf16.msra.mxu0 %v2421
  %2483 = vmatprep.subr.bf16.mxu0 0
  %2484 = vmatpush1.bf16.msra.mxu0 %v2420
  %2485 = vmatprep.subr.bf16.mxu0 0
  %2486 = vmatpush1.bf16.msra.mxu0 %v2419
  %2487 = vmatprep.subr.bf16.mxu0 0
  %2488 = vmatpush1.bf16.msra.mxu0 %v2418
  %2489 = vmatprep.subr.bf16.mxu0 0
  %2490 = vmatpush1.bf16.msra.mxu0 %v2417
  %2491 = vmatprep.subr.bf16.mxu0 0
  %2492 = vmatpush1.bf16.msra.mxu0 %v2416
  %2493 = vmatprep.subr.bf16.mxu0 0
  %2494 = vmatpush1.bf16.msra.mxu0 %v2415
  %2495 = vmatprep.subr.bf16.mxu0 0
  %2496 = vmatpush2.bf16.msra.mxu0 %v2430
  %2497 = vmatprep.subr.bf16.mxu0 0
  %2498 = vmatpush2.bf16.msra.mxu0 %v2429
  %2499 = vmatprep.subr.bf16.mxu0 0
  %2500 = vmatpush2.bf16.msra.mxu0 %v2428
  %2501 = vmatprep.subr.bf16.mxu0 0
  %2502 = vmatpush2.bf16.msra.mxu0 %v2427
  %2503 = vmatprep.subr.bf16.mxu0 0
  %2504 = vmatpush2.bf16.msra.mxu0 %v2426
  %2505 = vmatprep.subr.bf16.mxu0 0
  %2506 = vmatpush2.bf16.msra.mxu0 %v2425
  %2507 = vmatprep.subr.bf16.mxu0 0
  %2508 = vmatpush2.bf16.msra.mxu0 %v2424
  %2509 = vmatprep.subr.bf16.mxu0 0
  %2510 = vmatpush2.bf16.msra.mxu0 %v2423
  %2511 = vmatprep.mubr.bf16.mxu0 %v2209
  %2512 = vmatmul.mubr.bf16.gmra.mxu0 %v2208
  %v2513 = vpop.f32.mrf.mxu0
  %v2514 = vadd.f32 %v2285, %v2513
  %v2515 = vpop.f32.mrf.mxu0
  %v2516 = vpop.f32.mrf.mxu0
  %v2517 = vadd.f32 %v2285, %v2516
  %v2518 = vpop.f32.mrf.mxu0
  %2519 = vmatprep.mubr.bf16.mxu0 %v2213
  %2520 = vmatmul.mubr.bf16.gmra.mxu0 %v2212
  %v2521 = vpop.f32.mrf.mxu0
  %v2522 = vadd.f32 %v2285, %v2521
  %v2523 = vpop.f32.mrf.mxu0
  %v2524 = vpop.f32.mrf.mxu0
  %v2525 = vadd.f32 %v2285, %v2524
  %v2526 = vpop.f32.mrf.mxu0
  %2527 = vdwg.mxu0
  %2528 = vmatprep.subr.bf16.mxu0 0
  %2529 = vmatpush1.bf16.msra.mxu0 %v2438
  %2530 = vmatprep.subr.bf16.mxu0 0
  %2531 = vmatpush1.bf16.msra.mxu0 %v2437
  %2532 = vmatprep.subr.bf16.mxu0 0
  %2533 = vmatpush1.bf16.msra.mxu0 %v2436
  %2534 = vmatprep.subr.bf16.mxu0 0
  %2535 = vmatpush1.bf16.msra.mxu0 %v2435
  %2536 = vmatprep.subr.bf16.mxu0 0
  %2537 = vmatpush1.bf16.msra.mxu0 %v2434
  %2538 = vmatprep.subr.bf16.mxu0 0
  %2539 = vmatpush1.bf16.msra.mxu0 %v2433
  %2540 = vmatprep.subr.bf16.mxu0 0
  %2541 = vmatpush1.bf16.msra.mxu0 %v2432
  %2542 = vmatprep.subr.bf16.mxu0 0
  %2543 = vmatpush1.bf16.msra.mxu0 %v2431
  %2544 = vmatprep.subr.bf16.mxu0 0
  %2545 = vmatpush2.bf16.msra.mxu0 %v2446
  %2546 = vmatprep.subr.bf16.mxu0 0
  %2547 = vmatpush2.bf16.msra.mxu0 %v2445
  %2548 = vmatprep.subr.bf16.mxu0 0
  %2549 = vmatpush2.bf16.msra.mxu0 %v2444
  %2550 = vmatprep.subr.bf16.mxu0 0
  %2551 = vmatpush2.bf16.msra.mxu0 %v2443
  %2552 = vmatprep.subr.bf16.mxu0 0
  %2553 = vmatpush2.bf16.msra.mxu0 %v2442
  %2554 = vmatprep.subr.bf16.mxu0 0
  %2555 = vmatpush2.bf16.msra.mxu0 %v2441
  %2556 = vmatprep.subr.bf16.mxu0 0
  %2557 = vmatpush2.bf16.msra.mxu0 %v2440
  %2558 = vmatprep.subr.bf16.mxu0 0
  %2559 = vmatpush2.bf16.msra.mxu0 %v2439
  %2560 = vmatprep.mubr.bf16.mxu0 %v2211
  %2561 = vmatmul.mubr.bf16.gmra.mxu0 %v2210
  %v2562 = vpop.f32.mrf.mxu0
  %v2563 = vadd.f32 %v2514, %v2562
  %v2564 = vpop.f32.mrf.mxu0
  %v2565 = vpop.f32.mrf.mxu0
  %v2566 = vadd.f32 %v2517, %v2565
  %v2567 = vpop.f32.mrf.mxu0
  %2568 = vmatprep.mubr.bf16.mxu0 %v2215
  %2569 = vmatmul.mubr.bf16.gmra.mxu0 %v2214
  %v2570 = vpop.f32.mrf.mxu0
  %v2571 = vadd.f32 %v2522, %v2570
  %v2572 = vpop.f32.mrf.mxu0
  %v2573 = vpop.f32.mrf.mxu0
  %v2574 = vadd.f32 %v2525, %v2573
  %v2575 = vpop.f32.mrf.mxu0
  %2576 = vdwg.mxu0
  %v2577 = vadd.f32 %v1738, %v2563
  %v2578 = vadd.f32 %v1739, %v2566
  %v2579 = vadd.f32 %v1740, %v2571
  %v2580 = vadd.f32 %v1741, %v2574
  %v2581 = vpack.c.bf16 %v2578, %v2577
  %v2582 = vpack.c.bf16 %v2580, %v2579
  %v2583 = vld [vmem:[%s23] sm:$0xf]
  %v2584 = vld [vmem:[%s23 + $0x4] sm:$0xf]
  %v2585 = vld [vmem:[%s23 + $0x8] sm:$0xf]
  %v2586 = vld [vmem:[%s23 + $0xc] sm:$0xf]
  %v2587 = vld [vmem:[%s23 + $0x10] sm:$0xf]
  %v2588 = vld [vmem:[%s23 + $0x14] sm:$0xf]
  %v2589 = vld [vmem:[%s23 + $0x18] sm:$0xf]
  %v2590 = vld [vmem:[%s23 + $0x1c] sm:$0xf]
  %v2591 = vld [vmem:[%s23 + $0x20] sm:$0xf]
  %v2592 = vld [vmem:[%s23 + $0x24] sm:$0xf]
  %v2593 = vld [vmem:[%s23 + $0x28] sm:$0xf]
  %v2594 = vld [vmem:[%s23 + $0x2c] sm:$0xf]
  %v2595 = vld [vmem:[%s23 + $0x30] sm:$0xf]
  %v2596 = vld [vmem:[%s23 + $0x34] sm:$0xf]
  %v2597 = vld [vmem:[%s23 + $0x38] sm:$0xf]
  %v2598 = vld [vmem:[%s23 + $0x3c] sm:$0xf]
  %v2599 = vld [vmem:[%s24] sm:$0x1]
  %v2601 = vlaneseq
  %v2602 = vshrl.u32 %v2601, 7
  %v2603 = vsub.s32 0, %v2602
  %v2604 = vrot.slane %v2599, %v2603
  %v2622 = vunpack.c.l.b16 %v2583
  %v2623 = vunpack.c.l.b16 %v2584
  %v2624 = vunpack.c.l.b16 %v2585
  %v2625 = vunpack.c.l.b16 %v2586
  %v2626 = vunpack.c.l.b16 %v2587
  %v2627 = vunpack.c.l.b16 %v2588
  %v2628 = vunpack.c.l.b16 %v2589
  %v2629 = vunpack.c.l.b16 %v2590
  %v2630 = vunpack.c.l.b16 %v2591
  %v2631 = vunpack.c.l.b16 %v2592
  %v2632 = vunpack.c.l.b16 %v2593
  %v2633 = vunpack.c.l.b16 %v2594
  %v2634 = vunpack.c.l.b16 %v2595
  %v2635 = vunpack.c.l.b16 %v2596
  %v2636 = vunpack.c.l.b16 %v2597
  %v2637 = vunpack.c.l.b16 %v2598
  %v2638 = vpack.c.b16 %v2623, %v2622
  %v2639 = vpack.c.b16 %v2625, %v2624
  %v2640 = vpack.c.b16 %v2627, %v2626
  %v2641 = vpack.c.b16 %v2629, %v2628
  %v2642 = vpack.c.b16 %v2631, %v2630
  %v2643 = vpack.c.b16 %v2633, %v2632
  %v2644 = vpack.c.b16 %v2635, %v2634
  %v2645 = vpack.c.b16 %v2637, %v2636
  %2654 = vmatprep.subr.bf16.mxu0 0
  %2655 = vmatpush1.bf16.msra.mxu0 %v2645
  %2656 = vmatprep.subr.bf16.mxu0 0
  %2657 = vmatpush1.bf16.msra.mxu0 %v2644
  %2658 = vmatprep.subr.bf16.mxu0 0
  %2659 = vmatpush1.bf16.msra.mxu0 %v2643
  %2660 = vmatprep.subr.bf16.mxu0 0
  %2661 = vmatpush1.bf16.msra.mxu0 %v2642
  %2662 = vmatprep.subr.bf16.mxu0 0
  %2663 = vmatpush1.bf16.msra.mxu0 %v2641
  %2664 = vmatprep.subr.bf16.mxu0 0
  %2665 = vmatpush1.bf16.msra.mxu0 %v2640
  %2666 = vmatprep.subr.bf16.mxu0 0
  %2667 = vmatpush1.bf16.msra.mxu0 %v2639
  %2668 = vmatprep.subr.bf16.mxu0 0
  %2669 = vmatpush1.bf16.msra.mxu0 %v2638
  %2670 = vmatprep.subr.bf16.mxu0 0
  %2671 = vmatpush2.bf16.msra.mxu0 0
  %2672 = vmatprep.subr.bf16.mxu0 0
  %2673 = vmatpush2.bf16.msra.mxu0 0
  %2674 = vmatprep.subr.bf16.mxu0 0
  %2675 = vmatpush2.bf16.msra.mxu0 0
  %2676 = vmatprep.subr.bf16.mxu0 0
  %2677 = vmatpush2.bf16.msra.mxu0 0
  %2678 = vmatprep.subr.bf16.mxu0 0
  %2679 = vmatpush2.bf16.msra.mxu0 0
  %2680 = vmatprep.subr.bf16.mxu0 0
  %2681 = vmatpush2.bf16.msra.mxu0 0
  %2682 = vmatprep.subr.bf16.mxu0 0
  %2683 = vmatpush2.bf16.msra.mxu0 0
  %2684 = vmatprep.subr.bf16.mxu0 0
  %2685 = vmatpush2.bf16.msra.mxu0 0
  %2686 = vmatprep.mubr.bf16.mxu0 0
  %2687 = vmatmul.mubr.bf16.gmra.mxu0 %v2581
  %v2688 = vpop.f32.mrf.mxu0
  %v2689 = vadd.f32 %v2604, %v2688
  %v2690 = vpop.f32.mrf.mxu0
  %v2691 = vpop.f32.mrf.mxu0
  %v2692 = vadd.f32 %v2604, %v2691
  %v2693 = vpop.f32.mrf.mxu0
  %2694 = vmatprep.mubr.bf16.mxu0 0
  %2695 = vmatmul.mubr.bf16.gmra.mxu0 %v2582
  %v2696 = vpop.f32.mrf.mxu0
  %v2697 = vadd.f32 %v2604, %v2696
  %v2698 = vpop.f32.mrf.mxu0
  %v2699 = vpop.f32.mrf.mxu0
  %v2700 = vadd.f32 %v2604, %v2699
  %v2701 = vpop.f32.mrf.mxu0
  %2702 = vdwg.mxu0
  %v2703 = vld [vmem:[%s3] sm:$0xff]
  %v2704 = vld [vmem:[%s3 + $0x8] sm:$0xff]
  %v2705 = vld [vmem:[%s3 + $0x10] sm:$0xff]
  %v2706 = vld [vmem:[%s3 + $0x18] sm:$0xff]
  %v2707 = vsub.f32 %v2689, %v2703
  %v2708 = vsub.f32 %v2692, %v2704
  %v2709 = vsub.f32 %v2697, %v2705
  %v2710 = vsub.f32 %v2700, %v2706
  %v2711 = vmul.f32 %v2707, %v2707
  %v2712 = vmul.f32 %v2708, %v2708
  %v2713 = vmul.f32 %v2709, %v2709
  %v2714 = vmul.f32 %v2710, %v2710
  %v2715 = vsel %vm760, %v2711, 0.0
  %2716 = vadd.xlane.f32.xlu0 %v2715
  %v2717 = vpop.xlane.xlu0 %2716
  %v2718 = vsel %vm760, %v2712, 0.0
  %2719 = vadd.xlane.f32.xlu0 %v2718
  %v2720 = vpop.xlane.xlu0 %2719
  %v2721 = vsel %vm760, %v2713, 0.0
  %2722 = vadd.xlane.f32.xlu0 %v2721
  %v2723 = vpop.xlane.xlu0 %2722
  %v2724 = vsel %vm760, %v2714, 0.0
  %2725 = vadd.xlane.f32.xlu0 %v2724
  %v2726 = vpop.xlane.xlu0 %2725
  %v2727 = vadd.f32 %v2717, %v2720
  %v2728 = vrot.slane %v2727, 4
  %v2729 = vadd.f32 %v2727, %v2728
  %v2730 = vrot.slane %v2729, 2
  %v2731 = vadd.f32 %v2729, %v2730
  %v2732 = vrot.slane %v2731, 1
  %v2733 = vadd.f32 %v2731, %v2732
  %v2734 = vadd.f32 %v2723, %v2726
  %v2735 = vrot.slane %v2734, 4
  %v2736 = vadd.f32 %v2734, %v2735
  %v2737 = vrot.slane %v2736, 2
  %v2738 = vadd.f32 %v2736, %v2737
  %v2739 = vrot.slane %v2738, 1
  %v2740 = vadd.f32 %v2738, %v2739
  %2741 = vst [vmem:[%s25] sm:$0x1] %v2733
  %2742 = vst [vmem:[%s25 + $0x1] sm:$0x1] %v2740
  // Predicated region
  $region98: #{run.1} parent=0 // pred_check
    _
  $region99: #{run.1} parent=0 // pred_check_branch
    %2744 = sbr.rel (0) target = $region101
  $region100: #{run.1} parent=0 // pred_region
    _
  $region101: #{run.1} parent=0 // pred_fallthru
    _
  // Predicated region
  $region102: #{run.1} parent=0 // pred_check
    _
  $region103: #{run.1} parent=0 // pred_check_branch
    %2746 = sbr.rel (0) target = $region105
  $region104: #{run.1} parent=0 // pred_region
    _
  $region105: #{run.1} parent=0 // pred_fallthru
    _
  // Predicated region
  $region106: #{run.1} parent=0 // pred_check
    _
  $region107: #{run.1} parent=0 // pred_check_branch
    %2748 = sbr.rel (0) target = $region109
  $region108: #{run.1} parent=0 // pred_region
    _
  $region109: #{run.1} parent=0 // pred_fallthru
    _
  // Predicated region
  $region110: #{run.1} parent=0 // pred_check
    _
  $region111: #{run.1} parent=0 // pred_check_branch
    %2750 = sbr.rel (0) target = $region113
  $region112: #{run.1} parent=0 // pred_region
    _
  $region113: #{run.1} parent=0 // pred_fallthru
    _

</llo_original>
